<compile_context>
chip_gen: v7x
topology: tpu7x:2x2x1
jax: 0.10.0
libtpu: 0.0.40
codegen_flags: <defaults>
</compile_context>

<pallas_src>
import jax
import jax.numpy as jnp
from jax.experimental import pallas as pl
from jax.experimental.pallas import tpu as pltpu

_LANE = 128


def _round_up(x, m):
    return pl.cdiv(x, m) * m


def attn_decoder_kernel(hidden_ref, mask_ref,
                        w1_ref, b1_ref, w2_ref, b2_ref,
                        wo_ref, bo_ref,
                        attn_ref, pred_ref):
    Bb, Tp, Hp = hidden_ref.shape
    Kp = w1_ref.shape[1]

    # ---- projection 1: one big (Bb*Tp, Hp) x (Hp, Kp) MXU matmul, f32 accumulation ----
    hidden = hidden_ref[...]                            # native dtype, no blanket upcast
    h2d = hidden.reshape(Bb * Tp, Hp)
    a1 = jnp.dot(h2d, w1_ref[...], preferred_element_type=jnp.float32)
    a1 = jnp.tanh(a1 + b1_ref[...])                     # (Bb*Tp, Kp) f32; tanh -> EUP
    a1 = a1.reshape(Bb, Tp, Kp)

    # ---- projection 2 (single output column): VPU broadcast-mul + lane reduce (XLU), not MXU ----
    scores = jnp.sum(a1 * w2_ref[...], axis=-1) + b2_ref[...]      # (Bb, Tp) f32

    # ---- masked softmax over T (mask == 1.0 -> padded position, excluded) ----
    mask = mask_ref[...]
    scores = jnp.where(mask > 0.5, jnp.float32(-1e30), scores)
    m = jnp.max(scores, axis=-1, keepdims=True)
    e = jnp.exp(scores - m)
    denom = jnp.sum(e, axis=-1, keepdims=True)
    denom = jnp.maximum(denom, jnp.float32(1e-30))      # guard fully-masked rows
    r = pl.reciprocal(denom, approx=True)               # EUP vrcp (own VLIW slot)
    r = r * (jnp.float32(2.0) - denom * r)              # one Newton step -> ~f32 accuracy
    attn = e * r                                        # (Bb, Tp); exact 0.0 at masked positions
    attn_ref[...] = attn.astype(attn_ref.dtype)

    # ---- context = sum_t attn * hidden : VPU broadcast-mul + sublane reduce (off the MXU) ----
    ctx = jnp.sum(attn[:, :, None] * hidden, axis=1)    # (Bb, Hp) f32

    # ---- decode: (Bb, Hp) x (Hp, Op) MXU matmul + lane-dense bias add ----
    pred = jnp.dot(ctx, wo_ref[...], preferred_element_type=jnp.float32) + bo_ref[...]
    pred_ref[...] = pred.astype(pred_ref.dtype)


def attn_decoder(hidden, mask, params, *, batch_tile=8):
    """hidden: (B, T, H); mask: (B, T) float (1.0 = pad). Returns (attn (B, T), predict (B, O))."""
    B, T, H = hidden.shape
    K = params['w1'].shape[0]
    O = params['wo'].shape[0]

    Bb = batch_tile
    Bp = _round_up(B, Bb)
    Tp = _round_up(T, _LANE)
    Hp = _round_up(H, _LANE)
    Kp = _round_up(K, _LANE)
    Op = _round_up(O, _LANE)

    # Pad activations; padded positions / padded batch rows are masked out (mask = 1.0).
    hidden_p = jnp.pad(hidden, ((0, Bp - B), (0, Tp - T), (0, Hp - H)))
    mask_p = jnp.pad(mask.astype(jnp.float32), ((0, Bp - B), (0, Tp - T)), constant_values=1.0)

    # Pad weights to lane multiples (zeros keep the math exact) and pre-transpose so the kernel
    # runs plain (M,K)x(K,N) dots. Biases go in as 2D lane-aligned rows.
    w1 = jnp.pad(params['w1'], ((0, Kp - K), (0, Hp - H))).T          # (Hp, Kp)
    b1 = jnp.pad(params['b1'], (0, Kp - K)).reshape(1, Kp)            # (1, Kp)
    w2 = jnp.pad(params['w2'], ((0, 0), (0, Kp - K)))                 # (1, Kp)
    b2 = params['b2'].reshape(1, 1)                                   # (1, 1)
    wo = jnp.pad(params['wo'], ((0, Op - O), (0, Hp - H))).T          # (Hp, Op)
    bo = jnp.pad(params['bo'], (0, Op - O)).reshape(1, Op)            # (1, Op)

    const2d = lambda b: (0, 0)                                        # weights stay VMEM-resident
    grid = (Bp // Bb,)

    itemsize = jnp.dtype(hidden.dtype).itemsize
    cost = pl.CostEstimate(
        flops=int(2 * B * T * H * K + 3 * B * T * K + 3 * B * T * H + 2 * B * H * O),
        transcendentals=int(B * T * (K + 2)),
        bytes_accessed=int((hidden.size + mask.size + B * T + B * O
                            + sum(int(p.size) for p in params.values())) * itemsize),
    )

    attn_p, pred_p = pl.pallas_call(
        attn_decoder_kernel,
        grid=grid,
        in_specs=[
            pl.BlockSpec((Bb, Tp, Hp), lambda b: (b, 0, 0)),   # hidden: streamed per batch tile
            pl.BlockSpec((Bb, Tp), lambda b: (b, 0)),          # mask
            pl.BlockSpec((Hp, Kp), const2d),                   # w1 (resident)
            pl.BlockSpec((1, Kp), const2d),                    # b1
            pl.BlockSpec((1, Kp), const2d),                    # w2
            pl.BlockSpec((1, 1), const2d),                     # b2
            pl.BlockSpec((Hp, Op), const2d),                   # wo
            pl.BlockSpec((1, Op), const2d),                    # bo
        ],
        out_specs=(
            pl.BlockSpec((Bb, Tp), lambda b: (b, 0)),          # attn (lane-dense: Tp % 128 == 0)
            pl.BlockSpec((Bb, Op), lambda b: (b, 0)),          # predict (lane-dense: Op == 128)
        ),
        out_shape=(
            jax.ShapeDtypeStruct((Bp, Tp), jnp.float32),
            jax.ShapeDtypeStruct((Bp, Op), jnp.float32),
        ),
        compiler_params=pltpu.CompilerParams(
            dimension_semantics=("parallel",)),                # batch tiles shard across TCs (v7x)
        cost_estimate=cost,
    )(hidden_p, mask_p, w1, b1, w2, b2, wo, bo)

    return attn_p[:B, :T], pred_p[:B, :O]


def init_params(key, hidden_size, output_size):
    """Deterministic synthetic parameters matching the PyTorch module's shapes."""
    k = hidden_size // 2
    ks = jax.random.split(key, 6)
    scale = 0.1
    return {
        # Attention (tanh / additive): attn1 = Linear(H, H//2), attn2 = Linear(H//2, 1)
        'w1': scale * jax.random.normal(ks[0], (k, hidden_size), jnp.float32),
        'b1': scale * jax.random.normal(ks[1], (k,), jnp.float32),
        'w2': scale * jax.random.normal(ks[2], (1, k), jnp.float32),
        'b2': scale * jax.random.normal(ks[3], (1,), jnp.float32),
        # Decoder: linear_1 = Linear(H, output_size)
        'wo': scale * jax.random.normal(ks[4], (output_size, hidden_size), jnp.float32),
        'bo': scale * jax.random.normal(ks[5], (output_size,), jnp.float32),
    }


def reference(hidden, mask, p):
    """Plain-JAX reference of the same forward, for a sanity check."""
    a1 = jnp.tanh(jnp.einsum('bth,kh->btk', hidden, p['w1']) + p['b1'])
    scores = jnp.einsum('btk,k->bt', a1, p['w2'][0]) + p['b2'][0]
    scores = jnp.where(mask > 0.5, -1e30, scores)
    attn = jax.nn.softmax(scores, axis=1)
    context = jnp.einsum('bt,bth->bh', attn, hidden)
    pred = context @ p['wo'].T + p['bo']
    return attn, pred


if __name__ == "__main__":
    B, T, H, O = 2, 8, 32, 1
    key = jax.random.PRNGKey(0)
    k_h, k_p = jax.random.split(key)

    hidden = jax.random.normal(k_h, (B, T, H), jnp.float32)
    # mask: last two positions of batch element 1 are padding
    mask = jnp.zeros((B, T), jnp.float32).at[1, T - 2:].set(1.0)

    params = init_params(k_p, H, O)

    attn, pred = attn_decoder(hidden, mask, params)
    jax.block_until_ready((attn, pred))

    attn_ref, pred_ref = reference(hidden, mask, params)
    assert jnp.allclose(attn, attn_ref, atol=1e-5, rtol=1e-5), "attention mismatch"
    assert jnp.allclose(pred, pred_ref, atol=1e-5, rtol=1e-5), "predict mismatch"
    assert bool(jnp.all(attn[1, T - 2:] == 0.0)), "masked positions should get 0 attention"

    print("KERNEL_OK")
</pallas_src>

<mosaic_0001>
module attributes {stable_mosaic.version = 11 : i64} {
  func.func @attn_decoder_kernel(%arg0: i32, %arg1: memref<8x128x128xf32, #tpu.memory_space<vmem>>, %arg2: memref<8x128xf32, #tpu.memory_space<vmem>>, %arg3: memref<128x128xf32, #tpu.memory_space<vmem>>, %arg4: memref<1x128xf32, #tpu.memory_space<vmem>>, %arg5: memref<1x128xf32, #tpu.memory_space<vmem>>, %arg6: memref<1x1xf32, #tpu.memory_space<vmem>>, %arg7: memref<128x128xf32, #tpu.memory_space<vmem>>, %arg8: memref<1x128xf32, #tpu.memory_space<vmem>>, %arg9: memref<8x128xf32, #tpu.memory_space<vmem>>, %arg10: memref<8x128xf32, #tpu.memory_space<vmem>>) attributes {dimension_semantics = [#tpu.dimension_semantics<parallel>], iteration_bounds = array<i64: 1>, scalar_prefetch = 0 : i64, scratch_operands = 0 : i64, tpu.core_type = #tpu.core_type<tc>, window_params = [{transform_indices = @transform_0, window_bounds = array<i64: 8, 128, 128>}, {transform_indices = @transform_1, window_bounds = array<i64: 8, 128>}, {pipeline_mode = #tpu.pipeline_mode<synchronous>, transform_indices = @transform_2, window_bounds = array<i64: 128, 128>}, {pipeline_mode = #tpu.pipeline_mode<synchronous>, transform_indices = @transform_3, window_bounds = array<i64: 1, 128>}, {pipeline_mode = #tpu.pipeline_mode<synchronous>, transform_indices = @transform_4, window_bounds = array<i64: 1, 128>}, {pipeline_mode = #tpu.pipeline_mode<synchronous>, transform_indices = @transform_5, window_bounds = array<i64: 1, 1>}, {pipeline_mode = #tpu.pipeline_mode<synchronous>, transform_indices = @transform_6, window_bounds = array<i64: 128, 128>}, {pipeline_mode = #tpu.pipeline_mode<synchronous>, transform_indices = @transform_7, window_bounds = array<i64: 1, 128>}, {transform_indices = @transform_8, window_bounds = array<i64: 8, 128>}, {transform_indices = @transform_9, window_bounds = array<i64: 8, 128>}]} {
    %c0 = arith.constant 0 : index
    %c0_0 = arith.constant 0 : index
    %c0_1 = arith.constant 0 : index
    %0 = vector.load %arg1[%c0, %c0_0, %c0_1] : memref<8x128x128xf32, #tpu.memory_space<vmem>>, vector<8x128x128xf32>
    %1 = vector.shape_cast %0 : vector<8x128x128xf32> to vector<1024x128xf32>
    %c0_2 = arith.constant 0 : index
    %c0_3 = arith.constant 0 : index
    %2 = vector.load %arg3[%c0_2, %c0_3] : memref<128x128xf32, #tpu.memory_space<vmem>>, vector<128x128xf32>
    %cst = arith.constant dense<0.000000e+00> : vector<1024x128xf32>
    %3 = tpu.matmul %1, %2, %cst {dimension_numbers = #tpu.dot_dimension_numbers<[1], [0], [0], [1], [0, 0, 1, 1], [], []>} : vector<1024x128xf32>, vector<128x128xf32>, vector<1024x128xf32> -> vector<1024x128xf32>
    %c0_4 = arith.constant 0 : index
    %c0_5 = arith.constant 0 : index
    %4 = vector.load %arg4[%c0_4, %c0_5] : memref<1x128xf32, #tpu.memory_space<vmem>>, vector<1x128xf32>
    %5 = vector.broadcast %4 : vector<1x128xf32> to vector<1024x128xf32>
    %6 = arith.addf %3, %5 : vector<1024x128xf32>
    %7 = math.tanh %6 : vector<1024x128xf32>
    %8 = vector.shape_cast %7 : vector<1024x128xf32> to vector<8x128x128xf32>
    %c0_6 = arith.constant 0 : index
    %c0_7 = arith.constant 0 : index
    %9 = vector.load %arg5[%c0_6, %c0_7] : memref<1x128xf32, #tpu.memory_space<vmem>>, vector<1x128xf32>
    %10 = vector.shape_cast %9 : vector<1x128xf32> to vector<1x1x128xf32>
    %11 = vector.broadcast %10 : vector<1x1x128xf32> to vector<8x128x128xf32>
    %12 = arith.mulf %8, %11 : vector<8x128x128xf32>
    %cst_8 = arith.constant dense<0.000000e+00> : vector<8x128xf32>
    %13 = vector.multi_reduction <add>, %12, %cst_8 [2] : vector<8x128x128xf32> to vector<8x128xf32>
    %c0_9 = arith.constant 0 : index
    %c0_10 = arith.constant 0 : index
    %14 = vector.load %arg6[%c0_9, %c0_10] : memref<1x1xf32, #tpu.memory_space<vmem>>, vector<1x1xf32>
    %15 = vector.broadcast %14 : vector<1x1xf32> to vector<8x128xf32>
    %16 = arith.addf %13, %15 : vector<8x128xf32>
    %c0_11 = arith.constant 0 : index
    %c0_12 = arith.constant 0 : index
    %17 = vector.load %arg2[%c0_11, %c0_12] : memref<8x128xf32, #tpu.memory_space<vmem>>, vector<8x128xf32>
    %cst_13 = arith.constant 5.000000e-01 : f32
    %18 = vector.broadcast %cst_13 : f32 to vector<8x128xf32>
    %19 = arith.cmpf ogt, %17, %18 : vector<8x128xf32>
    %cst_14 = arith.constant -1.000000e+30 : f32
    %20 = vector.broadcast %cst_14 : f32 to vector<8x128xf32>
    %21 = arith.select %19, %20, %16 : vector<8x128xi1>, vector<8x128xf32>
    %cst_15 = arith.constant dense<0xFF800000> : vector<8xf32>
    %22 = vector.multi_reduction <maximumf>, %21, %cst_15 [1] : vector<8x128xf32> to vector<8xf32>
    %23 = vector.shape_cast %22 : vector<8xf32> to vector<8x1xf32>
    %24 = vector.broadcast %23 : vector<8x1xf32> to vector<8x128xf32>
    %25 = arith.subf %21, %24 : vector<8x128xf32>
    %26 = math.exp %25 : vector<8x128xf32>
    %cst_16 = arith.constant dense<0.000000e+00> : vector<8xf32>
    %27 = vector.multi_reduction <add>, %26, %cst_16 [1] : vector<8x128xf32> to vector<8xf32>
    %28 = vector.shape_cast %27 : vector<8xf32> to vector<8x1xf32>
    %cst_17 = arith.constant 1.000000e-30 : f32
    %29 = vector.broadcast %cst_17 : f32 to vector<8x1xf32>
    %30 = arith.maximumf %28, %29 : vector<8x1xf32>
    %31 = tpu.reciprocal %30 {approx = true} : vector<8x1xf32> -> vector<8x1xf32>
    %32 = arith.mulf %30, %31 : vector<8x1xf32>
    %cst_18 = arith.constant 2.000000e+00 : f32
    %33 = vector.broadcast %cst_18 : f32 to vector<8x1xf32>
    %34 = arith.subf %33, %32 : vector<8x1xf32>
    %35 = arith.mulf %31, %34 : vector<8x1xf32>
    %36 = vector.broadcast %35 : vector<8x1xf32> to vector<8x128xf32>
    %37 = arith.mulf %26, %36 : vector<8x128xf32>
    %c0_19 = arith.constant 0 : index
    %c0_20 = arith.constant 0 : index
    %38 = vector.load %arg9[%c0_19, %c0_20] : memref<8x128xf32, #tpu.memory_space<vmem>>, vector<8x128xf32>
    tpu.vector_store %arg9[%c0_19, %c0_20], %37 {strides = array<i32>} : memref<8x128xf32, #tpu.memory_space<vmem>>, vector<8x128xf32>,
    %39 = vector.shape_cast %37 : vector<8x128xf32> to vector<8x128x1xf32>
    %40 = vector.broadcast %39 : vector<8x128x1xf32> to vector<8x128x128xf32>
    %41 = arith.mulf %40, %0 : vector<8x128x128xf32>
    %cst_21 = arith.constant dense<0.000000e+00> : vector<8x128xf32>
    %42 = vector.multi_reduction <add>, %41, %cst_21 [1] : vector<8x128x128xf32> to vector<8x128xf32>
    %c0_22 = arith.constant 0 : index
    %c0_23 = arith.constant 0 : index
    %43 = vector.load %arg7[%c0_22, %c0_23] : memref<128x128xf32, #tpu.memory_space<vmem>>, vector<128x128xf32>
    %cst_24 = arith.constant dense<0.000000e+00> : vector<8x128xf32>
    %44 = tpu.matmul %42, %43, %cst_24 {dimension_numbers = #tpu.dot_dimension_numbers<[1], [0], [0], [1], [0, 0, 1, 1], [], []>} : vector<8x128xf32>, vector<128x128xf32>, vector<8x128xf32> -> vector<8x128xf32>
    %c0_25 = arith.constant 0 : index
    %c0_26 = arith.constant 0 : index
    %45 = vector.load %arg8[%c0_25, %c0_26] : memref<1x128xf32, #tpu.memory_space<vmem>>, vector<1x128xf32>
    %46 = vector.broadcast %45 : vector<1x128xf32> to vector<8x128xf32>
    %47 = arith.addf %44, %46 : vector<8x128xf32>
    %c0_27 = arith.constant 0 : index
    %c0_28 = arith.constant 0 : index
    %48 = vector.load %arg10[%c0_27, %c0_28] : memref<8x128xf32, #tpu.memory_space<vmem>>, vector<8x128xf32>
    tpu.vector_store %arg10[%c0_27, %c0_28], %47 {strides = array<i32>} : memref<8x128xf32, #tpu.memory_space<vmem>>, vector<8x128xf32>,
    return
  }
  func.func @transform_0(%arg0: i32) -> (i32, i32, i32) {
    %c0_i32 = arith.constant 0 : i32
    %c0_i32_0 = arith.constant 0 : i32
    %c0_i32_1 = arith.constant 0 : i32
    return %arg0, %c0_i32, %c0_i32_0 : i32, i32, i32
  }
  func.func @transform_1(%arg0: i32) -> (i32, i32) {
    %c0_i32 = arith.constant 0 : i32
    %c0_i32_0 = arith.constant 0 : i32
    return %arg0, %c0_i32 : i32, i32
  }
  func.func @transform_2(%arg0: i32) -> (i32, i32) {
    %c0_i32 = arith.constant 0 : i32
    %c0_i32_0 = arith.constant 0 : i32
    %c0_i32_1 = arith.constant 0 : i32
    return %c0_i32, %c0_i32_0 : i32, i32
  }
  func.func @transform_3(%arg0: i32) -> (i32, i32) {
    %c0_i32 = arith.constant 0 : i32
    %c0_i32_0 = arith.constant 0 : i32
    %c0_i32_1 = arith.constant 0 : i32
    return %c0_i32, %c0_i32_0 : i32, i32
  }
  func.func @transform_4(%arg0: i32) -> (i32, i32) {
    %c0_i32 = arith.constant 0 : i32
    %c0_i32_0 = arith.constant 0 : i32
    %c0_i32_1 = arith.constant 0 : i32
    return %c0_i32, %c0_i32_0 : i32, i32
  }
  func.func @transform_5(%arg0: i32) -> (i32, i32) {
    %c0_i32 = arith.constant 0 : i32
    %c0_i32_0 = arith.constant 0 : i32
    %c0_i32_1 = arith.constant 0 : i32
    return %c0_i32, %c0_i32_0 : i32, i32
  }
  func.func @transform_6(%arg0: i32) -> (i32, i32) {
    %c0_i32 = arith.constant 0 : i32
    %c0_i32_0 = arith.constant 0 : i32
    %c0_i32_1 = arith.constant 0 : i32
    return %c0_i32, %c0_i32_0 : i32, i32
  }
  func.func @transform_7(%arg0: i32) -> (i32, i32) {
    %c0_i32 = arith.constant 0 : i32
    %c0_i32_0 = arith.constant 0 : i32
    %c0_i32_1 = arith.constant 0 : i32
    return %c0_i32, %c0_i32_0 : i32, i32
  }
  func.func @transform_8(%arg0: i32) -> (i32, i32) {
    %c0_i32 = arith.constant 0 : i32
    %c0_i32_0 = arith.constant 0 : i32
    return %arg0, %c0_i32 : i32, i32
  }
  func.func @transform_9(%arg0: i32) -> (i32, i32) {
    %c0_i32 = arith.constant 0 : i32
    %c0_i32_0 = arith.constant 0 : i32
    return %arg0, %c0_i32 : i32, i32
  }
}

</mosaic_0001>

<llo_original>
// kernel: tpu_custom_call.1
$region0: #{tpu_custom_call.1}
  #allocation0 [shape = 'u32[]', space=smem, size = 0x4, offset = 0x4, fixed_abs, tag = 'smem constant byte address 0x4 - core index']
  #allocation1 [shape = 'u32[144,128]{1,0:T(1,128)}', space=vmem, size = 0x12000, scoped, tag = 'internal scratch']
  #allocation2 [shape = 'f32[1,1]{1,0:T(1,128)S(1)}', space=vmem, size = 0x200, scoped, tag = 'scoped memory for tpu_custom_call.1']
  %s0 = inlined_call_operand.hbm [shape: f32[8,128,128], index: 0, kind: input, shape index: {}]
  %s1 = inlined_call_operand.hbm [shape: f32[8,128], index: 1, kind: input, shape index: {}]
  %s2 = inlined_call_operand.hbm [shape: f32[128,128], index: 2, kind: input, shape index: {}]
  %s3 = inlined_call_operand.vmem [shape: f32[1,128], index: 3, kind: input, shape index: {}]
  %s4 = inlined_call_operand.vmem [shape: f32[1,128], index: 4, kind: input, shape index: {}]
  %s5 = inlined_call_operand.<no memory space> [shape: f32[1,1], index: 5, kind: input, shape index: {}]
  %s6 = inlined_call_operand.hbm [shape: f32[128,128], index: 6, kind: input, shape index: {}]
  %s7 = inlined_call_operand.vmem [shape: f32[1,128], index: 7, kind: input, shape index: {}]
  %s8 = inlined_call_operand.hbm [shape: f32[8,128], index: 8, kind: output, shape index: {0}]
  %s9 = inlined_call_operand.hbm [shape: f32[8,128], index: 9, kind: output, shape index: {1}]
  %10 = xla_tuple %s8, %s9
  %s11 = sld [smem:[#allocation0]]
  $region66: #{tpu_custom_call.1} parent=0
    _
  %s13 = ssub.s32 1, %s11
  %s14 = scalar_select 0, %s13, %s11
  %v15 = vstv %s5
  %16 = vst [vmem:[#allocation2] sm:$0x1] %v15
  $region1: #{tpu_custom_call.1} parent=0
    #allocation3 [shape = 'u8[524288]{0}', space=vmem, size = 0x80000, scoped, tag = 'input window, operand 0, single buffered']
    #allocation4 [shape = 's32[1]{0}', space=sflag, size = 0x4, scoped, tag = 'scoped memory for tpu_custom_call.1']
    #allocation5 [shape = 's32[1]{0}', space=sflag, size = 0x4, scoped, tag = 'scoped memory for tpu_custom_call.1']
    #allocation6 [shape = 'u8[4096]{0}', space=vmem, size = 0x1000, scoped, tag = 'input window, operand 1, single buffered']
    #allocation7 [shape = 's32[1]{0}', space=sflag, size = 0x4, scoped, tag = 'scoped memory for tpu_custom_call.1']
    #allocation8 [shape = 'u8[65536]{0}', space=vmem, size = 0x10000, scoped, tag = 'input window, operand 2, single buffered']
    #allocation9 [shape = 'u8[65536]{0}', space=vmem, size = 0x10000, scoped, tag = 'input window, operand 6, single buffered']
    #allocation10 [shape = 's32[1]{0}', space=sflag, size = 0x4, scoped, tag = 'scoped memory for tpu_custom_call.1']
    #allocation11 [shape = 'u8[4096]{0}', space=vmem, size = 0x1000, scoped, tag = 'output window, operand 0, single buffered']
    #allocation12 [shape = 'u8[4096]{0}', space=vmem, size = 0x1000, scoped, tag = 'output window, operand 1, single buffered']
    #allocation13 [shape = 's32[1]{0}', space=sflag, size = 0x4, scoped, tag = 'scoped memory for tpu_custom_call.1']
    %17 = vsyncpa [#allocation4], 0
    %18 = vsyncpa [#allocation7], 0
    %19 = vsyncpa [#allocation10], 0
    %20 = vsyncpa [#allocation5], 0
    %21 = vsyncpa [#allocation13], 0
    // Predicated region
    $region2: #{tpu_custom_call.1} parent=1 // pred_check
      _
    $region3: #{tpu_custom_call.1} parent=1 // pred_check_branch
      %23 = sbr.rel (0) target = $region5
    $region4: #{tpu_custom_call.1} parent=1 // pred_region
      %s25 = ssub.s32 16384, 16384
      %26 = vsyncadd [#allocation4], %s25
      %s27 = sshll.u32 [#allocation3], 4
      %s28 = int_to_ptr.vmem [resolvable:$true] %s27
      %33 = dma.hbm_to_vmem [thread:$0]  %s0, 16384, %s28, [#allocation4], 128, 128, 8
    $region5: #{tpu_custom_call.1} parent=1 // pred_fallthru
      _
    // Predicated region
    $region6: #{tpu_custom_call.1} parent=1 // pred_check
      _
    $region7: #{tpu_custom_call.1} parent=1 // pred_check_branch
      %35 = sbr.rel (0) target = $region9
    $region8: #{tpu_custom_call.1} parent=1 // pred_region
      %s37 = ssub.s32 128, 128
      %38 = vsyncadd [#allocation7], %s37
      %s40 = sshll.u32 [#allocation6], 4
      %s41 = int_to_ptr.vmem [resolvable:$true] %s40
      %43 = dma.hbm_to_vmem [thread:$0]  %s1, 128, %s41, [#allocation7]
    $region9: #{tpu_custom_call.1} parent=1 // pred_fallthru
      _
    // Predicated region
    $region10: #{tpu_custom_call.1} parent=1 // pred_check
      _
    $region11: #{tpu_custom_call.1} parent=1 // pred_check_branch
      %45 = sbr.rel (0) target = $region13
    $region12: #{tpu_custom_call.1} parent=1 // pred_region
      %s47 = ssub.s32 2048, 2048
      %48 = vsyncadd [#allocation7], %s47
      %s49 = sshll.u32 [#allocation8], 4
      %s50 = int_to_ptr.vmem [resolvable:$true] %s49
      %55 = dma.hbm_to_vmem [thread:$0]  %s2, 2048, %s50, [#allocation7], 128, 128, 8
    $region13: #{tpu_custom_call.1} parent=1 // pred_fallthru
      _
    // Predicated region
    $region14: #{tpu_custom_call.1} parent=1 // pred_check
      _
    $region15: #{tpu_custom_call.1} parent=1 // pred_check_branch
      %57 = sbr.rel (0) target = $region17
    $region16: #{tpu_custom_call.1} parent=1 // pred_region
      _
    $region17: #{tpu_custom_call.1} parent=1 // pred_fallthru
      _
    // Predicated region
    $region18: #{tpu_custom_call.1} parent=1 // pred_check
      _
    $region19: #{tpu_custom_call.1} parent=1 // pred_check_branch
      %59 = sbr.rel (0) target = $region21
    $region20: #{tpu_custom_call.1} parent=1 // pred_region
      _
    $region21: #{tpu_custom_call.1} parent=1 // pred_fallthru
      _
    // Predicated region
    $region22: #{tpu_custom_call.1} parent=1 // pred_check
      _
    $region23: #{tpu_custom_call.1} parent=1 // pred_check_branch
      %61 = sbr.rel (0) target = $region25
    $region24: #{tpu_custom_call.1} parent=1 // pred_region
      _
    $region25: #{tpu_custom_call.1} parent=1 // pred_fallthru
      _
    // Predicated region
    $region26: #{tpu_custom_call.1} parent=1 // pred_check
      _
    $region27: #{tpu_custom_call.1} parent=1 // pred_check_branch
      %63 = sbr.rel (0) target = $region29
    $region28: #{tpu_custom_call.1} parent=1 // pred_region
      %s65 = ssub.s32 2048, 2048
      %66 = vsyncadd [#allocation10], %s65
      %s67 = sshll.u32 [#allocation9], 4
      %s68 = int_to_ptr.vmem [resolvable:$true] %s67
      %73 = dma.hbm_to_vmem [thread:$0]  %s6, 2048, %s68, [#allocation10], 128, 128, 8
    $region29: #{tpu_custom_call.1} parent=1 // pred_fallthru
      _
    // Predicated region
    $region30: #{tpu_custom_call.1} parent=1 // pred_check
      _
    $region31: #{tpu_custom_call.1} parent=1 // pred_check_branch
      %75 = sbr.rel (0) target = $region33
    $region32: #{tpu_custom_call.1} parent=1 // pred_region
      _
    $region33: #{tpu_custom_call.1} parent=1 // pred_fallthru
      _
    // Predicated region
    $region34: #{tpu_custom_call.1} parent=1 // pred_check
      _
    $region35: #{tpu_custom_call.1} parent=1 // pred_check_branch
      %77 = sbr.rel (0) target = $region37
    $region36: #{tpu_custom_call.1} parent=1 // pred_region
      %78 = dma.done [#allocation4], 16384
    $region37: #{tpu_custom_call.1} parent=1 // pred_fallthru
      _
    // Predicated region
    $region38: #{tpu_custom_call.1} parent=1 // pred_check
      _
    $region39: #{tpu_custom_call.1} parent=1 // pred_check_branch
      %80 = sbr.rel (0) target = $region41
    $region40: #{tpu_custom_call.1} parent=1 // pred_region
      %81 = dma.done [#allocation7], 128
    $region41: #{tpu_custom_call.1} parent=1 // pred_fallthru
      _
    // Predicated region
    $region42: #{tpu_custom_call.1} parent=1 // pred_check
      _
    $region43: #{tpu_custom_call.1} parent=1 // pred_check_branch
      %83 = sbr.rel (0) target = $region45
    $region44: #{tpu_custom_call.1} parent=1 // pred_region
      %84 = dma.done [#allocation7], 2048
    $region45: #{tpu_custom_call.1} parent=1 // pred_fallthru
      _
    // Predicated region
    $region46: #{tpu_custom_call.1} parent=1 // pred_check
      _
    $region47: #{tpu_custom_call.1} parent=1 // pred_check_branch
      %86 = sbr.rel (0) target = $region49
    $region48: #{tpu_custom_call.1} parent=1 // pred_region
      %87 = dma.done [#allocation10], 2048
    $region49: #{tpu_custom_call.1} parent=1 // pred_fallthru
      _
    %v88 = vld [vmem:[#allocation3] sm:$0xff]
    %v89 = vld [vmem:[#allocation3 + $0x8] sm:$0xff]
    %v90 = vld [vmem:[#allocation3 + $0x10] sm:$0xff]
    %v91 = vld [vmem:[#allocation3 + $0x18] sm:$0xff]
    %v92 = vld [vmem:[#allocation3 + $0x20] sm:$0xff]
    %v93 = vld [vmem:[#allocation3 + $0x28] sm:$0xff]
    %v94 = vld [vmem:[#allocation3 + $0x30] sm:$0xff]
    %v95 = vld [vmem:[#allocation3 + $0x38] sm:$0xff]
    %v96 = vld [vmem:[#allocation3 + $0x40] sm:$0xff]
    %v97 = vld [vmem:[#allocation3 + $0x48] sm:$0xff]
    %v98 = vld [vmem:[#allocation3 + $0x50] sm:$0xff]
    %v99 = vld [vmem:[#allocation3 + $0x58] sm:$0xff]
    %v100 = vld [vmem:[#allocation3 + $0x60] sm:$0xff]
    %v101 = vld [vmem:[#allocation3 + $0x68] sm:$0xff]
    %v102 = vld [vmem:[#allocation3 + $0x70] sm:$0xff]
    %v103 = vld [vmem:[#allocation3 + $0x78] sm:$0xff]
    %v104 = vld [vmem:[#allocation3 + $0x80] sm:$0xff]
    %v105 = vld [vmem:[#allocation3 + $0x88] sm:$0xff]
    %v106 = vld [vmem:[#allocation3 + $0x90] sm:$0xff]
    %v107 = vld [vmem:[#allocation3 + $0x98] sm:$0xff]
    %v108 = vld [vmem:[#allocation3 + $0xa0] sm:$0xff]
    %v109 = vld [vmem:[#allocation3 + $0xa8] sm:$0xff]
    %v110 = vld [vmem:[#allocation3 + $0xb0] sm:$0xff]
    %v111 = vld [vmem:[#allocation3 + $0xb8] sm:$0xff]
    %v112 = vld [vmem:[#allocation3 + $0xc0] sm:$0xff]
    %v113 = vld [vmem:[#allocation3 + $0xc8] sm:$0xff]
    %v114 = vld [vmem:[#allocation3 + $0xd0] sm:$0xff]
    %v115 = vld [vmem:[#allocation3 + $0xd8] sm:$0xff]
    %v116 = vld [vmem:[#allocation3 + $0xe0] sm:$0xff]
    %v117 = vld [vmem:[#allocation3 + $0xe8] sm:$0xff]
    %v118 = vld [vmem:[#allocation3 + $0xf0] sm:$0xff]
    %v119 = vld [vmem:[#allocation3 + $0xf8] sm:$0xff]
    %v120 = vld [vmem:[#allocation3 + $0x100] sm:$0xff]
    %v121 = vld [vmem:[#allocation3 + $0x108] sm:$0xff]
    %v122 = vld [vmem:[#allocation3 + $0x110] sm:$0xff]
    %v123 = vld [vmem:[#allocation3 + $0x118] sm:$0xff]
    %v124 = vld [vmem:[#allocation3 + $0x120] sm:$0xff]
    %v125 = vld [vmem:[#allocation3 + $0x128] sm:$0xff]
    %v126 = vld [vmem:[#allocation3 + $0x130] sm:$0xff]
    %v127 = vld [vmem:[#allocation3 + $0x138] sm:$0xff]
    %v128 = vld [vmem:[#allocation3 + $0x140] sm:$0xff]
    %v129 = vld [vmem:[#allocation3 + $0x148] sm:$0xff]
    %v130 = vld [vmem:[#allocation3 + $0x150] sm:$0xff]
    %v131 = vld [vmem:[#allocation3 + $0x158] sm:$0xff]
    %v132 = vld [vmem:[#allocation3 + $0x160] sm:$0xff]
    %v133 = vld [vmem:[#allocation3 + $0x168] sm:$0xff]
    %v134 = vld [vmem:[#allocation3 + $0x170] sm:$0xff]
    %v135 = vld [vmem:[#allocation3 + $0x178] sm:$0xff]
    %v136 = vld [vmem:[#allocation3 + $0x180] sm:$0xff]
    %v137 = vld [vmem:[#allocation3 + $0x188] sm:$0xff]
    %v138 = vld [vmem:[#allocation3 + $0x190] sm:$0xff]
    %v139 = vld [vmem:[#allocation3 + $0x198] sm:$0xff]
    %v140 = vld [vmem:[#allocation3 + $0x1a0] sm:$0xff]
    %v141 = vld [vmem:[#allocation3 + $0x1a8] sm:$0xff]
    %v142 = vld [vmem:[#allocation3 + $0x1b0] sm:$0xff]
    %v143 = vld [vmem:[#allocation3 + $0x1b8] sm:$0xff]
    %v144 = vld [vmem:[#allocation3 + $0x1c0] sm:$0xff]
    %v145 = vld [vmem:[#allocation3 + $0x1c8] sm:$0xff]
    %v146 = vld [vmem:[#allocation3 + $0x1d0] sm:$0xff]
    %v147 = vld [vmem:[#allocation3 + $0x1d8] sm:$0xff]
    %v148 = vld [vmem:[#allocation3 + $0x1e0] sm:$0xff]
    %v149 = vld [vmem:[#allocation3 + $0x1e8] sm:$0xff]
    %v150 = vld [vmem:[#allocation3 + $0x1f0] sm:$0xff]
    %v151 = vld [vmem:[#allocation3 + $0x1f8] sm:$0xff]
    %v152 = vld [vmem:[#allocation3 + $0x200] sm:$0xff]
    %v153 = vld [vmem:[#allocation3 + $0x208] sm:$0xff]
    %v154 = vld [vmem:[#allocation3 + $0x210] sm:$0xff]
    %v155 = vld [vmem:[#allocation3 + $0x218] sm:$0xff]
    %v156 = vld [vmem:[#allocation3 + $0x220] sm:$0xff]
    %v157 = vld [vmem:[#allocation3 + $0x228] sm:$0xff]
    %v158 = vld [vmem:[#allocation3 + $0x230] sm:$0xff]
    %v159 = vld [vmem:[#allocation3 + $0x238] sm:$0xff]
    %v160 = vld [vmem:[#allocation3 + $0x240] sm:$0xff]
    %v161 = vld [vmem:[#allocation3 + $0x248] sm:$0xff]
    %v162 = vld [vmem:[#allocation3 + $0x250] sm:$0xff]
    %v163 = vld [vmem:[#allocation3 + $0x258] sm:$0xff]
    %v164 = vld [vmem:[#allocation3 + $0x260] sm:$0xff]
    %v165 = vld [vmem:[#allocation3 + $0x268] sm:$0xff]
    %v166 = vld [vmem:[#allocation3 + $0x270] sm:$0xff]
    %v167 = vld [vmem:[#allocation3 + $0x278] sm:$0xff]
    %v168 = vld [vmem:[#allocation3 + $0x280] sm:$0xff]
    %v169 = vld [vmem:[#allocation3 + $0x288] sm:$0xff]
    %v170 = vld [vmem:[#allocation3 + $0x290] sm:$0xff]
    %v171 = vld [vmem:[#allocation3 + $0x298] sm:$0xff]
    %v172 = vld [vmem:[#allocation3 + $0x2a0] sm:$0xff]
    %v173 = vld [vmem:[#allocation3 + $0x2a8] sm:$0xff]
    %v174 = vld [vmem:[#allocation3 + $0x2b0] sm:$0xff]
    %v175 = vld [vmem:[#allocation3 + $0x2b8] sm:$0xff]
    %v176 = vld [vmem:[#allocation3 + $0x2c0] sm:$0xff]
    %v177 = vld [vmem:[#allocation3 + $0x2c8] sm:$0xff]
    %v178 = vld [vmem:[#allocation3 + $0x2d0] sm:$0xff]
    %v179 = vld [vmem:[#allocation3 + $0x2d8] sm:$0xff]
    %v180 = vld [vmem:[#allocation3 + $0x2e0] sm:$0xff]
    %v181 = vld [vmem:[#allocation3 + $0x2e8] sm:$0xff]
    %v182 = vld [vmem:[#allocation3 + $0x2f0] sm:$0xff]
    %v183 = vld [vmem:[#allocation3 + $0x2f8] sm:$0xff]
    %v184 = vld [vmem:[#allocation3 + $0x300] sm:$0xff]
    %v185 = vld [vmem:[#allocation3 + $0x308] sm:$0xff]
    %v186 = vld [vmem:[#allocation3 + $0x310] sm:$0xff]
    %v187 = vld [vmem:[#allocation3 + $0x318] sm:$0xff]
    %v188 = vld [vmem:[#allocation3 + $0x320] sm:$0xff]
    %v189 = vld [vmem:[#allocation3 + $0x328] sm:$0xff]
    %v190 = vld [vmem:[#allocation3 + $0x330] sm:$0xff]
    %v191 = vld [vmem:[#allocation3 + $0x338] sm:$0xff]
    %v192 = vld [vmem:[#allocation3 + $0x340] sm:$0xff]
    %v193 = vld [vmem:[#allocation3 + $0x348] sm:$0xff]
    %v194 = vld [vmem:[#allocation3 + $0x350] sm:$0xff]
    %v195 = vld [vmem:[#allocation3 + $0x358] sm:$0xff]
    %v196 = vld [vmem:[#allocation3 + $0x360] sm:$0xff]
    %v197 = vld [vmem:[#allocation3 + $0x368] sm:$0xff]
    %v198 = vld [vmem:[#allocation3 + $0x370] sm:$0xff]
    %v199 = vld [vmem:[#allocation3 + $0x378] sm:$0xff]
    %v200 = vld [vmem:[#allocation3 + $0x380] sm:$0xff]
    %v201 = vld [vmem:[#allocation3 + $0x388] sm:$0xff]
    %v202 = vld [vmem:[#allocation3 + $0x390] sm:$0xff]
    %v203 = vld [vmem:[#allocation3 + $0x398] sm:$0xff]
    %v204 = vld [vmem:[#allocation3 + $0x3a0] sm:$0xff]
    %v205 = vld [vmem:[#allocation3 + $0x3a8] sm:$0xff]
    %v206 = vld [vmem:[#allocation3 + $0x3b0] sm:$0xff]
    %v207 = vld [vmem:[#allocation3 + $0x3b8] sm:$0xff]
    %v208 = vld [vmem:[#allocation3 + $0x3c0] sm:$0xff]
    %v209 = vld [vmem:[#allocation3 + $0x3c8] sm:$0xff]
    %v210 = vld [vmem:[#allocation3 + $0x3d0] sm:$0xff]
    %v211 = vld [vmem:[#allocation3 + $0x3d8] sm:$0xff]
    %v212 = vld [vmem:[#allocation3 + $0x3e0] sm:$0xff]
    %v213 = vld [vmem:[#allocation3 + $0x3e8] sm:$0xff]
    %v214 = vld [vmem:[#allocation3 + $0x3f0] sm:$0xff]
    %v215 = vld [vmem:[#allocation3 + $0x3f8] sm:$0xff]
    %v216 = vld [vmem:[#allocation8] sm:$0xff]
    %v217 = vld [vmem:[#allocation8 + $0x8] sm:$0xff]
    %v218 = vld [vmem:[#allocation8 + $0x10] sm:$0xff]
    %v219 = vld [vmem:[#allocation8 + $0x18] sm:$0xff]
    %v220 = vld [vmem:[#allocation8 + $0x20] sm:$0xff]
    %v221 = vld [vmem:[#allocation8 + $0x28] sm:$0xff]
    %v222 = vld [vmem:[#allocation8 + $0x30] sm:$0xff]
    %v223 = vld [vmem:[#allocation8 + $0x38] sm:$0xff]
    %v224 = vld [vmem:[#allocation8 + $0x40] sm:$0xff]
    %v225 = vld [vmem:[#allocation8 + $0x48] sm:$0xff]
    %v226 = vld [vmem:[#allocation8 + $0x50] sm:$0xff]
    %v227 = vld [vmem:[#allocation8 + $0x58] sm:$0xff]
    %v228 = vld [vmem:[#allocation8 + $0x60] sm:$0xff]
    %v229 = vld [vmem:[#allocation8 + $0x68] sm:$0xff]
    %v230 = vld [vmem:[#allocation8 + $0x70] sm:$0xff]
    %v231 = vld [vmem:[#allocation8 + $0x78] sm:$0xff]
    %v232 = vld [vmem:[%s3] sm:$0x1]
    %v234 = vlaneseq
    %v235 = vshrl.u32 %v234, 7
    %v236 = vsub.s32 0, %v235
    %v237 = vrot.slane %v232, %v236
    %239 = vmatprep.subr.mxu0 0.0
    %240 = vmatpush1.msra.mxu0 %v216
    %241 = vmatprep.subr.mxu0 0.0
    %242 = vmatpush1.msra.mxu0 %v217
    %243 = vmatprep.subr.mxu0 0.0
    %244 = vmatpush1.msra.mxu0 %v218
    %245 = vmatprep.subr.mxu0 0.0
    %246 = vmatpush1.msra.mxu0 %v219
    %247 = vmatprep.subr.mxu0 0.0
    %248 = vmatpush1.msra.mxu0 %v220
    %249 = vmatprep.subr.mxu0 0.0
    %250 = vmatpush1.msra.mxu0 %v221
    %251 = vmatprep.subr.mxu0 0.0
    %252 = vmatpush1.msra.mxu0 %v222
    %253 = vmatprep.subr.mxu0 0.0
    %254 = vmatpush1.msra.mxu0 %v223
    %255 = vmatprep.subr.mxu0 0.0
    %256 = vmatpush1.msra.mxu0 %v224
    %257 = vmatprep.subr.mxu0 0.0
    %258 = vmatpush1.msra.mxu0 %v225
    %259 = vmatprep.subr.mxu0 0.0
    %260 = vmatpush1.msra.mxu0 %v226
    %261 = vmatprep.subr.mxu0 0.0
    %262 = vmatpush1.msra.mxu0 %v227
    %263 = vmatprep.subr.mxu0 0.0
    %264 = vmatpush1.msra.mxu0 %v228
    %265 = vmatprep.subr.mxu0 0.0
    %266 = vmatpush1.msra.mxu0 %v229
    %267 = vmatprep.subr.mxu0 0.0
    %268 = vmatpush1.msra.mxu0 %v230
    %269 = vmatprep.subr.mxu0 0.0
    %270 = vmatpush1.msra.mxu0 %v231
    %271 = vmatprep.subr.mxu0 0.0
    %272 = vmatpush1.msra.mxu0 0.0
    %273 = vmatprep.subr.mxu0 0.0
    %274 = vmatpush1.msra.mxu0 0.0
    %275 = vmatprep.subr.mxu0 0.0
    %276 = vmatpush1.msra.mxu0 0.0
    %277 = vmatprep.subr.mxu0 0.0
    %278 = vmatpush1.msra.mxu0 0.0
    %279 = vmatprep.subr.mxu0 0.0
    %280 = vmatpush1.msra.mxu0 0.0
    %281 = vmatprep.subr.mxu0 0.0
    %282 = vmatpush1.msra.mxu0 0.0
    %283 = vmatprep.subr.mxu0 0.0
    %284 = vmatpush1.msra.mxu0 0.0
    %285 = vmatprep.subr.mxu0 0.0
    %286 = vmatpush1.msra.mxu0 0.0
    %287 = vmatprep.subr.mxu0 0.0
    %288 = vmatpush1.msra.mxu0 0.0
    %289 = vmatprep.subr.mxu0 0.0
    %290 = vmatpush1.msra.mxu0 0.0
    %291 = vmatprep.subr.mxu0 0.0
    %292 = vmatpush1.msra.mxu0 0.0
    %293 = vmatprep.subr.mxu0 0.0
    %294 = vmatpush1.msra.mxu0 0.0
    %295 = vmatprep.subr.mxu0 0.0
    %296 = vmatpush1.msra.mxu0 0.0
    %297 = vmatprep.subr.mxu0 0.0
    %298 = vmatpush1.msra.mxu0 0.0
    %299 = vmatprep.subr.mxu0 0.0
    %300 = vmatpush1.msra.mxu0 0.0
    %301 = vmatprep.subr.mxu0 0.0
    %302 = vmatpush1.msra.mxu0 0.0
    %303 = vmatprep.mubr.f32.mxu0 0.0
    %304 = vmatmul.mubr.f32.gmra.mrb[0].mxu0 %v88
    %v305 = vpop.f32.mrb[0].mxu0
    %v306 = vadd.f32 %v237, %v305
    %v307 = vpop.f32.mrb[0].mxu0
    %308 = vmatprep.mubr.f32.mxu0 0.0
    %309 = vmatmul.mubr.f32.gmra.mrb[0].mxu0 %v89
    %v310 = vpop.f32.mrb[0].mxu0
    %v311 = vadd.f32 %v237, %v310
    %v312 = vpop.f32.mrb[0].mxu0
    %313 = vmatprep.mubr.f32.mxu0 0.0
    %314 = vmatmul.mubr.f32.gmra.mrb[0].mxu0 %v90
    %v315 = vpop.f32.mrb[0].mxu0
    %v316 = vadd.f32 %v237, %v315
    %v317 = vpop.f32.mrb[0].mxu0
    %318 = vmatprep.mubr.f32.mxu0 0.0
    %319 = vmatmul.mubr.f32.gmra.mrb[0].mxu0 %v91
    %v320 = vpop.f32.mrb[0].mxu0
    %v321 = vadd.f32 %v237, %v320
    %v322 = vpop.f32.mrb[0].mxu0
    %323 = vmatprep.mubr.f32.mxu0 0.0
    %324 = vmatmul.mubr.f32.gmra.mrb[0].mxu0 %v92
    %v325 = vpop.f32.mrb[0].mxu0
    %v326 = vadd.f32 %v237, %v325
    %v327 = vpop.f32.mrb[0].mxu0
    %328 = vmatprep.mubr.f32.mxu0 0.0
    %329 = vmatmul.mubr.f32.gmra.mrb[0].mxu0 %v93
    %v330 = vpop.f32.mrb[0].mxu0
    %v331 = vadd.f32 %v237, %v330
    %v332 = vpop.f32.mrb[0].mxu0
    %333 = vmatprep.mubr.f32.mxu0 0.0
    %334 = vmatmul.mubr.f32.gmra.mrb[0].mxu0 %v94
    %v335 = vpop.f32.mrb[0].mxu0
    %v336 = vadd.f32 %v237, %v335
    %v337 = vpop.f32.mrb[0].mxu0
    %338 = vmatprep.mubr.f32.mxu0 0.0
    %339 = vmatmul.mubr.f32.gmra.mrb[0].mxu0 %v95
    %v340 = vpop.f32.mrb[0].mxu0
    %v341 = vadd.f32 %v237, %v340
    %v342 = vpop.f32.mrb[0].mxu0
    %343 = vmatprep.mubr.f32.mxu0 0.0
    %344 = vmatmul.mubr.f32.gmra.mrb[0].mxu0 %v96
    %v345 = vpop.f32.mrb[0].mxu0
    %v346 = vadd.f32 %v237, %v345
    %v347 = vpop.f32.mrb[0].mxu0
    %348 = vmatprep.mubr.f32.mxu0 0.0
    %349 = vmatmul.mubr.f32.gmra.mrb[0].mxu0 %v97
    %v350 = vpop.f32.mrb[0].mxu0
    %v351 = vadd.f32 %v237, %v350
    %v352 = vpop.f32.mrb[0].mxu0
    %353 = vmatprep.mubr.f32.mxu0 0.0
    %354 = vmatmul.mubr.f32.gmra.mrb[0].mxu0 %v98
    %v355 = vpop.f32.mrb[0].mxu0
    %v356 = vadd.f32 %v237, %v355
    %v357 = vpop.f32.mrb[0].mxu0
    %358 = vmatprep.mubr.f32.mxu0 0.0
    %359 = vmatmul.mubr.f32.gmra.mrb[0].mxu0 %v99
    %v360 = vpop.f32.mrb[0].mxu0
    %v361 = vadd.f32 %v237, %v360
    %v362 = vpop.f32.mrb[0].mxu0
    %363 = vmatprep.mubr.f32.mxu0 0.0
    %364 = vmatmul.mubr.f32.gmra.mrb[0].mxu0 %v100
    %v365 = vpop.f32.mrb[0].mxu0
    %v366 = vadd.f32 %v237, %v365
    %v367 = vpop.f32.mrb[0].mxu0
    %368 = vmatprep.mubr.f32.mxu0 0.0
    %369 = vmatmul.mubr.f32.gmra.mrb[0].mxu0 %v101
    %v370 = vpop.f32.mrb[0].mxu0
    %v371 = vadd.f32 %v237, %v370
    %v372 = vpop.f32.mrb[0].mxu0
    %373 = vmatprep.mubr.f32.mxu0 0.0
    %374 = vmatmul.mubr.f32.gmra.mrb[0].mxu0 %v102
    %v375 = vpop.f32.mrb[0].mxu0
    %v376 = vadd.f32 %v237, %v375
    %v377 = vpop.f32.mrb[0].mxu0
    %378 = vmatprep.mubr.f32.mxu0 0.0
    %379 = vmatmul.mubr.f32.gmra.mrb[0].mxu0 %v103
    %v380 = vpop.f32.mrb[0].mxu0
    %v381 = vadd.f32 %v237, %v380
    %v382 = vpop.f32.mrb[0].mxu0
    %383 = vmatprep.mubr.f32.mxu0 0.0
    %384 = vmatmul.mubr.f32.gmra.mrb[0].mxu0 %v104
    %v385 = vpop.f32.mrb[0].mxu0
    %v386 = vadd.f32 %v237, %v385
    %v387 = vpop.f32.mrb[0].mxu0
    %388 = vmatprep.mubr.f32.mxu0 0.0
    %389 = vmatmul.mubr.f32.gmra.mrb[0].mxu0 %v105
    %v390 = vpop.f32.mrb[0].mxu0
    %v391 = vadd.f32 %v237, %v390
    %v392 = vpop.f32.mrb[0].mxu0
    %393 = vmatprep.mubr.f32.mxu0 0.0
    %394 = vmatmul.mubr.f32.gmra.mrb[0].mxu0 %v106
    %v395 = vpop.f32.mrb[0].mxu0
    %v396 = vadd.f32 %v237, %v395
    %v397 = vpop.f32.mrb[0].mxu0
    %398 = vmatprep.mubr.f32.mxu0 0.0
    %399 = vmatmul.mubr.f32.gmra.mrb[0].mxu0 %v107
    %v400 = vpop.f32.mrb[0].mxu0
    %v401 = vadd.f32 %v237, %v400
    %v402 = vpop.f32.mrb[0].mxu0
    %403 = vmatprep.mubr.f32.mxu0 0.0
    %404 = vmatmul.mubr.f32.gmra.mrb[0].mxu0 %v108
    %v405 = vpop.f32.mrb[0].mxu0
    %v406 = vadd.f32 %v237, %v405
    %v407 = vpop.f32.mrb[0].mxu0
    %408 = vmatprep.mubr.f32.mxu0 0.0
    %409 = vmatmul.mubr.f32.gmra.mrb[0].mxu0 %v109
    %v410 = vpop.f32.mrb[0].mxu0
    %v411 = vadd.f32 %v237, %v410
    %v412 = vpop.f32.mrb[0].mxu0
    %413 = vmatprep.mubr.f32.mxu0 0.0
    %414 = vmatmul.mubr.f32.gmra.mrb[0].mxu0 %v110
    %v415 = vpop.f32.mrb[0].mxu0
    %v416 = vadd.f32 %v237, %v415
    %v417 = vpop.f32.mrb[0].mxu0
    %418 = vmatprep.mubr.f32.mxu0 0.0
    %419 = vmatmul.mubr.f32.gmra.mrb[0].mxu0 %v111
    %v420 = vpop.f32.mrb[0].mxu0
    %v421 = vadd.f32 %v237, %v420
    %v422 = vpop.f32.mrb[0].mxu0
    %423 = vmatprep.mubr.f32.mxu0 0.0
    %424 = vmatmul.mubr.f32.gmra.mrb[0].mxu0 %v112
    %v425 = vpop.f32.mrb[0].mxu0
    %v426 = vadd.f32 %v237, %v425
    %v427 = vpop.f32.mrb[0].mxu0
    %428 = vmatprep.mubr.f32.mxu0 0.0
    %429 = vmatmul.mubr.f32.gmra.mrb[0].mxu0 %v113
    %v430 = vpop.f32.mrb[0].mxu0
    %v431 = vadd.f32 %v237, %v430
    %v432 = vpop.f32.mrb[0].mxu0
    %433 = vmatprep.mubr.f32.mxu0 0.0
    %434 = vmatmul.mubr.f32.gmra.mrb[0].mxu0 %v114
    %v435 = vpop.f32.mrb[0].mxu0
    %v436 = vadd.f32 %v237, %v435
    %v437 = vpop.f32.mrb[0].mxu0
    %438 = vmatprep.mubr.f32.mxu0 0.0
    %439 = vmatmul.mubr.f32.gmra.mrb[0].mxu0 %v115
    %v440 = vpop.f32.mrb[0].mxu0
    %v441 = vadd.f32 %v237, %v440
    %v442 = vpop.f32.mrb[0].mxu0
    %443 = vmatprep.mubr.f32.mxu0 0.0
    %444 = vmatmul.mubr.f32.gmra.mrb[0].mxu0 %v116
    %v445 = vpop.f32.mrb[0].mxu0
    %v446 = vadd.f32 %v237, %v445
    %v447 = vpop.f32.mrb[0].mxu0
    %448 = vmatprep.mubr.f32.mxu0 0.0
    %449 = vmatmul.mubr.f32.gmra.mrb[0].mxu0 %v117
    %v450 = vpop.f32.mrb[0].mxu0
    %v451 = vadd.f32 %v237, %v450
    %v452 = vpop.f32.mrb[0].mxu0
    %453 = vmatprep.mubr.f32.mxu0 0.0
    %454 = vmatmul.mubr.f32.gmra.mrb[0].mxu0 %v118
    %v455 = vpop.f32.mrb[0].mxu0
    %v456 = vadd.f32 %v237, %v455
    %v457 = vpop.f32.mrb[0].mxu0
    %458 = vmatprep.mubr.f32.mxu0 0.0
    %459 = vmatmul.mubr.f32.gmra.mrb[0].mxu0 %v119
    %v460 = vpop.f32.mrb[0].mxu0
    %v461 = vadd.f32 %v237, %v460
    %v462 = vpop.f32.mrb[0].mxu0
    %463 = vmatprep.mubr.f32.mxu0 0.0
    %464 = vmatmul.mubr.f32.gmra.mrb[0].mxu0 %v120
    %v465 = vpop.f32.mrb[0].mxu0
    %v466 = vadd.f32 %v237, %v465
    %v467 = vpop.f32.mrb[0].mxu0
    %468 = vmatprep.mubr.f32.mxu0 0.0
    %469 = vmatmul.mubr.f32.gmra.mrb[0].mxu0 %v121
    %v470 = vpop.f32.mrb[0].mxu0
    %v471 = vadd.f32 %v237, %v470
    %v472 = vpop.f32.mrb[0].mxu0
    %473 = vmatprep.mubr.f32.mxu0 0.0
    %474 = vmatmul.mubr.f32.gmra.mrb[0].mxu0 %v122
    %v475 = vpop.f32.mrb[0].mxu0
    %v476 = vadd.f32 %v237, %v475
    %v477 = vpop.f32.mrb[0].mxu0
    %478 = vmatprep.mubr.f32.mxu0 0.0
    %479 = vmatmul.mubr.f32.gmra.mrb[0].mxu0 %v123
    %v480 = vpop.f32.mrb[0].mxu0
    %v481 = vadd.f32 %v237, %v480
    %v482 = vpop.f32.mrb[0].mxu0
    %483 = vmatprep.mubr.f32.mxu0 0.0
    %484 = vmatmul.mubr.f32.gmra.mrb[0].mxu0 %v124
    %v485 = vpop.f32.mrb[0].mxu0
    %v486 = vadd.f32 %v237, %v485
    %v487 = vpop.f32.mrb[0].mxu0
    %488 = vmatprep.mubr.f32.mxu0 0.0
    %489 = vmatmul.mubr.f32.gmra.mrb[0].mxu0 %v125
    %v490 = vpop.f32.mrb[0].mxu0
    %v491 = vadd.f32 %v237, %v490
    %v492 = vpop.f32.mrb[0].mxu0
    %493 = vmatprep.mubr.f32.mxu0 0.0
    %494 = vmatmul.mubr.f32.gmra.mrb[0].mxu0 %v126
    %v495 = vpop.f32.mrb[0].mxu0
    %v496 = vadd.f32 %v237, %v495
    %v497 = vpop.f32.mrb[0].mxu0
    %498 = vmatprep.mubr.f32.mxu0 0.0
    %499 = vmatmul.mubr.f32.gmra.mrb[0].mxu0 %v127
    %v500 = vpop.f32.mrb[0].mxu0
    %v501 = vadd.f32 %v237, %v500
    %v502 = vpop.f32.mrb[0].mxu0
    %503 = vmatprep.mubr.f32.mxu0 0.0
    %504 = vmatmul.mubr.f32.gmra.mrb[0].mxu0 %v128
    %v505 = vpop.f32.mrb[0].mxu0
    %v506 = vadd.f32 %v237, %v505
    %v507 = vpop.f32.mrb[0].mxu0
    %508 = vmatprep.mubr.f32.mxu0 0.0
    %509 = vmatmul.mubr.f32.gmra.mrb[0].mxu0 %v129
    %v510 = vpop.f32.mrb[0].mxu0
    %v511 = vadd.f32 %v237, %v510
    %v512 = vpop.f32.mrb[0].mxu0
    %513 = vmatprep.mubr.f32.mxu0 0.0
    %514 = vmatmul.mubr.f32.gmra.mrb[0].mxu0 %v130
    %v515 = vpop.f32.mrb[0].mxu0
    %v516 = vadd.f32 %v237, %v515
    %v517 = vpop.f32.mrb[0].mxu0
    %518 = vmatprep.mubr.f32.mxu0 0.0
    %519 = vmatmul.mubr.f32.gmra.mrb[0].mxu0 %v131
    %v520 = vpop.f32.mrb[0].mxu0
    %v521 = vadd.f32 %v237, %v520
    %v522 = vpop.f32.mrb[0].mxu0
    %523 = vmatprep.mubr.f32.mxu0 0.0
    %524 = vmatmul.mubr.f32.gmra.mrb[0].mxu0 %v132
    %v525 = vpop.f32.mrb[0].mxu0
    %v526 = vadd.f32 %v237, %v525
    %v527 = vpop.f32.mrb[0].mxu0
    %528 = vmatprep.mubr.f32.mxu0 0.0
    %529 = vmatmul.mubr.f32.gmra.mrb[0].mxu0 %v133
    %v530 = vpop.f32.mrb[0].mxu0
    %v531 = vadd.f32 %v237, %v530
    %v532 = vpop.f32.mrb[0].mxu0
    %533 = vmatprep.mubr.f32.mxu0 0.0
    %534 = vmatmul.mubr.f32.gmra.mrb[0].mxu0 %v134
    %v535 = vpop.f32.mrb[0].mxu0
    %v536 = vadd.f32 %v237, %v535
    %v537 = vpop.f32.mrb[0].mxu0
    %538 = vmatprep.mubr.f32.mxu0 0.0
    %539 = vmatmul.mubr.f32.gmra.mrb[0].mxu0 %v135
    %v540 = vpop.f32.mrb[0].mxu0
    %v541 = vadd.f32 %v237, %v540
    %v542 = vpop.f32.mrb[0].mxu0
    %543 = vmatprep.mubr.f32.mxu0 0.0
    %544 = vmatmul.mubr.f32.gmra.mrb[0].mxu0 %v136
    %v545 = vpop.f32.mrb[0].mxu0
    %v546 = vadd.f32 %v237, %v545
    %v547 = vpop.f32.mrb[0].mxu0
    %548 = vmatprep.mubr.f32.mxu0 0.0
    %549 = vmatmul.mubr.f32.gmra.mrb[0].mxu0 %v137
    %v550 = vpop.f32.mrb[0].mxu0
    %v551 = vadd.f32 %v237, %v550
    %v552 = vpop.f32.mrb[0].mxu0
    %553 = vmatprep.mubr.f32.mxu0 0.0
    %554 = vmatmul.mubr.f32.gmra.mrb[0].mxu0 %v138
    %v555 = vpop.f32.mrb[0].mxu0
    %v556 = vadd.f32 %v237, %v555
    %v557 = vpop.f32.mrb[0].mxu0
    %558 = vmatprep.mubr.f32.mxu0 0.0
    %559 = vmatmul.mubr.f32.gmra.mrb[0].mxu0 %v139
    %v560 = vpop.f32.mrb[0].mxu0
    %v561 = vadd.f32 %v237, %v560
    %v562 = vpop.f32.mrb[0].mxu0
    %563 = vmatprep.mubr.f32.mxu0 0.0
    %564 = vmatmul.mubr.f32.gmra.mrb[0].mxu0 %v140
    %v565 = vpop.f32.mrb[0].mxu0
    %v566 = vadd.f32 %v237, %v565
    %v567 = vpop.f32.mrb[0].mxu0
    %568 = vmatprep.mubr.f32.mxu0 0.0
    %569 = vmatmul.mubr.f32.gmra.mrb[0].mxu0 %v141
    %v570 = vpop.f32.mrb[0].mxu0
    %v571 = vadd.f32 %v237, %v570
    %v572 = vpop.f32.mrb[0].mxu0
    %573 = vmatprep.mubr.f32.mxu0 0.0
    %574 = vmatmul.mubr.f32.gmra.mrb[0].mxu0 %v142
    %v575 = vpop.f32.mrb[0].mxu0
    %v576 = vadd.f32 %v237, %v575
    %v577 = vpop.f32.mrb[0].mxu0
    %578 = vmatprep.mubr.f32.mxu0 0.0
    %579 = vmatmul.mubr.f32.gmra.mrb[0].mxu0 %v143
    %v580 = vpop.f32.mrb[0].mxu0
    %v581 = vadd.f32 %v237, %v580
    %v582 = vpop.f32.mrb[0].mxu0
    %583 = vmatprep.mubr.f32.mxu0 0.0
    %584 = vmatmul.mubr.f32.gmra.mrb[0].mxu0 %v144
    %v585 = vpop.f32.mrb[0].mxu0
    %v586 = vadd.f32 %v237, %v585
    %v587 = vpop.f32.mrb[0].mxu0
    %588 = vmatprep.mubr.f32.mxu0 0.0
    %589 = vmatmul.mubr.f32.gmra.mrb[0].mxu0 %v145
    %v590 = vpop.f32.mrb[0].mxu0
    %v591 = vadd.f32 %v237, %v590
    %v592 = vpop.f32.mrb[0].mxu0
    %593 = vmatprep.mubr.f32.mxu0 0.0
    %594 = vmatmul.mubr.f32.gmra.mrb[0].mxu0 %v146
    %v595 = vpop.f32.mrb[0].mxu0
    %v596 = vadd.f32 %v237, %v595
    %v597 = vpop.f32.mrb[0].mxu0
    %598 = vmatprep.mubr.f32.mxu0 0.0
    %599 = vmatmul.mubr.f32.gmra.mrb[0].mxu0 %v147
    %v600 = vpop.f32.mrb[0].mxu0
    %v601 = vadd.f32 %v237, %v600
    %v602 = vpop.f32.mrb[0].mxu0
    %603 = vmatprep.mubr.f32.mxu0 0.0
    %604 = vmatmul.mubr.f32.gmra.mrb[0].mxu0 %v148
    %v605 = vpop.f32.mrb[0].mxu0
    %v606 = vadd.f32 %v237, %v605
    %v607 = vpop.f32.mrb[0].mxu0
    %608 = vmatprep.mubr.f32.mxu0 0.0
    %609 = vmatmul.mubr.f32.gmra.mrb[0].mxu0 %v149
    %v610 = vpop.f32.mrb[0].mxu0
    %v611 = vadd.f32 %v237, %v610
    %v612 = vpop.f32.mrb[0].mxu0
    %613 = vmatprep.mubr.f32.mxu0 0.0
    %614 = vmatmul.mubr.f32.gmra.mrb[0].mxu0 %v150
    %v615 = vpop.f32.mrb[0].mxu0
    %v616 = vadd.f32 %v237, %v615
    %v617 = vpop.f32.mrb[0].mxu0
    %618 = vmatprep.mubr.f32.mxu0 0.0
    %619 = vmatmul.mubr.f32.gmra.mrb[0].mxu0 %v151
    %v620 = vpop.f32.mrb[0].mxu0
    %v621 = vadd.f32 %v237, %v620
    %v622 = vpop.f32.mrb[0].mxu0
    %623 = vmatprep.mubr.f32.mxu0 0.0
    %624 = vmatmul.mubr.f32.gmra.mrb[0].mxu0 %v152
    %v625 = vpop.f32.mrb[0].mxu0
    %v626 = vadd.f32 %v237, %v625
    %v627 = vpop.f32.mrb[0].mxu0
    %628 = vmatprep.mubr.f32.mxu0 0.0
    %629 = vmatmul.mubr.f32.gmra.mrb[0].mxu0 %v153
    %v630 = vpop.f32.mrb[0].mxu0
    %v631 = vadd.f32 %v237, %v630
    %v632 = vpop.f32.mrb[0].mxu0
    %633 = vmatprep.mubr.f32.mxu0 0.0
    %634 = vmatmul.mubr.f32.gmra.mrb[0].mxu0 %v154
    %v635 = vpop.f32.mrb[0].mxu0
    %v636 = vadd.f32 %v237, %v635
    %v637 = vpop.f32.mrb[0].mxu0
    %638 = vmatprep.mubr.f32.mxu0 0.0
    %639 = vmatmul.mubr.f32.gmra.mrb[0].mxu0 %v155
    %v640 = vpop.f32.mrb[0].mxu0
    %v641 = vadd.f32 %v237, %v640
    %v642 = vpop.f32.mrb[0].mxu0
    %643 = vmatprep.mubr.f32.mxu0 0.0
    %644 = vmatmul.mubr.f32.gmra.mrb[0].mxu0 %v156
    %v645 = vpop.f32.mrb[0].mxu0
    %v646 = vadd.f32 %v237, %v645
    %v647 = vpop.f32.mrb[0].mxu0
    %648 = vmatprep.mubr.f32.mxu0 0.0
    %649 = vmatmul.mubr.f32.gmra.mrb[0].mxu0 %v157
    %v650 = vpop.f32.mrb[0].mxu0
    %v651 = vadd.f32 %v237, %v650
    %v652 = vpop.f32.mrb[0].mxu0
    %653 = vmatprep.mubr.f32.mxu0 0.0
    %654 = vmatmul.mubr.f32.gmra.mrb[0].mxu0 %v158
    %v655 = vpop.f32.mrb[0].mxu0
    %v656 = vadd.f32 %v237, %v655
    %v657 = vpop.f32.mrb[0].mxu0
    %658 = vmatprep.mubr.f32.mxu0 0.0
    %659 = vmatmul.mubr.f32.gmra.mrb[0].mxu0 %v159
    %v660 = vpop.f32.mrb[0].mxu0
    %v661 = vadd.f32 %v237, %v660
    %v662 = vpop.f32.mrb[0].mxu0
    %663 = vmatprep.mubr.f32.mxu0 0.0
    %664 = vmatmul.mubr.f32.gmra.mrb[0].mxu0 %v160
    %v665 = vpop.f32.mrb[0].mxu0
    %v666 = vadd.f32 %v237, %v665
    %v667 = vpop.f32.mrb[0].mxu0
    %668 = vmatprep.mubr.f32.mxu0 0.0
    %669 = vmatmul.mubr.f32.gmra.mrb[0].mxu0 %v161
    %v670 = vpop.f32.mrb[0].mxu0
    %v671 = vadd.f32 %v237, %v670
    %v672 = vpop.f32.mrb[0].mxu0
    %673 = vmatprep.mubr.f32.mxu0 0.0
    %674 = vmatmul.mubr.f32.gmra.mrb[0].mxu0 %v162
    %v675 = vpop.f32.mrb[0].mxu0
    %v676 = vadd.f32 %v237, %v675
    %v677 = vpop.f32.mrb[0].mxu0
    %678 = vmatprep.mubr.f32.mxu0 0.0
    %679 = vmatmul.mubr.f32.gmra.mrb[0].mxu0 %v163
    %v680 = vpop.f32.mrb[0].mxu0
    %v681 = vadd.f32 %v237, %v680
    %v682 = vpop.f32.mrb[0].mxu0
    %683 = vmatprep.mubr.f32.mxu0 0.0
    %684 = vmatmul.mubr.f32.gmra.mrb[0].mxu0 %v164
    %v685 = vpop.f32.mrb[0].mxu0
    %v686 = vadd.f32 %v237, %v685
    %v687 = vpop.f32.mrb[0].mxu0
    %688 = vmatprep.mubr.f32.mxu0 0.0
    %689 = vmatmul.mubr.f32.gmra.mrb[0].mxu0 %v165
    %v690 = vpop.f32.mrb[0].mxu0
    %v691 = vadd.f32 %v237, %v690
    %v692 = vpop.f32.mrb[0].mxu0
    %693 = vmatprep.mubr.f32.mxu0 0.0
    %694 = vmatmul.mubr.f32.gmra.mrb[0].mxu0 %v166
    %v695 = vpop.f32.mrb[0].mxu0
    %v696 = vadd.f32 %v237, %v695
    %v697 = vpop.f32.mrb[0].mxu0
    %698 = vmatprep.mubr.f32.mxu0 0.0
    %699 = vmatmul.mubr.f32.gmra.mrb[0].mxu0 %v167
    %v700 = vpop.f32.mrb[0].mxu0
    %v701 = vadd.f32 %v237, %v700
    %v702 = vpop.f32.mrb[0].mxu0
    %703 = vmatprep.mubr.f32.mxu0 0.0
    %704 = vmatmul.mubr.f32.gmra.mrb[0].mxu0 %v168
    %v705 = vpop.f32.mrb[0].mxu0
    %v706 = vadd.f32 %v237, %v705
    %v707 = vpop.f32.mrb[0].mxu0
    %708 = vmatprep.mubr.f32.mxu0 0.0
    %709 = vmatmul.mubr.f32.gmra.mrb[0].mxu0 %v169
    %v710 = vpop.f32.mrb[0].mxu0
    %v711 = vadd.f32 %v237, %v710
    %v712 = vpop.f32.mrb[0].mxu0
    %713 = vmatprep.mubr.f32.mxu0 0.0
    %714 = vmatmul.mubr.f32.gmra.mrb[0].mxu0 %v170
    %v715 = vpop.f32.mrb[0].mxu0
    %v716 = vadd.f32 %v237, %v715
    %v717 = vpop.f32.mrb[0].mxu0
    %718 = vmatprep.mubr.f32.mxu0 0.0
    %719 = vmatmul.mubr.f32.gmra.mrb[0].mxu0 %v171
    %v720 = vpop.f32.mrb[0].mxu0
    %v721 = vadd.f32 %v237, %v720
    %v722 = vpop.f32.mrb[0].mxu0
    %723 = vmatprep.mubr.f32.mxu0 0.0
    %724 = vmatmul.mubr.f32.gmra.mrb[0].mxu0 %v172
    %v725 = vpop.f32.mrb[0].mxu0
    %v726 = vadd.f32 %v237, %v725
    %v727 = vpop.f32.mrb[0].mxu0
    %728 = vmatprep.mubr.f32.mxu0 0.0
    %729 = vmatmul.mubr.f32.gmra.mrb[0].mxu0 %v173
    %v730 = vpop.f32.mrb[0].mxu0
    %v731 = vadd.f32 %v237, %v730
    %v732 = vpop.f32.mrb[0].mxu0
    %733 = vmatprep.mubr.f32.mxu0 0.0
    %734 = vmatmul.mubr.f32.gmra.mrb[0].mxu0 %v174
    %v735 = vpop.f32.mrb[0].mxu0
    %v736 = vadd.f32 %v237, %v735
    %v737 = vpop.f32.mrb[0].mxu0
    %738 = vmatprep.mubr.f32.mxu0 0.0
    %739 = vmatmul.mubr.f32.gmra.mrb[0].mxu0 %v175
    %v740 = vpop.f32.mrb[0].mxu0
    %v741 = vadd.f32 %v237, %v740
    %v742 = vpop.f32.mrb[0].mxu0
    %743 = vmatprep.mubr.f32.mxu0 0.0
    %744 = vmatmul.mubr.f32.gmra.mrb[0].mxu0 %v176
    %v745 = vpop.f32.mrb[0].mxu0
    %v746 = vadd.f32 %v237, %v745
    %v747 = vpop.f32.mrb[0].mxu0
    %748 = vmatprep.mubr.f32.mxu0 0.0
    %749 = vmatmul.mubr.f32.gmra.mrb[0].mxu0 %v177
    %v750 = vpop.f32.mrb[0].mxu0
    %v751 = vadd.f32 %v237, %v750
    %v752 = vpop.f32.mrb[0].mxu0
    %753 = vmatprep.mubr.f32.mxu0 0.0
    %754 = vmatmul.mubr.f32.gmra.mrb[0].mxu0 %v178
    %v755 = vpop.f32.mrb[0].mxu0
    %v756 = vadd.f32 %v237, %v755
    %v757 = vpop.f32.mrb[0].mxu0
    %758 = vmatprep.mubr.f32.mxu0 0.0
    %759 = vmatmul.mubr.f32.gmra.mrb[0].mxu0 %v179
    %v760 = vpop.f32.mrb[0].mxu0
    %v761 = vadd.f32 %v237, %v760
    %v762 = vpop.f32.mrb[0].mxu0
    %763 = vmatprep.mubr.f32.mxu0 0.0
    %764 = vmatmul.mubr.f32.gmra.mrb[0].mxu0 %v180
    %v765 = vpop.f32.mrb[0].mxu0
    %v766 = vadd.f32 %v237, %v765
    %v767 = vpop.f32.mrb[0].mxu0
    %768 = vmatprep.mubr.f32.mxu0 0.0
    %769 = vmatmul.mubr.f32.gmra.mrb[0].mxu0 %v181
    %v770 = vpop.f32.mrb[0].mxu0
    %v771 = vadd.f32 %v237, %v770
    %v772 = vpop.f32.mrb[0].mxu0
    %773 = vmatprep.mubr.f32.mxu0 0.0
    %774 = vmatmul.mubr.f32.gmra.mrb[0].mxu0 %v182
    %v775 = vpop.f32.mrb[0].mxu0
    %v776 = vadd.f32 %v237, %v775
    %v777 = vpop.f32.mrb[0].mxu0
    %778 = vmatprep.mubr.f32.mxu0 0.0
    %779 = vmatmul.mubr.f32.gmra.mrb[0].mxu0 %v183
    %v780 = vpop.f32.mrb[0].mxu0
    %v781 = vadd.f32 %v237, %v780
    %v782 = vpop.f32.mrb[0].mxu0
    %783 = vmatprep.mubr.f32.mxu0 0.0
    %784 = vmatmul.mubr.f32.gmra.mrb[0].mxu0 %v184
    %v785 = vpop.f32.mrb[0].mxu0
    %v786 = vadd.f32 %v237, %v785
    %v787 = vpop.f32.mrb[0].mxu0
    %788 = vmatprep.mubr.f32.mxu0 0.0
    %789 = vmatmul.mubr.f32.gmra.mrb[0].mxu0 %v185
    %v790 = vpop.f32.mrb[0].mxu0
    %v791 = vadd.f32 %v237, %v790
    %v792 = vpop.f32.mrb[0].mxu0
    %793 = vmatprep.mubr.f32.mxu0 0.0
    %794 = vmatmul.mubr.f32.gmra.mrb[0].mxu0 %v186
    %v795 = vpop.f32.mrb[0].mxu0
    %v796 = vadd.f32 %v237, %v795
    %v797 = vpop.f32.mrb[0].mxu0
    %798 = vmatprep.mubr.f32.mxu0 0.0
    %799 = vmatmul.mubr.f32.gmra.mrb[0].mxu0 %v187
    %v800 = vpop.f32.mrb[0].mxu0
    %v801 = vadd.f32 %v237, %v800
    %v802 = vpop.f32.mrb[0].mxu0
    %803 = vmatprep.mubr.f32.mxu0 0.0
    %804 = vmatmul.mubr.f32.gmra.mrb[0].mxu0 %v188
    %v805 = vpop.f32.mrb[0].mxu0
    %v806 = vadd.f32 %v237, %v805
    %v807 = vpop.f32.mrb[0].mxu0
    %808 = vmatprep.mubr.f32.mxu0 0.0
    %809 = vmatmul.mubr.f32.gmra.mrb[0].mxu0 %v189
    %v810 = vpop.f32.mrb[0].mxu0
    %v811 = vadd.f32 %v237, %v810
    %v812 = vpop.f32.mrb[0].mxu0
    %813 = vmatprep.mubr.f32.mxu0 0.0
    %814 = vmatmul.mubr.f32.gmra.mrb[0].mxu0 %v190
    %v815 = vpop.f32.mrb[0].mxu0
    %v816 = vadd.f32 %v237, %v815
    %v817 = vpop.f32.mrb[0].mxu0
    %818 = vmatprep.mubr.f32.mxu0 0.0
    %819 = vmatmul.mubr.f32.gmra.mrb[0].mxu0 %v191
    %v820 = vpop.f32.mrb[0].mxu0
    %v821 = vadd.f32 %v237, %v820
    %v822 = vpop.f32.mrb[0].mxu0
    %823 = vmatprep.mubr.f32.mxu0 0.0
    %824 = vmatmul.mubr.f32.gmra.mrb[0].mxu0 %v192
    %v825 = vpop.f32.mrb[0].mxu0
    %v826 = vadd.f32 %v237, %v825
    %v827 = vpop.f32.mrb[0].mxu0
    %828 = vmatprep.mubr.f32.mxu0 0.0
    %829 = vmatmul.mubr.f32.gmra.mrb[0].mxu0 %v193
    %v830 = vpop.f32.mrb[0].mxu0
    %v831 = vadd.f32 %v237, %v830
    %v832 = vpop.f32.mrb[0].mxu0
    %833 = vmatprep.mubr.f32.mxu0 0.0
    %834 = vmatmul.mubr.f32.gmra.mrb[0].mxu0 %v194
    %v835 = vpop.f32.mrb[0].mxu0
    %v836 = vadd.f32 %v237, %v835
    %v837 = vpop.f32.mrb[0].mxu0
    %838 = vmatprep.mubr.f32.mxu0 0.0
    %839 = vmatmul.mubr.f32.gmra.mrb[0].mxu0 %v195
    %v840 = vpop.f32.mrb[0].mxu0
    %v841 = vadd.f32 %v237, %v840
    %v842 = vpop.f32.mrb[0].mxu0
    %843 = vmatprep.mubr.f32.mxu0 0.0
    %844 = vmatmul.mubr.f32.gmra.mrb[0].mxu0 %v196
    %v845 = vpop.f32.mrb[0].mxu0
    %v846 = vadd.f32 %v237, %v845
    %v847 = vpop.f32.mrb[0].mxu0
    %848 = vmatprep.mubr.f32.mxu0 0.0
    %849 = vmatmul.mubr.f32.gmra.mrb[0].mxu0 %v197
    %v850 = vpop.f32.mrb[0].mxu0
    %v851 = vadd.f32 %v237, %v850
    %v852 = vpop.f32.mrb[0].mxu0
    %853 = vmatprep.mubr.f32.mxu0 0.0
    %854 = vmatmul.mubr.f32.gmra.mrb[0].mxu0 %v198
    %v855 = vpop.f32.mrb[0].mxu0
    %v856 = vadd.f32 %v237, %v855
    %v857 = vpop.f32.mrb[0].mxu0
    %858 = vmatprep.mubr.f32.mxu0 0.0
    %859 = vmatmul.mubr.f32.gmra.mrb[0].mxu0 %v199
    %v860 = vpop.f32.mrb[0].mxu0
    %v861 = vadd.f32 %v237, %v860
    %v862 = vpop.f32.mrb[0].mxu0
    %863 = vmatprep.mubr.f32.mxu0 0.0
    %864 = vmatmul.mubr.f32.gmra.mrb[0].mxu0 %v200
    %v865 = vpop.f32.mrb[0].mxu0
    %v866 = vadd.f32 %v237, %v865
    %v867 = vpop.f32.mrb[0].mxu0
    %868 = vmatprep.mubr.f32.mxu0 0.0
    %869 = vmatmul.mubr.f32.gmra.mrb[0].mxu0 %v201
    %v870 = vpop.f32.mrb[0].mxu0
    %v871 = vadd.f32 %v237, %v870
    %v872 = vpop.f32.mrb[0].mxu0
    %873 = vmatprep.mubr.f32.mxu0 0.0
    %874 = vmatmul.mubr.f32.gmra.mrb[0].mxu0 %v202
    %v875 = vpop.f32.mrb[0].mxu0
    %v876 = vadd.f32 %v237, %v875
    %v877 = vpop.f32.mrb[0].mxu0
    %878 = vmatprep.mubr.f32.mxu0 0.0
    %879 = vmatmul.mubr.f32.gmra.mrb[0].mxu0 %v203
    %v880 = vpop.f32.mrb[0].mxu0
    %v881 = vadd.f32 %v237, %v880
    %v882 = vpop.f32.mrb[0].mxu0
    %883 = vmatprep.mubr.f32.mxu0 0.0
    %884 = vmatmul.mubr.f32.gmra.mrb[0].mxu0 %v204
    %v885 = vpop.f32.mrb[0].mxu0
    %v886 = vadd.f32 %v237, %v885
    %v887 = vpop.f32.mrb[0].mxu0
    %888 = vmatprep.mubr.f32.mxu0 0.0
    %889 = vmatmul.mubr.f32.gmra.mrb[0].mxu0 %v205
    %v890 = vpop.f32.mrb[0].mxu0
    %v891 = vadd.f32 %v237, %v890
    %v892 = vpop.f32.mrb[0].mxu0
    %893 = vmatprep.mubr.f32.mxu0 0.0
    %894 = vmatmul.mubr.f32.gmra.mrb[0].mxu0 %v206
    %v895 = vpop.f32.mrb[0].mxu0
    %v896 = vadd.f32 %v237, %v895
    %v897 = vpop.f32.mrb[0].mxu0
    %898 = vmatprep.mubr.f32.mxu0 0.0
    %899 = vmatmul.mubr.f32.gmra.mrb[0].mxu0 %v207
    %v900 = vpop.f32.mrb[0].mxu0
    %v901 = vadd.f32 %v237, %v900
    %v902 = vpop.f32.mrb[0].mxu0
    %903 = vmatprep.mubr.f32.mxu0 0.0
    %904 = vmatmul.mubr.f32.gmra.mrb[0].mxu0 %v208
    %v905 = vpop.f32.mrb[0].mxu0
    %v906 = vadd.f32 %v237, %v905
    %v907 = vpop.f32.mrb[0].mxu0
    %908 = vmatprep.mubr.f32.mxu0 0.0
    %909 = vmatmul.mubr.f32.gmra.mrb[0].mxu0 %v209
    %v910 = vpop.f32.mrb[0].mxu0
    %v911 = vadd.f32 %v237, %v910
    %v912 = vpop.f32.mrb[0].mxu0
    %913 = vmatprep.mubr.f32.mxu0 0.0
    %914 = vmatmul.mubr.f32.gmra.mrb[0].mxu0 %v210
    %v915 = vpop.f32.mrb[0].mxu0
    %v916 = vadd.f32 %v237, %v915
    %v917 = vpop.f32.mrb[0].mxu0
    %918 = vmatprep.mubr.f32.mxu0 0.0
    %919 = vmatmul.mubr.f32.gmra.mrb[0].mxu0 %v211
    %v920 = vpop.f32.mrb[0].mxu0
    %v921 = vadd.f32 %v237, %v920
    %v922 = vpop.f32.mrb[0].mxu0
    %923 = vmatprep.mubr.f32.mxu0 0.0
    %924 = vmatmul.mubr.f32.gmra.mrb[0].mxu0 %v212
    %v925 = vpop.f32.mrb[0].mxu0
    %v926 = vadd.f32 %v237, %v925
    %v927 = vpop.f32.mrb[0].mxu0
    %928 = vmatprep.mubr.f32.mxu0 0.0
    %929 = vmatmul.mubr.f32.gmra.mrb[0].mxu0 %v213
    %v930 = vpop.f32.mrb[0].mxu0
    %v931 = vadd.f32 %v237, %v930
    %v932 = vpop.f32.mrb[0].mxu0
    %933 = vmatprep.mubr.f32.mxu0 0.0
    %934 = vmatmul.mubr.f32.gmra.mrb[0].mxu0 %v214
    %v935 = vpop.f32.mrb[0].mxu0
    %v936 = vadd.f32 %v237, %v935
    %v937 = vpop.f32.mrb[0].mxu0
    %938 = vmatprep.mubr.f32.mxu0 0.0
    %939 = vmatmul.mubr.f32.gmra.mrb[0].mxu0 %v215
    %v940 = vpop.f32.mrb[0].mxu0
    %v941 = vadd.f32 %v237, %v940
    %v942 = vpop.f32.mrb[0].mxu0
    %943 = vdwg.mxu0
    %v944 = vtanh.pop %v306
    %v945 = vtanh.pop %v311
    %v946 = vtanh.pop %v316
    %v947 = vtanh.pop %v321
    %v948 = vtanh.pop %v326
    %v949 = vtanh.pop %v331
    %v950 = vtanh.pop %v336
    %v951 = vtanh.pop %v341
    %v952 = vtanh.pop %v346
    %v953 = vtanh.pop %v351
    %v954 = vtanh.pop %v356
    %v955 = vtanh.pop %v361
    %v956 = vtanh.pop %v366
    %v957 = vtanh.pop %v371
    %v958 = vtanh.pop %v376
    %v959 = vtanh.pop %v381
    %v960 = vtanh.pop %v386
    %v961 = vtanh.pop %v391
    %v962 = vtanh.pop %v396
    %v963 = vtanh.pop %v401
    %v964 = vtanh.pop %v406
    %v965 = vtanh.pop %v411
    %v966 = vtanh.pop %v416
    %v967 = vtanh.pop %v421
    %v968 = vtanh.pop %v426
    %v969 = vtanh.pop %v431
    %v970 = vtanh.pop %v436
    %v971 = vtanh.pop %v441
    %v972 = vtanh.pop %v446
    %v973 = vtanh.pop %v451
    %v974 = vtanh.pop %v456
    %v975 = vtanh.pop %v461
    %v976 = vtanh.pop %v466
    %v977 = vtanh.pop %v471
    %v978 = vtanh.pop %v476
    %v979 = vtanh.pop %v481
    %v980 = vtanh.pop %v486
    %v981 = vtanh.pop %v491
    %v982 = vtanh.pop %v496
    %v983 = vtanh.pop %v501
    %v984 = vtanh.pop %v506
    %v985 = vtanh.pop %v511
    %v986 = vtanh.pop %v516
    %v987 = vtanh.pop %v521
    %v988 = vtanh.pop %v526
    %v989 = vtanh.pop %v531
    %v990 = vtanh.pop %v536
    %v991 = vtanh.pop %v541
    %v992 = vtanh.pop %v546
    %v993 = vtanh.pop %v551
    %v994 = vtanh.pop %v556
    %v995 = vtanh.pop %v561
    %v996 = vtanh.pop %v566
    %v997 = vtanh.pop %v571
    %v998 = vtanh.pop %v576
    %v999 = vtanh.pop %v581
    %v1000 = vtanh.pop %v586
    %v1001 = vtanh.pop %v591
    %v1002 = vtanh.pop %v596
    %v1003 = vtanh.pop %v601
    %v1004 = vtanh.pop %v606
    %v1005 = vtanh.pop %v611
    %v1006 = vtanh.pop %v616
    %v1007 = vtanh.pop %v621
    %v1008 = vtanh.pop %v626
    %v1009 = vtanh.pop %v631
    %v1010 = vtanh.pop %v636
    %v1011 = vtanh.pop %v641
    %v1012 = vtanh.pop %v646
    %v1013 = vtanh.pop %v651
    %v1014 = vtanh.pop %v656
    %v1015 = vtanh.pop %v661
    %v1016 = vtanh.pop %v666
    %v1017 = vtanh.pop %v671
    %v1018 = vtanh.pop %v676
    %v1019 = vtanh.pop %v681
    %v1020 = vtanh.pop %v686
    %v1021 = vtanh.pop %v691
    %v1022 = vtanh.pop %v696
    %v1023 = vtanh.pop %v701
    %v1024 = vtanh.pop %v706
    %v1025 = vtanh.pop %v711
    %v1026 = vtanh.pop %v716
    %v1027 = vtanh.pop %v721
    %v1028 = vtanh.pop %v726
    %v1029 = vtanh.pop %v731
    %v1030 = vtanh.pop %v736
    %v1031 = vtanh.pop %v741
    %v1032 = vtanh.pop %v746
    %v1033 = vtanh.pop %v751
    %v1034 = vtanh.pop %v756
    %v1035 = vtanh.pop %v761
    %v1036 = vtanh.pop %v766
    %v1037 = vtanh.pop %v771
    %v1038 = vtanh.pop %v776
    %v1039 = vtanh.pop %v781
    %v1040 = vtanh.pop %v786
    %v1041 = vtanh.pop %v791
    %v1042 = vtanh.pop %v796
    %v1043 = vtanh.pop %v801
    %v1044 = vtanh.pop %v806
    %v1045 = vtanh.pop %v811
    %v1046 = vtanh.pop %v816
    %v1047 = vtanh.pop %v821
    %v1048 = vtanh.pop %v826
    %v1049 = vtanh.pop %v831
    %v1050 = vtanh.pop %v836
    %v1051 = vtanh.pop %v841
    %v1052 = vtanh.pop %v846
    %v1053 = vtanh.pop %v851
    %v1054 = vtanh.pop %v856
    %v1055 = vtanh.pop %v861
    %v1056 = vtanh.pop %v866
    %v1057 = vtanh.pop %v871
    %v1058 = vtanh.pop %v876
    %v1059 = vtanh.pop %v881
    %v1060 = vtanh.pop %v886
    %v1061 = vtanh.pop %v891
    %v1062 = vtanh.pop %v896
    %v1063 = vtanh.pop %v901
    %v1064 = vtanh.pop %v906
    %v1065 = vtanh.pop %v911
    %v1066 = vtanh.pop %v916
    %v1067 = vtanh.pop %v921
    %v1068 = vtanh.pop %v926
    %v1069 = vtanh.pop %v931
    %v1070 = vtanh.pop %v936
    %v1071 = vtanh.pop %v941
    %v1072 = vld [vmem:[%s4] sm:$0x1]
    %v1074 = vlaneseq
    %v1075 = vshrl.u32 %v1074, 7
    %v1076 = vsub.s32 0, %v1075
    %v1077 = vrot.slane %v1072, %v1076
    %v1079 = vmul.f32 %v944, %v1077
    %v1080 = vmul.f32 %v945, %v1077
    %v1081 = vmul.f32 %v946, %v1077
    %v1082 = vmul.f32 %v947, %v1077
    %v1083 = vmul.f32 %v948, %v1077
    %v1084 = vmul.f32 %v949, %v1077
    %v1085 = vmul.f32 %v950, %v1077
    %v1086 = vmul.f32 %v951, %v1077
    %v1087 = vmul.f32 %v952, %v1077
    %v1088 = vmul.f32 %v953, %v1077
    %v1089 = vmul.f32 %v954, %v1077
    %v1090 = vmul.f32 %v955, %v1077
    %v1091 = vmul.f32 %v956, %v1077
    %v1092 = vmul.f32 %v957, %v1077
    %v1093 = vmul.f32 %v958, %v1077
    %v1094 = vmul.f32 %v959, %v1077
    %v1095 = vmul.f32 %v960, %v1077
    %v1096 = vmul.f32 %v961, %v1077
    %v1097 = vmul.f32 %v962, %v1077
    %v1098 = vmul.f32 %v963, %v1077
    %v1099 = vmul.f32 %v964, %v1077
    %v1100 = vmul.f32 %v965, %v1077
    %v1101 = vmul.f32 %v966, %v1077
    %v1102 = vmul.f32 %v967, %v1077
    %v1103 = vmul.f32 %v968, %v1077
    %v1104 = vmul.f32 %v969, %v1077
    %v1105 = vmul.f32 %v970, %v1077
    %v1106 = vmul.f32 %v971, %v1077
    %v1107 = vmul.f32 %v972, %v1077
    %v1108 = vmul.f32 %v973, %v1077
    %v1109 = vmul.f32 %v974, %v1077
    %v1110 = vmul.f32 %v975, %v1077
    %v1111 = vmul.f32 %v976, %v1077
    %v1112 = vmul.f32 %v977, %v1077
    %v1113 = vmul.f32 %v978, %v1077
    %v1114 = vmul.f32 %v979, %v1077
    %v1115 = vmul.f32 %v980, %v1077
    %v1116 = vmul.f32 %v981, %v1077
    %v1117 = vmul.f32 %v982, %v1077
    %v1118 = vmul.f32 %v983, %v1077
    %v1119 = vmul.f32 %v984, %v1077
    %v1120 = vmul.f32 %v985, %v1077
    %v1121 = vmul.f32 %v986, %v1077
    %v1122 = vmul.f32 %v987, %v1077
    %v1123 = vmul.f32 %v988, %v1077
    %v1124 = vmul.f32 %v989, %v1077
    %v1125 = vmul.f32 %v990, %v1077
    %v1126 = vmul.f32 %v991, %v1077
    %v1127 = vmul.f32 %v992, %v1077
    %v1128 = vmul.f32 %v993, %v1077
    %v1129 = vmul.f32 %v994, %v1077
    %v1130 = vmul.f32 %v995, %v1077
    %v1131 = vmul.f32 %v996, %v1077
    %v1132 = vmul.f32 %v997, %v1077
    %v1133 = vmul.f32 %v998, %v1077
    %v1134 = vmul.f32 %v999, %v1077
    %v1135 = vmul.f32 %v1000, %v1077
    %v1136 = vmul.f32 %v1001, %v1077
    %v1137 = vmul.f32 %v1002, %v1077
    %v1138 = vmul.f32 %v1003, %v1077
    %v1139 = vmul.f32 %v1004, %v1077
    %v1140 = vmul.f32 %v1005, %v1077
    %v1141 = vmul.f32 %v1006, %v1077
    %v1142 = vmul.f32 %v1007, %v1077
    %v1143 = vmul.f32 %v1008, %v1077
    %v1144 = vmul.f32 %v1009, %v1077
    %v1145 = vmul.f32 %v1010, %v1077
    %v1146 = vmul.f32 %v1011, %v1077
    %v1147 = vmul.f32 %v1012, %v1077
    %v1148 = vmul.f32 %v1013, %v1077
    %v1149 = vmul.f32 %v1014, %v1077
    %v1150 = vmul.f32 %v1015, %v1077
    %v1151 = vmul.f32 %v1016, %v1077
    %v1152 = vmul.f32 %v1017, %v1077
    %v1153 = vmul.f32 %v1018, %v1077
    %v1154 = vmul.f32 %v1019, %v1077
    %v1155 = vmul.f32 %v1020, %v1077
    %v1156 = vmul.f32 %v1021, %v1077
    %v1157 = vmul.f32 %v1022, %v1077
    %v1158 = vmul.f32 %v1023, %v1077
    %v1159 = vmul.f32 %v1024, %v1077
    %v1160 = vmul.f32 %v1025, %v1077
    %v1161 = vmul.f32 %v1026, %v1077
    %v1162 = vmul.f32 %v1027, %v1077
    %v1163 = vmul.f32 %v1028, %v1077
    %v1164 = vmul.f32 %v1029, %v1077
    %v1165 = vmul.f32 %v1030, %v1077
    %v1166 = vmul.f32 %v1031, %v1077
    %v1167 = vmul.f32 %v1032, %v1077
    %v1168 = vmul.f32 %v1033, %v1077
    %v1169 = vmul.f32 %v1034, %v1077
    %v1170 = vmul.f32 %v1035, %v1077
    %v1171 = vmul.f32 %v1036, %v1077
    %v1172 = vmul.f32 %v1037, %v1077
    %v1173 = vmul.f32 %v1038, %v1077
    %v1174 = vmul.f32 %v1039, %v1077
    %v1175 = vmul.f32 %v1040, %v1077
    %v1176 = vmul.f32 %v1041, %v1077
    %v1177 = vmul.f32 %v1042, %v1077
    %v1178 = vmul.f32 %v1043, %v1077
    %v1179 = vmul.f32 %v1044, %v1077
    %v1180 = vmul.f32 %v1045, %v1077
    %v1181 = vmul.f32 %v1046, %v1077
    %v1182 = vmul.f32 %v1047, %v1077
    %v1183 = vmul.f32 %v1048, %v1077
    %v1184 = vmul.f32 %v1049, %v1077
    %v1185 = vmul.f32 %v1050, %v1077
    %v1186 = vmul.f32 %v1051, %v1077
    %v1187 = vmul.f32 %v1052, %v1077
    %v1188 = vmul.f32 %v1053, %v1077
    %v1189 = vmul.f32 %v1054, %v1077
    %v1190 = vmul.f32 %v1055, %v1077
    %v1191 = vmul.f32 %v1056, %v1077
    %v1192 = vmul.f32 %v1057, %v1077
    %v1193 = vmul.f32 %v1058, %v1077
    %v1194 = vmul.f32 %v1059, %v1077
    %v1195 = vmul.f32 %v1060, %v1077
    %v1196 = vmul.f32 %v1061, %v1077
    %v1197 = vmul.f32 %v1062, %v1077
    %v1198 = vmul.f32 %v1063, %v1077
    %v1199 = vmul.f32 %v1064, %v1077
    %v1200 = vmul.f32 %v1065, %v1077
    %v1201 = vmul.f32 %v1066, %v1077
    %v1202 = vmul.f32 %v1067, %v1077
    %v1203 = vmul.f32 %v1068, %v1077
    %v1204 = vmul.f32 %v1069, %v1077
    %v1205 = vmul.f32 %v1070, %v1077
    %v1206 = vmul.f32 %v1071, %v1077
    %1207 = vadd.xlane.f32.xlu0 %v1079
    %v1208 = vpop.xlane.xlu0 %1207
    %1209 = vadd.xlane.f32.xlu0 %v1080
    %v1210 = vpop.xlane.xlu0 %1209
    %1211 = vadd.xlane.f32.xlu0 %v1081
    %v1212 = vpop.xlane.xlu0 %1211
    %1213 = vadd.xlane.f32.xlu0 %v1082
    %v1214 = vpop.xlane.xlu0 %1213
    %1215 = vadd.xlane.f32.xlu0 %v1083
    %v1216 = vpop.xlane.xlu0 %1215
    %1217 = vadd.xlane.f32.xlu0 %v1084
    %v1218 = vpop.xlane.xlu0 %1217
    %1219 = vadd.xlane.f32.xlu0 %v1085
    %v1220 = vpop.xlane.xlu0 %1219
    %1221 = vadd.xlane.f32.xlu0 %v1086
    %v1222 = vpop.xlane.xlu0 %1221
    %1223 = vadd.xlane.f32.xlu0 %v1087
    %v1224 = vpop.xlane.xlu0 %1223
    %1225 = vadd.xlane.f32.xlu0 %v1088
    %v1226 = vpop.xlane.xlu0 %1225
    %1227 = vadd.xlane.f32.xlu0 %v1089
    %v1228 = vpop.xlane.xlu0 %1227
    %1229 = vadd.xlane.f32.xlu0 %v1090
    %v1230 = vpop.xlane.xlu0 %1229
    %1231 = vadd.xlane.f32.xlu0 %v1091
    %v1232 = vpop.xlane.xlu0 %1231
    %1233 = vadd.xlane.f32.xlu0 %v1092
    %v1234 = vpop.xlane.xlu0 %1233
    %1235 = vadd.xlane.f32.xlu0 %v1093
    %v1236 = vpop.xlane.xlu0 %1235
    %1237 = vadd.xlane.f32.xlu0 %v1094
    %v1238 = vpop.xlane.xlu0 %1237
    %1239 = vadd.xlane.f32.xlu0 %v1095
    %v1240 = vpop.xlane.xlu0 %1239
    %1241 = vadd.xlane.f32.xlu0 %v1096
    %v1242 = vpop.xlane.xlu0 %1241
    %1243 = vadd.xlane.f32.xlu0 %v1097
    %v1244 = vpop.xlane.xlu0 %1243
    %1245 = vadd.xlane.f32.xlu0 %v1098
    %v1246 = vpop.xlane.xlu0 %1245
    %1247 = vadd.xlane.f32.xlu0 %v1099
    %v1248 = vpop.xlane.xlu0 %1247
    %1249 = vadd.xlane.f32.xlu0 %v1100
    %v1250 = vpop.xlane.xlu0 %1249
    %1251 = vadd.xlane.f32.xlu0 %v1101
    %v1252 = vpop.xlane.xlu0 %1251
    %1253 = vadd.xlane.f32.xlu0 %v1102
    %v1254 = vpop.xlane.xlu0 %1253
    %1255 = vadd.xlane.f32.xlu0 %v1103
    %v1256 = vpop.xlane.xlu0 %1255
    %1257 = vadd.xlane.f32.xlu0 %v1104
    %v1258 = vpop.xlane.xlu0 %1257
    %1259 = vadd.xlane.f32.xlu0 %v1105
    %v1260 = vpop.xlane.xlu0 %1259
    %1261 = vadd.xlane.f32.xlu0 %v1106
    %v1262 = vpop.xlane.xlu0 %1261
    %1263 = vadd.xlane.f32.xlu0 %v1107
    %v1264 = vpop.xlane.xlu0 %1263
    %1265 = vadd.xlane.f32.xlu0 %v1108
    %v1266 = vpop.xlane.xlu0 %1265
    %1267 = vadd.xlane.f32.xlu0 %v1109
    %v1268 = vpop.xlane.xlu0 %1267
    %1269 = vadd.xlane.f32.xlu0 %v1110
    %v1270 = vpop.xlane.xlu0 %1269
    %1271 = vadd.xlane.f32.xlu0 %v1111
    %v1272 = vpop.xlane.xlu0 %1271
    %1273 = vadd.xlane.f32.xlu0 %v1112
    %v1274 = vpop.xlane.xlu0 %1273
    %1275 = vadd.xlane.f32.xlu0 %v1113
    %v1276 = vpop.xlane.xlu0 %1275
    %1277 = vadd.xlane.f32.xlu0 %v1114
    %v1278 = vpop.xlane.xlu0 %1277
    %1279 = vadd.xlane.f32.xlu0 %v1115
    %v1280 = vpop.xlane.xlu0 %1279
    %1281 = vadd.xlane.f32.xlu0 %v1116
    %v1282 = vpop.xlane.xlu0 %1281
    %1283 = vadd.xlane.f32.xlu0 %v1117
    %v1284 = vpop.xlane.xlu0 %1283
    %1285 = vadd.xlane.f32.xlu0 %v1118
    %v1286 = vpop.xlane.xlu0 %1285
    %1287 = vadd.xlane.f32.xlu0 %v1119
    %v1288 = vpop.xlane.xlu0 %1287
    %1289 = vadd.xlane.f32.xlu0 %v1120
    %v1290 = vpop.xlane.xlu0 %1289
    %1291 = vadd.xlane.f32.xlu0 %v1121
    %v1292 = vpop.xlane.xlu0 %1291
    %1293 = vadd.xlane.f32.xlu0 %v1122
    %v1294 = vpop.xlane.xlu0 %1293
    %1295 = vadd.xlane.f32.xlu0 %v1123
    %v1296 = vpop.xlane.xlu0 %1295
    %1297 = vadd.xlane.f32.xlu0 %v1124
    %v1298 = vpop.xlane.xlu0 %1297
    %1299 = vadd.xlane.f32.xlu0 %v1125
    %v1300 = vpop.xlane.xlu0 %1299
    %1301 = vadd.xlane.f32.xlu0 %v1126
    %v1302 = vpop.xlane.xlu0 %1301
    %1303 = vadd.xlane.f32.xlu0 %v1127
    %v1304 = vpop.xlane.xlu0 %1303
    %1305 = vadd.xlane.f32.xlu0 %v1128
    %v1306 = vpop.xlane.xlu0 %1305
    %1307 = vadd.xlane.f32.xlu0 %v1129
    %v1308 = vpop.xlane.xlu0 %1307
    %1309 = vadd.xlane.f32.xlu0 %v1130
    %v1310 = vpop.xlane.xlu0 %1309
    %1311 = vadd.xlane.f32.xlu0 %v1131
    %v1312 = vpop.xlane.xlu0 %1311
    %1313 = vadd.xlane.f32.xlu0 %v1132
    %v1314 = vpop.xlane.xlu0 %1313
    %1315 = vadd.xlane.f32.xlu0 %v1133
    %v1316 = vpop.xlane.xlu0 %1315
    %1317 = vadd.xlane.f32.xlu0 %v1134
    %v1318 = vpop.xlane.xlu0 %1317
    %1319 = vadd.xlane.f32.xlu0 %v1135
    %v1320 = vpop.xlane.xlu0 %1319
    %1321 = vadd.xlane.f32.xlu0 %v1136
    %v1322 = vpop.xlane.xlu0 %1321
    %1323 = vadd.xlane.f32.xlu0 %v1137
    %v1324 = vpop.xlane.xlu0 %1323
    %1325 = vadd.xlane.f32.xlu0 %v1138
    %v1326 = vpop.xlane.xlu0 %1325
    %1327 = vadd.xlane.f32.xlu0 %v1139
    %v1328 = vpop.xlane.xlu0 %1327
    %1329 = vadd.xlane.f32.xlu0 %v1140
    %v1330 = vpop.xlane.xlu0 %1329
    %1331 = vadd.xlane.f32.xlu0 %v1141
    %v1332 = vpop.xlane.xlu0 %1331
    %1333 = vadd.xlane.f32.xlu0 %v1142
    %v1334 = vpop.xlane.xlu0 %1333
    %1335 = vadd.xlane.f32.xlu0 %v1143
    %v1336 = vpop.xlane.xlu0 %1335
    %1337 = vadd.xlane.f32.xlu0 %v1144
    %v1338 = vpop.xlane.xlu0 %1337
    %1339 = vadd.xlane.f32.xlu0 %v1145
    %v1340 = vpop.xlane.xlu0 %1339
    %1341 = vadd.xlane.f32.xlu0 %v1146
    %v1342 = vpop.xlane.xlu0 %1341
    %1343 = vadd.xlane.f32.xlu0 %v1147
    %v1344 = vpop.xlane.xlu0 %1343
    %1345 = vadd.xlane.f32.xlu0 %v1148
    %v1346 = vpop.xlane.xlu0 %1345
    %1347 = vadd.xlane.f32.xlu0 %v1149
    %v1348 = vpop.xlane.xlu0 %1347
    %1349 = vadd.xlane.f32.xlu0 %v1150
    %v1350 = vpop.xlane.xlu0 %1349
    %1351 = vadd.xlane.f32.xlu0 %v1151
    %v1352 = vpop.xlane.xlu0 %1351
    %1353 = vadd.xlane.f32.xlu0 %v1152
    %v1354 = vpop.xlane.xlu0 %1353
    %1355 = vadd.xlane.f32.xlu0 %v1153
    %v1356 = vpop.xlane.xlu0 %1355
    %1357 = vadd.xlane.f32.xlu0 %v1154
    %v1358 = vpop.xlane.xlu0 %1357
    %1359 = vadd.xlane.f32.xlu0 %v1155
    %v1360 = vpop.xlane.xlu0 %1359
    %1361 = vadd.xlane.f32.xlu0 %v1156
    %v1362 = vpop.xlane.xlu0 %1361
    %1363 = vadd.xlane.f32.xlu0 %v1157
    %v1364 = vpop.xlane.xlu0 %1363
    %1365 = vadd.xlane.f32.xlu0 %v1158
    %v1366 = vpop.xlane.xlu0 %1365
    %1367 = vadd.xlane.f32.xlu0 %v1159
    %v1368 = vpop.xlane.xlu0 %1367
    %1369 = vadd.xlane.f32.xlu0 %v1160
    %v1370 = vpop.xlane.xlu0 %1369
    %1371 = vadd.xlane.f32.xlu0 %v1161
    %v1372 = vpop.xlane.xlu0 %1371
    %1373 = vadd.xlane.f32.xlu0 %v1162
    %v1374 = vpop.xlane.xlu0 %1373
    %1375 = vadd.xlane.f32.xlu0 %v1163
    %v1376 = vpop.xlane.xlu0 %1375
    %1377 = vadd.xlane.f32.xlu0 %v1164
    %v1378 = vpop.xlane.xlu0 %1377
    %1379 = vadd.xlane.f32.xlu0 %v1165
    %v1380 = vpop.xlane.xlu0 %1379
    %1381 = vadd.xlane.f32.xlu0 %v1166
    %v1382 = vpop.xlane.xlu0 %1381
    %1383 = vadd.xlane.f32.xlu0 %v1167
    %v1384 = vpop.xlane.xlu0 %1383
    %1385 = vadd.xlane.f32.xlu0 %v1168
    %v1386 = vpop.xlane.xlu0 %1385
    %1387 = vadd.xlane.f32.xlu0 %v1169
    %v1388 = vpop.xlane.xlu0 %1387
    %1389 = vadd.xlane.f32.xlu0 %v1170
    %v1390 = vpop.xlane.xlu0 %1389
    %1391 = vadd.xlane.f32.xlu0 %v1171
    %v1392 = vpop.xlane.xlu0 %1391
    %1393 = vadd.xlane.f32.xlu0 %v1172
    %v1394 = vpop.xlane.xlu0 %1393
    %1395 = vadd.xlane.f32.xlu0 %v1173
    %v1396 = vpop.xlane.xlu0 %1395
    %1397 = vadd.xlane.f32.xlu0 %v1174
    %v1398 = vpop.xlane.xlu0 %1397
    %1399 = vadd.xlane.f32.xlu0 %v1175
    %v1400 = vpop.xlane.xlu0 %1399
    %1401 = vadd.xlane.f32.xlu0 %v1176
    %v1402 = vpop.xlane.xlu0 %1401
    %1403 = vadd.xlane.f32.xlu0 %v1177
    %v1404 = vpop.xlane.xlu0 %1403
    %1405 = vadd.xlane.f32.xlu0 %v1178
    %v1406 = vpop.xlane.xlu0 %1405
    %1407 = vadd.xlane.f32.xlu0 %v1179
    %v1408 = vpop.xlane.xlu0 %1407
    %1409 = vadd.xlane.f32.xlu0 %v1180
    %v1410 = vpop.xlane.xlu0 %1409
    %1411 = vadd.xlane.f32.xlu0 %v1181
    %v1412 = vpop.xlane.xlu0 %1411
    %1413 = vadd.xlane.f32.xlu0 %v1182
    %v1414 = vpop.xlane.xlu0 %1413
    %1415 = vadd.xlane.f32.xlu0 %v1183
    %v1416 = vpop.xlane.xlu0 %1415
    %1417 = vadd.xlane.f32.xlu0 %v1184
    %v1418 = vpop.xlane.xlu0 %1417
    %1419 = vadd.xlane.f32.xlu0 %v1185
    %v1420 = vpop.xlane.xlu0 %1419
    %1421 = vadd.xlane.f32.xlu0 %v1186
    %v1422 = vpop.xlane.xlu0 %1421
    %1423 = vadd.xlane.f32.xlu0 %v1187
    %v1424 = vpop.xlane.xlu0 %1423
    %1425 = vadd.xlane.f32.xlu0 %v1188
    %v1426 = vpop.xlane.xlu0 %1425
    %1427 = vadd.xlane.f32.xlu0 %v1189
    %v1428 = vpop.xlane.xlu0 %1427
    %1429 = vadd.xlane.f32.xlu0 %v1190
    %v1430 = vpop.xlane.xlu0 %1429
    %1431 = vadd.xlane.f32.xlu0 %v1191
    %v1432 = vpop.xlane.xlu0 %1431
    %1433 = vadd.xlane.f32.xlu0 %v1192
    %v1434 = vpop.xlane.xlu0 %1433
    %1435 = vadd.xlane.f32.xlu0 %v1193
    %v1436 = vpop.xlane.xlu0 %1435
    %1437 = vadd.xlane.f32.xlu0 %v1194
    %v1438 = vpop.xlane.xlu0 %1437
    %1439 = vadd.xlane.f32.xlu0 %v1195
    %v1440 = vpop.xlane.xlu0 %1439
    %1441 = vadd.xlane.f32.xlu0 %v1196
    %v1442 = vpop.xlane.xlu0 %1441
    %1443 = vadd.xlane.f32.xlu0 %v1197
    %v1444 = vpop.xlane.xlu0 %1443
    %1445 = vadd.xlane.f32.xlu0 %v1198
    %v1446 = vpop.xlane.xlu0 %1445
    %1447 = vadd.xlane.f32.xlu0 %v1199
    %v1448 = vpop.xlane.xlu0 %1447
    %1449 = vadd.xlane.f32.xlu0 %v1200
    %v1450 = vpop.xlane.xlu0 %1449
    %1451 = vadd.xlane.f32.xlu0 %v1201
    %v1452 = vpop.xlane.xlu0 %1451
    %1453 = vadd.xlane.f32.xlu0 %v1202
    %v1454 = vpop.xlane.xlu0 %1453
    %1455 = vadd.xlane.f32.xlu0 %v1203
    %v1456 = vpop.xlane.xlu0 %1455
    %1457 = vadd.xlane.f32.xlu0 %v1204
    %v1458 = vpop.xlane.xlu0 %1457
    %1459 = vadd.xlane.f32.xlu0 %v1205
    %v1460 = vpop.xlane.xlu0 %1459
    %1461 = vadd.xlane.f32.xlu0 %v1206
    %v1462 = vpop.xlane.xlu0 %1461
    %v1463 = vld [vmem:[#allocation2] sm:$0x1]
    %v1465 = vlaneseq
    %v1466 = vshrl.u32 %v1465, 7
    %v1467 = vsub.s32 0, %v1466
    %v1468 = vrot.slane %v1463, %v1467
    %1469 = vset.pattern.permute.xlu0 0
    %1470 = vperm.xlu0 %1469, %v1468
    %v1471 = vpop.permute.xlu0 %1470
    %v1473 = vadd.f32 %v1208, %v1471
    %v1474 = vadd.f32 %v1210, %v1471
    %v1475 = vadd.f32 %v1212, %v1471
    %v1476 = vadd.f32 %v1214, %v1471
    %v1477 = vadd.f32 %v1216, %v1471
    %v1478 = vadd.f32 %v1218, %v1471
    %v1479 = vadd.f32 %v1220, %v1471
    %v1480 = vadd.f32 %v1222, %v1471
    %v1481 = vadd.f32 %v1224, %v1471
    %v1482 = vadd.f32 %v1226, %v1471
    %v1483 = vadd.f32 %v1228, %v1471
    %v1484 = vadd.f32 %v1230, %v1471
    %v1485 = vadd.f32 %v1232, %v1471
    %v1486 = vadd.f32 %v1234, %v1471
    %v1487 = vadd.f32 %v1236, %v1471
    %v1488 = vadd.f32 %v1238, %v1471
    %v1489 = vadd.f32 %v1240, %v1471
    %v1490 = vadd.f32 %v1242, %v1471
    %v1491 = vadd.f32 %v1244, %v1471
    %v1492 = vadd.f32 %v1246, %v1471
    %v1493 = vadd.f32 %v1248, %v1471
    %v1494 = vadd.f32 %v1250, %v1471
    %v1495 = vadd.f32 %v1252, %v1471
    %v1496 = vadd.f32 %v1254, %v1471
    %v1497 = vadd.f32 %v1256, %v1471
    %v1498 = vadd.f32 %v1258, %v1471
    %v1499 = vadd.f32 %v1260, %v1471
    %v1500 = vadd.f32 %v1262, %v1471
    %v1501 = vadd.f32 %v1264, %v1471
    %v1502 = vadd.f32 %v1266, %v1471
    %v1503 = vadd.f32 %v1268, %v1471
    %v1504 = vadd.f32 %v1270, %v1471
    %v1505 = vadd.f32 %v1272, %v1471
    %v1506 = vadd.f32 %v1274, %v1471
    %v1507 = vadd.f32 %v1276, %v1471
    %v1508 = vadd.f32 %v1278, %v1471
    %v1509 = vadd.f32 %v1280, %v1471
    %v1510 = vadd.f32 %v1282, %v1471
    %v1511 = vadd.f32 %v1284, %v1471
    %v1512 = vadd.f32 %v1286, %v1471
    %v1513 = vadd.f32 %v1288, %v1471
    %v1514 = vadd.f32 %v1290, %v1471
    %v1515 = vadd.f32 %v1292, %v1471
    %v1516 = vadd.f32 %v1294, %v1471
    %v1517 = vadd.f32 %v1296, %v1471
    %v1518 = vadd.f32 %v1298, %v1471
    %v1519 = vadd.f32 %v1300, %v1471
    %v1520 = vadd.f32 %v1302, %v1471
    %v1521 = vadd.f32 %v1304, %v1471
    %v1522 = vadd.f32 %v1306, %v1471
    %v1523 = vadd.f32 %v1308, %v1471
    %v1524 = vadd.f32 %v1310, %v1471
    %v1525 = vadd.f32 %v1312, %v1471
    %v1526 = vadd.f32 %v1314, %v1471
    %v1527 = vadd.f32 %v1316, %v1471
    %v1528 = vadd.f32 %v1318, %v1471
    %v1529 = vadd.f32 %v1320, %v1471
    %v1530 = vadd.f32 %v1322, %v1471
    %v1531 = vadd.f32 %v1324, %v1471
    %v1532 = vadd.f32 %v1326, %v1471
    %v1533 = vadd.f32 %v1328, %v1471
    %v1534 = vadd.f32 %v1330, %v1471
    %v1535 = vadd.f32 %v1332, %v1471
    %v1536 = vadd.f32 %v1334, %v1471
    %v1537 = vadd.f32 %v1336, %v1471
    %v1538 = vadd.f32 %v1338, %v1471
    %v1539 = vadd.f32 %v1340, %v1471
    %v1540 = vadd.f32 %v1342, %v1471
    %v1541 = vadd.f32 %v1344, %v1471
    %v1542 = vadd.f32 %v1346, %v1471
    %v1543 = vadd.f32 %v1348, %v1471
    %v1544 = vadd.f32 %v1350, %v1471
    %v1545 = vadd.f32 %v1352, %v1471
    %v1546 = vadd.f32 %v1354, %v1471
    %v1547 = vadd.f32 %v1356, %v1471
    %v1548 = vadd.f32 %v1358, %v1471
    %v1549 = vadd.f32 %v1360, %v1471
    %v1550 = vadd.f32 %v1362, %v1471
    %v1551 = vadd.f32 %v1364, %v1471
    %v1552 = vadd.f32 %v1366, %v1471
    %v1553 = vadd.f32 %v1368, %v1471
    %v1554 = vadd.f32 %v1370, %v1471
    %v1555 = vadd.f32 %v1372, %v1471
    %v1556 = vadd.f32 %v1374, %v1471
    %v1557 = vadd.f32 %v1376, %v1471
    %v1558 = vadd.f32 %v1378, %v1471
    %v1559 = vadd.f32 %v1380, %v1471
    %v1560 = vadd.f32 %v1382, %v1471
    %v1561 = vadd.f32 %v1384, %v1471
    %v1562 = vadd.f32 %v1386, %v1471
    %v1563 = vadd.f32 %v1388, %v1471
    %v1564 = vadd.f32 %v1390, %v1471
    %v1565 = vadd.f32 %v1392, %v1471
    %v1566 = vadd.f32 %v1394, %v1471
    %v1567 = vadd.f32 %v1396, %v1471
    %v1568 = vadd.f32 %v1398, %v1471
    %v1569 = vadd.f32 %v1400, %v1471
    %v1570 = vadd.f32 %v1402, %v1471
    %v1571 = vadd.f32 %v1404, %v1471
    %v1572 = vadd.f32 %v1406, %v1471
    %v1573 = vadd.f32 %v1408, %v1471
    %v1574 = vadd.f32 %v1410, %v1471
    %v1575 = vadd.f32 %v1412, %v1471
    %v1576 = vadd.f32 %v1414, %v1471
    %v1577 = vadd.f32 %v1416, %v1471
    %v1578 = vadd.f32 %v1418, %v1471
    %v1579 = vadd.f32 %v1420, %v1471
    %v1580 = vadd.f32 %v1422, %v1471
    %v1581 = vadd.f32 %v1424, %v1471
    %v1582 = vadd.f32 %v1426, %v1471
    %v1583 = vadd.f32 %v1428, %v1471
    %v1584 = vadd.f32 %v1430, %v1471
    %v1585 = vadd.f32 %v1432, %v1471
    %v1586 = vadd.f32 %v1434, %v1471
    %v1587 = vadd.f32 %v1436, %v1471
    %v1588 = vadd.f32 %v1438, %v1471
    %v1589 = vadd.f32 %v1440, %v1471
    %v1590 = vadd.f32 %v1442, %v1471
    %v1591 = vadd.f32 %v1444, %v1471
    %v1592 = vadd.f32 %v1446, %v1471
    %v1593 = vadd.f32 %v1448, %v1471
    %v1594 = vadd.f32 %v1450, %v1471
    %v1595 = vadd.f32 %v1452, %v1471
    %v1596 = vadd.f32 %v1454, %v1471
    %v1597 = vadd.f32 %v1456, %v1471
    %v1598 = vadd.f32 %v1458, %v1471
    %v1599 = vadd.f32 %v1460, %v1471
    %v1600 = vadd.f32 %v1462, %v1471
    %v1601 = vld [vmem:[#allocation6] sm:$0xff]
    %vm1602 = vcmp.gt.f32.partialorder %v1601, 0.5
    %v1731 = vlaneseq
    %v1732 = vand.u32 %v1731, 127
    %v1733 = vlaneseq
    %v1734 = vshrl.u32 %v1733, 7
    %v1735 = vsub.s32 %v1732, %v1734
    %v1736 = vrot.slane %v1473, %v1735
    %v1737 = vadd.s32 %v1732, 4294967288
    %v1738 = vlaneseq
    %v1739 = vshrl.u32 %v1738, 7
    %v1740 = vsub.s32 %v1737, %v1739
    %v1741 = vrot.slane %v1474, %v1740
    %vm1742 = vcmask 130112
    %v1743 = vsel %vm1742, %v1741, %v1736
    %v1744 = vadd.s32 %v1732, 4294967280
    %v1745 = vlaneseq
    %v1746 = vshrl.u32 %v1745, 7
    %v1747 = vsub.s32 %v1744, %v1746
    %v1748 = vrot.slane %v1475, %v1747
    %vm1749 = vcmask 195712
    %v1750 = vsel %vm1749, %v1748, %v1743
    %v1751 = vadd.s32 %v1732, 4294967272
    %v1752 = vlaneseq
    %v1753 = vshrl.u32 %v1752, 7
    %v1754 = vsub.s32 %v1751, %v1753
    %v1755 = vrot.slane %v1476, %v1754
    %vm1756 = vcmask 261312
    %v1757 = vsel %vm1756, %v1755, %v1750
    %v1758 = vadd.s32 %v1732, 4294967264
    %v1759 = vlaneseq
    %v1760 = vshrl.u32 %v1759, 7
    %v1761 = vsub.s32 %v1758, %v1760
    %v1762 = vrot.slane %v1477, %v1761
    %vm1763 = vcmask 326912
    %v1764 = vsel %vm1763, %v1762, %v1757
    %v1765 = vadd.s32 %v1732, 4294967256
    %v1766 = vlaneseq
    %v1767 = vshrl.u32 %v1766, 7
    %v1768 = vsub.s32 %v1765, %v1767
    %v1769 = vrot.slane %v1478, %v1768
    %vm1770 = vcmask 392512
    %v1771 = vsel %vm1770, %v1769, %v1764
    %v1772 = vadd.s32 %v1732, 4294967248
    %v1773 = vlaneseq
    %v1774 = vshrl.u32 %v1773, 7
    %v1775 = vsub.s32 %v1772, %v1774
    %v1776 = vrot.slane %v1479, %v1775
    %vm1777 = vcmask 458112
    %v1778 = vsel %vm1777, %v1776, %v1771
    %v1779 = vadd.s32 %v1732, 4294967240
    %v1780 = vlaneseq
    %v1781 = vshrl.u32 %v1780, 7
    %v1782 = vsub.s32 %v1779, %v1781
    %v1783 = vrot.slane %v1480, %v1782
    %vm1784 = vcmask 523712
    %v1785 = vsel %vm1784, %v1783, %v1778
    %v1786 = vadd.s32 %v1732, 4294967232
    %v1787 = vlaneseq
    %v1788 = vshrl.u32 %v1787, 7
    %v1789 = vsub.s32 %v1786, %v1788
    %v1790 = vrot.slane %v1481, %v1789
    %vm1791 = vcmask 589312
    %v1792 = vsel %vm1791, %v1790, %v1785
    %v1793 = vadd.s32 %v1732, 4294967224
    %v1794 = vlaneseq
    %v1795 = vshrl.u32 %v1794, 7
    %v1796 = vsub.s32 %v1793, %v1795
    %v1797 = vrot.slane %v1482, %v1796
    %vm1798 = vcmask 654912
    %v1799 = vsel %vm1798, %v1797, %v1792
    %v1800 = vadd.s32 %v1732, 4294967216
    %v1801 = vlaneseq
    %v1802 = vshrl.u32 %v1801, 7
    %v1803 = vsub.s32 %v1800, %v1802
    %v1804 = vrot.slane %v1483, %v1803
    %vm1805 = vcmask 720512
    %v1806 = vsel %vm1805, %v1804, %v1799
    %v1807 = vadd.s32 %v1732, 4294967208
    %v1808 = vlaneseq
    %v1809 = vshrl.u32 %v1808, 7
    %v1810 = vsub.s32 %v1807, %v1809
    %v1811 = vrot.slane %v1484, %v1810
    %vm1812 = vcmask 786112
    %v1813 = vsel %vm1812, %v1811, %v1806
    %v1814 = vadd.s32 %v1732, 4294967200
    %v1815 = vlaneseq
    %v1816 = vshrl.u32 %v1815, 7
    %v1817 = vsub.s32 %v1814, %v1816
    %v1818 = vrot.slane %v1485, %v1817
    %vm1819 = vcmask 851712
    %v1820 = vsel %vm1819, %v1818, %v1813
    %v1821 = vadd.s32 %v1732, 4294967192
    %v1822 = vlaneseq
    %v1823 = vshrl.u32 %v1822, 7
    %v1824 = vsub.s32 %v1821, %v1823
    %v1825 = vrot.slane %v1486, %v1824
    %vm1826 = vcmask 917312
    %v1827 = vsel %vm1826, %v1825, %v1820
    %v1828 = vadd.s32 %v1732, 4294967184
    %v1829 = vlaneseq
    %v1830 = vshrl.u32 %v1829, 7
    %v1831 = vsub.s32 %v1828, %v1830
    %v1832 = vrot.slane %v1487, %v1831
    %vm1833 = vcmask 982912
    %v1834 = vsel %vm1833, %v1832, %v1827
    %v1835 = vadd.s32 %v1732, 4294967176
    %v1836 = vlaneseq
    %v1837 = vshrl.u32 %v1836, 7
    %v1838 = vsub.s32 %v1835, %v1837
    %v1839 = vrot.slane %v1488, %v1838
    %vm1840 = vcmask 1048512
    %v1841 = vsel %vm1840, %v1839, %v1834
    %v1842 = vlaneseq
    %v1843 = vshrl.u32 %v1842, 7
    %v1844 = vsub.s32 %v1732, %v1843
    %v1845 = vrot.slane %v1489, %v1844
    %v1846 = vlaneseq
    %v1847 = vshrl.u32 %v1846, 7
    %v1848 = vsub.s32 %v1737, %v1847
    %v1849 = vrot.slane %v1490, %v1848
    %v1850 = vsel %vm1742, %v1849, %v1845
    %v1851 = vlaneseq
    %v1852 = vshrl.u32 %v1851, 7
    %v1853 = vsub.s32 %v1744, %v1852
    %v1854 = vrot.slane %v1491, %v1853
    %v1855 = vsel %vm1749, %v1854, %v1850
    %v1856 = vlaneseq
    %v1857 = vshrl.u32 %v1856, 7
    %v1858 = vsub.s32 %v1751, %v1857
    %v1859 = vrot.slane %v1492, %v1858
    %v1860 = vsel %vm1756, %v1859, %v1855
    %v1861 = vlaneseq
    %v1862 = vshrl.u32 %v1861, 7
    %v1863 = vsub.s32 %v1758, %v1862
    %v1864 = vrot.slane %v1493, %v1863
    %v1865 = vsel %vm1763, %v1864, %v1860
    %v1866 = vlaneseq
    %v1867 = vshrl.u32 %v1866, 7
    %v1868 = vsub.s32 %v1765, %v1867
    %v1869 = vrot.slane %v1494, %v1868
    %v1870 = vsel %vm1770, %v1869, %v1865
    %v1871 = vlaneseq
    %v1872 = vshrl.u32 %v1871, 7
    %v1873 = vsub.s32 %v1772, %v1872
    %v1874 = vrot.slane %v1495, %v1873
    %v1875 = vsel %vm1777, %v1874, %v1870
    %v1876 = vlaneseq
    %v1877 = vshrl.u32 %v1876, 7
    %v1878 = vsub.s32 %v1779, %v1877
    %v1879 = vrot.slane %v1496, %v1878
    %v1880 = vsel %vm1784, %v1879, %v1875
    %v1881 = vlaneseq
    %v1882 = vshrl.u32 %v1881, 7
    %v1883 = vsub.s32 %v1786, %v1882
    %v1884 = vrot.slane %v1497, %v1883
    %v1885 = vsel %vm1791, %v1884, %v1880
    %v1886 = vlaneseq
    %v1887 = vshrl.u32 %v1886, 7
    %v1888 = vsub.s32 %v1793, %v1887
    %v1889 = vrot.slane %v1498, %v1888
    %v1890 = vsel %vm1798, %v1889, %v1885
    %v1891 = vlaneseq
    %v1892 = vshrl.u32 %v1891, 7
    %v1893 = vsub.s32 %v1800, %v1892
    %v1894 = vrot.slane %v1499, %v1893
    %v1895 = vsel %vm1805, %v1894, %v1890
    %v1896 = vlaneseq
    %v1897 = vshrl.u32 %v1896, 7
    %v1898 = vsub.s32 %v1807, %v1897
    %v1899 = vrot.slane %v1500, %v1898
    %v1900 = vsel %vm1812, %v1899, %v1895
    %v1901 = vlaneseq
    %v1902 = vshrl.u32 %v1901, 7
    %v1903 = vsub.s32 %v1814, %v1902
    %v1904 = vrot.slane %v1501, %v1903
    %v1905 = vsel %vm1819, %v1904, %v1900
    %v1906 = vlaneseq
    %v1907 = vshrl.u32 %v1906, 7
    %v1908 = vsub.s32 %v1821, %v1907
    %v1909 = vrot.slane %v1502, %v1908
    %v1910 = vsel %vm1826, %v1909, %v1905
    %v1911 = vlaneseq
    %v1912 = vshrl.u32 %v1911, 7
    %v1913 = vsub.s32 %v1828, %v1912
    %v1914 = vrot.slane %v1503, %v1913
    %v1915 = vsel %vm1833, %v1914, %v1910
    %v1916 = vlaneseq
    %v1917 = vshrl.u32 %v1916, 7
    %v1918 = vsub.s32 %v1835, %v1917
    %v1919 = vrot.slane %v1504, %v1918
    %v1920 = vsel %vm1840, %v1919, %v1915
    %v1921 = vlaneseq
    %v1922 = vshrl.u32 %v1921, 7
    %v1923 = vsub.s32 %v1732, %v1922
    %v1924 = vrot.slane %v1505, %v1923
    %v1925 = vlaneseq
    %v1926 = vshrl.u32 %v1925, 7
    %v1927 = vsub.s32 %v1737, %v1926
    %v1928 = vrot.slane %v1506, %v1927
    %v1929 = vsel %vm1742, %v1928, %v1924
    %v1930 = vlaneseq
    %v1931 = vshrl.u32 %v1930, 7
    %v1932 = vsub.s32 %v1744, %v1931
    %v1933 = vrot.slane %v1507, %v1932
    %v1934 = vsel %vm1749, %v1933, %v1929
    %v1935 = vlaneseq
    %v1936 = vshrl.u32 %v1935, 7
    %v1937 = vsub.s32 %v1751, %v1936
    %v1938 = vrot.slane %v1508, %v1937
    %v1939 = vsel %vm1756, %v1938, %v1934
    %v1940 = vlaneseq
    %v1941 = vshrl.u32 %v1940, 7
    %v1942 = vsub.s32 %v1758, %v1941
    %v1943 = vrot.slane %v1509, %v1942
    %v1944 = vsel %vm1763, %v1943, %v1939
    %v1945 = vlaneseq
    %v1946 = vshrl.u32 %v1945, 7
    %v1947 = vsub.s32 %v1765, %v1946
    %v1948 = vrot.slane %v1510, %v1947
    %v1949 = vsel %vm1770, %v1948, %v1944
    %v1950 = vlaneseq
    %v1951 = vshrl.u32 %v1950, 7
    %v1952 = vsub.s32 %v1772, %v1951
    %v1953 = vrot.slane %v1511, %v1952
    %v1954 = vsel %vm1777, %v1953, %v1949
    %v1955 = vlaneseq
    %v1956 = vshrl.u32 %v1955, 7
    %v1957 = vsub.s32 %v1779, %v1956
    %v1958 = vrot.slane %v1512, %v1957
    %v1959 = vsel %vm1784, %v1958, %v1954
    %v1960 = vlaneseq
    %v1961 = vshrl.u32 %v1960, 7
    %v1962 = vsub.s32 %v1786, %v1961
    %v1963 = vrot.slane %v1513, %v1962
    %v1964 = vsel %vm1791, %v1963, %v1959
    %v1965 = vlaneseq
    %v1966 = vshrl.u32 %v1965, 7
    %v1967 = vsub.s32 %v1793, %v1966
    %v1968 = vrot.slane %v1514, %v1967
    %v1969 = vsel %vm1798, %v1968, %v1964
    %v1970 = vlaneseq
    %v1971 = vshrl.u32 %v1970, 7
    %v1972 = vsub.s32 %v1800, %v1971
    %v1973 = vrot.slane %v1515, %v1972
    %v1974 = vsel %vm1805, %v1973, %v1969
    %v1975 = vlaneseq
    %v1976 = vshrl.u32 %v1975, 7
    %v1977 = vsub.s32 %v1807, %v1976
    %v1978 = vrot.slane %v1516, %v1977
    %v1979 = vsel %vm1812, %v1978, %v1974
    %v1980 = vlaneseq
    %v1981 = vshrl.u32 %v1980, 7
    %v1982 = vsub.s32 %v1814, %v1981
    %v1983 = vrot.slane %v1517, %v1982
    %v1984 = vsel %vm1819, %v1983, %v1979
    %v1985 = vlaneseq
    %v1986 = vshrl.u32 %v1985, 7
    %v1987 = vsub.s32 %v1821, %v1986
    %v1988 = vrot.slane %v1518, %v1987
    %v1989 = vsel %vm1826, %v1988, %v1984
    %v1990 = vlaneseq
    %v1991 = vshrl.u32 %v1990, 7
    %v1992 = vsub.s32 %v1828, %v1991
    %v1993 = vrot.slane %v1519, %v1992
    %v1994 = vsel %vm1833, %v1993, %v1989
    %v1995 = vlaneseq
    %v1996 = vshrl.u32 %v1995, 7
    %v1997 = vsub.s32 %v1835, %v1996
    %v1998 = vrot.slane %v1520, %v1997
    %v1999 = vsel %vm1840, %v1998, %v1994
    %v2000 = vlaneseq
    %v2001 = vshrl.u32 %v2000, 7
    %v2002 = vsub.s32 %v1732, %v2001
    %v2003 = vrot.slane %v1521, %v2002
    %v2004 = vlaneseq
    %v2005 = vshrl.u32 %v2004, 7
    %v2006 = vsub.s32 %v1737, %v2005
    %v2007 = vrot.slane %v1522, %v2006
    %v2008 = vsel %vm1742, %v2007, %v2003
    %v2009 = vlaneseq
    %v2010 = vshrl.u32 %v2009, 7
    %v2011 = vsub.s32 %v1744, %v2010
    %v2012 = vrot.slane %v1523, %v2011
    %v2013 = vsel %vm1749, %v2012, %v2008
    %v2014 = vlaneseq
    %v2015 = vshrl.u32 %v2014, 7
    %v2016 = vsub.s32 %v1751, %v2015
    %v2017 = vrot.slane %v1524, %v2016
    %v2018 = vsel %vm1756, %v2017, %v2013
    %v2019 = vlaneseq
    %v2020 = vshrl.u32 %v2019, 7
    %v2021 = vsub.s32 %v1758, %v2020
    %v2022 = vrot.slane %v1525, %v2021
    %v2023 = vsel %vm1763, %v2022, %v2018
    %v2024 = vlaneseq
    %v2025 = vshrl.u32 %v2024, 7
    %v2026 = vsub.s32 %v1765, %v2025
    %v2027 = vrot.slane %v1526, %v2026
    %v2028 = vsel %vm1770, %v2027, %v2023
    %v2029 = vlaneseq
    %v2030 = vshrl.u32 %v2029, 7
    %v2031 = vsub.s32 %v1772, %v2030
    %v2032 = vrot.slane %v1527, %v2031
    %v2033 = vsel %vm1777, %v2032, %v2028
    %v2034 = vlaneseq
    %v2035 = vshrl.u32 %v2034, 7
    %v2036 = vsub.s32 %v1779, %v2035
    %v2037 = vrot.slane %v1528, %v2036
    %v2038 = vsel %vm1784, %v2037, %v2033
    %v2039 = vlaneseq
    %v2040 = vshrl.u32 %v2039, 7
    %v2041 = vsub.s32 %v1786, %v2040
    %v2042 = vrot.slane %v1529, %v2041
    %v2043 = vsel %vm1791, %v2042, %v2038
    %v2044 = vlaneseq
    %v2045 = vshrl.u32 %v2044, 7
    %v2046 = vsub.s32 %v1793, %v2045
    %v2047 = vrot.slane %v1530, %v2046
    %v2048 = vsel %vm1798, %v2047, %v2043
    %v2049 = vlaneseq
    %v2050 = vshrl.u32 %v2049, 7
    %v2051 = vsub.s32 %v1800, %v2050
    %v2052 = vrot.slane %v1531, %v2051
    %v2053 = vsel %vm1805, %v2052, %v2048
    %v2054 = vlaneseq
    %v2055 = vshrl.u32 %v2054, 7
    %v2056 = vsub.s32 %v1807, %v2055
    %v2057 = vrot.slane %v1532, %v2056
    %v2058 = vsel %vm1812, %v2057, %v2053
    %v2059 = vlaneseq
    %v2060 = vshrl.u32 %v2059, 7
    %v2061 = vsub.s32 %v1814, %v2060
    %v2062 = vrot.slane %v1533, %v2061
    %v2063 = vsel %vm1819, %v2062, %v2058
    %v2064 = vlaneseq
    %v2065 = vshrl.u32 %v2064, 7
    %v2066 = vsub.s32 %v1821, %v2065
    %v2067 = vrot.slane %v1534, %v2066
    %v2068 = vsel %vm1826, %v2067, %v2063
    %v2069 = vlaneseq
    %v2070 = vshrl.u32 %v2069, 7
    %v2071 = vsub.s32 %v1828, %v2070
    %v2072 = vrot.slane %v1535, %v2071
    %v2073 = vsel %vm1833, %v2072, %v2068
    %v2074 = vlaneseq
    %v2075 = vshrl.u32 %v2074, 7
    %v2076 = vsub.s32 %v1835, %v2075
    %v2077 = vrot.slane %v1536, %v2076
    %v2078 = vsel %vm1840, %v2077, %v2073
    %v2079 = vlaneseq
    %v2080 = vshrl.u32 %v2079, 7
    %v2081 = vsub.s32 %v1732, %v2080
    %v2082 = vrot.slane %v1537, %v2081
    %v2083 = vlaneseq
    %v2084 = vshrl.u32 %v2083, 7
    %v2085 = vsub.s32 %v1737, %v2084
    %v2086 = vrot.slane %v1538, %v2085
    %v2087 = vsel %vm1742, %v2086, %v2082
    %v2088 = vlaneseq
    %v2089 = vshrl.u32 %v2088, 7
    %v2090 = vsub.s32 %v1744, %v2089
    %v2091 = vrot.slane %v1539, %v2090
    %v2092 = vsel %vm1749, %v2091, %v2087
    %v2093 = vlaneseq
    %v2094 = vshrl.u32 %v2093, 7
    %v2095 = vsub.s32 %v1751, %v2094
    %v2096 = vrot.slane %v1540, %v2095
    %v2097 = vsel %vm1756, %v2096, %v2092
    %v2098 = vlaneseq
    %v2099 = vshrl.u32 %v2098, 7
    %v2100 = vsub.s32 %v1758, %v2099
    %v2101 = vrot.slane %v1541, %v2100
    %v2102 = vsel %vm1763, %v2101, %v2097
    %v2103 = vlaneseq
    %v2104 = vshrl.u32 %v2103, 7
    %v2105 = vsub.s32 %v1765, %v2104
    %v2106 = vrot.slane %v1542, %v2105
    %v2107 = vsel %vm1770, %v2106, %v2102
    %v2108 = vlaneseq
    %v2109 = vshrl.u32 %v2108, 7
    %v2110 = vsub.s32 %v1772, %v2109
    %v2111 = vrot.slane %v1543, %v2110
    %v2112 = vsel %vm1777, %v2111, %v2107
    %v2113 = vlaneseq
    %v2114 = vshrl.u32 %v2113, 7
    %v2115 = vsub.s32 %v1779, %v2114
    %v2116 = vrot.slane %v1544, %v2115
    %v2117 = vsel %vm1784, %v2116, %v2112
    %v2118 = vlaneseq
    %v2119 = vshrl.u32 %v2118, 7
    %v2120 = vsub.s32 %v1786, %v2119
    %v2121 = vrot.slane %v1545, %v2120
    %v2122 = vsel %vm1791, %v2121, %v2117
    %v2123 = vlaneseq
    %v2124 = vshrl.u32 %v2123, 7
    %v2125 = vsub.s32 %v1793, %v2124
    %v2126 = vrot.slane %v1546, %v2125
    %v2127 = vsel %vm1798, %v2126, %v2122
    %v2128 = vlaneseq
    %v2129 = vshrl.u32 %v2128, 7
    %v2130 = vsub.s32 %v1800, %v2129
    %v2131 = vrot.slane %v1547, %v2130
    %v2132 = vsel %vm1805, %v2131, %v2127
    %v2133 = vlaneseq
    %v2134 = vshrl.u32 %v2133, 7
    %v2135 = vsub.s32 %v1807, %v2134
    %v2136 = vrot.slane %v1548, %v2135
    %v2137 = vsel %vm1812, %v2136, %v2132
    %v2138 = vlaneseq
    %v2139 = vshrl.u32 %v2138, 7
    %v2140 = vsub.s32 %v1814, %v2139
    %v2141 = vrot.slane %v1549, %v2140
    %v2142 = vsel %vm1819, %v2141, %v2137
    %v2143 = vlaneseq
    %v2144 = vshrl.u32 %v2143, 7
    %v2145 = vsub.s32 %v1821, %v2144
    %v2146 = vrot.slane %v1550, %v2145
    %v2147 = vsel %vm1826, %v2146, %v2142
    %v2148 = vlaneseq
    %v2149 = vshrl.u32 %v2148, 7
    %v2150 = vsub.s32 %v1828, %v2149
    %v2151 = vrot.slane %v1551, %v2150
    %v2152 = vsel %vm1833, %v2151, %v2147
    %v2153 = vlaneseq
    %v2154 = vshrl.u32 %v2153, 7
    %v2155 = vsub.s32 %v1835, %v2154
    %v2156 = vrot.slane %v1552, %v2155
    %v2157 = vsel %vm1840, %v2156, %v2152
    %v2158 = vlaneseq
    %v2159 = vshrl.u32 %v2158, 7
    %v2160 = vsub.s32 %v1732, %v2159
    %v2161 = vrot.slane %v1553, %v2160
    %v2162 = vlaneseq
    %v2163 = vshrl.u32 %v2162, 7
    %v2164 = vsub.s32 %v1737, %v2163
    %v2165 = vrot.slane %v1554, %v2164
    %v2166 = vsel %vm1742, %v2165, %v2161
    %v2167 = vlaneseq
    %v2168 = vshrl.u32 %v2167, 7
    %v2169 = vsub.s32 %v1744, %v2168
    %v2170 = vrot.slane %v1555, %v2169
    %v2171 = vsel %vm1749, %v2170, %v2166
    %v2172 = vlaneseq
    %v2173 = vshrl.u32 %v2172, 7
    %v2174 = vsub.s32 %v1751, %v2173
    %v2175 = vrot.slane %v1556, %v2174
    %v2176 = vsel %vm1756, %v2175, %v2171
    %v2177 = vlaneseq
    %v2178 = vshrl.u32 %v2177, 7
    %v2179 = vsub.s32 %v1758, %v2178
    %v2180 = vrot.slane %v1557, %v2179
    %v2181 = vsel %vm1763, %v2180, %v2176
    %v2182 = vlaneseq
    %v2183 = vshrl.u32 %v2182, 7
    %v2184 = vsub.s32 %v1765, %v2183
    %v2185 = vrot.slane %v1558, %v2184
    %v2186 = vsel %vm1770, %v2185, %v2181
    %v2187 = vlaneseq
    %v2188 = vshrl.u32 %v2187, 7
    %v2189 = vsub.s32 %v1772, %v2188
    %v2190 = vrot.slane %v1559, %v2189
    %v2191 = vsel %vm1777, %v2190, %v2186
    %v2192 = vlaneseq
    %v2193 = vshrl.u32 %v2192, 7
    %v2194 = vsub.s32 %v1779, %v2193
    %v2195 = vrot.slane %v1560, %v2194
    %v2196 = vsel %vm1784, %v2195, %v2191
    %v2197 = vlaneseq
    %v2198 = vshrl.u32 %v2197, 7
    %v2199 = vsub.s32 %v1786, %v2198
    %v2200 = vrot.slane %v1561, %v2199
    %v2201 = vsel %vm1791, %v2200, %v2196
    %v2202 = vlaneseq
    %v2203 = vshrl.u32 %v2202, 7
    %v2204 = vsub.s32 %v1793, %v2203
    %v2205 = vrot.slane %v1562, %v2204
    %v2206 = vsel %vm1798, %v2205, %v2201
    %v2207 = vlaneseq
    %v2208 = vshrl.u32 %v2207, 7
    %v2209 = vsub.s32 %v1800, %v2208
    %v2210 = vrot.slane %v1563, %v2209
    %v2211 = vsel %vm1805, %v2210, %v2206
    %v2212 = vlaneseq
    %v2213 = vshrl.u32 %v2212, 7
    %v2214 = vsub.s32 %v1807, %v2213
    %v2215 = vrot.slane %v1564, %v2214
    %v2216 = vsel %vm1812, %v2215, %v2211
    %v2217 = vlaneseq
    %v2218 = vshrl.u32 %v2217, 7
    %v2219 = vsub.s32 %v1814, %v2218
    %v2220 = vrot.slane %v1565, %v2219
    %v2221 = vsel %vm1819, %v2220, %v2216
    %v2222 = vlaneseq
    %v2223 = vshrl.u32 %v2222, 7
    %v2224 = vsub.s32 %v1821, %v2223
    %v2225 = vrot.slane %v1566, %v2224
    %v2226 = vsel %vm1826, %v2225, %v2221
    %v2227 = vlaneseq
    %v2228 = vshrl.u32 %v2227, 7
    %v2229 = vsub.s32 %v1828, %v2228
    %v2230 = vrot.slane %v1567, %v2229
    %v2231 = vsel %vm1833, %v2230, %v2226
    %v2232 = vlaneseq
    %v2233 = vshrl.u32 %v2232, 7
    %v2234 = vsub.s32 %v1835, %v2233
    %v2235 = vrot.slane %v1568, %v2234
    %v2236 = vsel %vm1840, %v2235, %v2231
    %v2237 = vlaneseq
    %v2238 = vshrl.u32 %v2237, 7
    %v2239 = vsub.s32 %v1732, %v2238
    %v2240 = vrot.slane %v1569, %v2239
    %v2241 = vlaneseq
    %v2242 = vshrl.u32 %v2241, 7
    %v2243 = vsub.s32 %v1737, %v2242
    %v2244 = vrot.slane %v1570, %v2243
    %v2245 = vsel %vm1742, %v2244, %v2240
    %v2246 = vlaneseq
    %v2247 = vshrl.u32 %v2246, 7
    %v2248 = vsub.s32 %v1744, %v2247
    %v2249 = vrot.slane %v1571, %v2248
    %v2250 = vsel %vm1749, %v2249, %v2245
    %v2251 = vlaneseq
    %v2252 = vshrl.u32 %v2251, 7
    %v2253 = vsub.s32 %v1751, %v2252
    %v2254 = vrot.slane %v1572, %v2253
    %v2255 = vsel %vm1756, %v2254, %v2250
    %v2256 = vlaneseq
    %v2257 = vshrl.u32 %v2256, 7
    %v2258 = vsub.s32 %v1758, %v2257
    %v2259 = vrot.slane %v1573, %v2258
    %v2260 = vsel %vm1763, %v2259, %v2255
    %v2261 = vlaneseq
    %v2262 = vshrl.u32 %v2261, 7
    %v2263 = vsub.s32 %v1765, %v2262
    %v2264 = vrot.slane %v1574, %v2263
    %v2265 = vsel %vm1770, %v2264, %v2260
    %v2266 = vlaneseq
    %v2267 = vshrl.u32 %v2266, 7
    %v2268 = vsub.s32 %v1772, %v2267
    %v2269 = vrot.slane %v1575, %v2268
    %v2270 = vsel %vm1777, %v2269, %v2265
    %v2271 = vlaneseq
    %v2272 = vshrl.u32 %v2271, 7
    %v2273 = vsub.s32 %v1779, %v2272
    %v2274 = vrot.slane %v1576, %v2273
    %v2275 = vsel %vm1784, %v2274, %v2270
    %v2276 = vlaneseq
    %v2277 = vshrl.u32 %v2276, 7
    %v2278 = vsub.s32 %v1786, %v2277
    %v2279 = vrot.slane %v1577, %v2278
    %v2280 = vsel %vm1791, %v2279, %v2275
    %v2281 = vlaneseq
    %v2282 = vshrl.u32 %v2281, 7
    %v2283 = vsub.s32 %v1793, %v2282
    %v2284 = vrot.slane %v1578, %v2283
    %v2285 = vsel %vm1798, %v2284, %v2280
    %v2286 = vlaneseq
    %v2287 = vshrl.u32 %v2286, 7
    %v2288 = vsub.s32 %v1800, %v2287
    %v2289 = vrot.slane %v1579, %v2288
    %v2290 = vsel %vm1805, %v2289, %v2285
    %v2291 = vlaneseq
    %v2292 = vshrl.u32 %v2291, 7
    %v2293 = vsub.s32 %v1807, %v2292
    %v2294 = vrot.slane %v1580, %v2293
    %v2295 = vsel %vm1812, %v2294, %v2290
    %v2296 = vlaneseq
    %v2297 = vshrl.u32 %v2296, 7
    %v2298 = vsub.s32 %v1814, %v2297
    %v2299 = vrot.slane %v1581, %v2298
    %v2300 = vsel %vm1819, %v2299, %v2295
    %v2301 = vlaneseq
    %v2302 = vshrl.u32 %v2301, 7
    %v2303 = vsub.s32 %v1821, %v2302
    %v2304 = vrot.slane %v1582, %v2303
    %v2305 = vsel %vm1826, %v2304, %v2300
    %v2306 = vlaneseq
    %v2307 = vshrl.u32 %v2306, 7
    %v2308 = vsub.s32 %v1828, %v2307
    %v2309 = vrot.slane %v1583, %v2308
    %v2310 = vsel %vm1833, %v2309, %v2305
    %v2311 = vlaneseq
    %v2312 = vshrl.u32 %v2311, 7
    %v2313 = vsub.s32 %v1835, %v2312
    %v2314 = vrot.slane %v1584, %v2313
    %v2315 = vsel %vm1840, %v2314, %v2310
    %v2316 = vlaneseq
    %v2317 = vshrl.u32 %v2316, 7
    %v2318 = vsub.s32 %v1732, %v2317
    %v2319 = vrot.slane %v1585, %v2318
    %v2320 = vlaneseq
    %v2321 = vshrl.u32 %v2320, 7
    %v2322 = vsub.s32 %v1737, %v2321
    %v2323 = vrot.slane %v1586, %v2322
    %v2324 = vsel %vm1742, %v2323, %v2319
    %v2325 = vlaneseq
    %v2326 = vshrl.u32 %v2325, 7
    %v2327 = vsub.s32 %v1744, %v2326
    %v2328 = vrot.slane %v1587, %v2327
    %v2329 = vsel %vm1749, %v2328, %v2324
    %v2330 = vlaneseq
    %v2331 = vshrl.u32 %v2330, 7
    %v2332 = vsub.s32 %v1751, %v2331
    %v2333 = vrot.slane %v1588, %v2332
    %v2334 = vsel %vm1756, %v2333, %v2329
    %v2335 = vlaneseq
    %v2336 = vshrl.u32 %v2335, 7
    %v2337 = vsub.s32 %v1758, %v2336
    %v2338 = vrot.slane %v1589, %v2337
    %v2339 = vsel %vm1763, %v2338, %v2334
    %v2340 = vlaneseq
    %v2341 = vshrl.u32 %v2340, 7
    %v2342 = vsub.s32 %v1765, %v2341
    %v2343 = vrot.slane %v1590, %v2342
    %v2344 = vsel %vm1770, %v2343, %v2339
    %v2345 = vlaneseq
    %v2346 = vshrl.u32 %v2345, 7
    %v2347 = vsub.s32 %v1772, %v2346
    %v2348 = vrot.slane %v1591, %v2347
    %v2349 = vsel %vm1777, %v2348, %v2344
    %v2350 = vlaneseq
    %v2351 = vshrl.u32 %v2350, 7
    %v2352 = vsub.s32 %v1779, %v2351
    %v2353 = vrot.slane %v1592, %v2352
    %v2354 = vsel %vm1784, %v2353, %v2349
    %v2355 = vlaneseq
    %v2356 = vshrl.u32 %v2355, 7
    %v2357 = vsub.s32 %v1786, %v2356
    %v2358 = vrot.slane %v1593, %v2357
    %v2359 = vsel %vm1791, %v2358, %v2354
    %v2360 = vlaneseq
    %v2361 = vshrl.u32 %v2360, 7
    %v2362 = vsub.s32 %v1793, %v2361
    %v2363 = vrot.slane %v1594, %v2362
    %v2364 = vsel %vm1798, %v2363, %v2359
    %v2365 = vlaneseq
    %v2366 = vshrl.u32 %v2365, 7
    %v2367 = vsub.s32 %v1800, %v2366
    %v2368 = vrot.slane %v1595, %v2367
    %v2369 = vsel %vm1805, %v2368, %v2364
    %v2370 = vlaneseq
    %v2371 = vshrl.u32 %v2370, 7
    %v2372 = vsub.s32 %v1807, %v2371
    %v2373 = vrot.slane %v1596, %v2372
    %v2374 = vsel %vm1812, %v2373, %v2369
    %v2375 = vlaneseq
    %v2376 = vshrl.u32 %v2375, 7
    %v2377 = vsub.s32 %v1814, %v2376
    %v2378 = vrot.slane %v1597, %v2377
    %v2379 = vsel %vm1819, %v2378, %v2374
    %v2380 = vlaneseq
    %v2381 = vshrl.u32 %v2380, 7
    %v2382 = vsub.s32 %v1821, %v2381
    %v2383 = vrot.slane %v1598, %v2382
    %v2384 = vsel %vm1826, %v2383, %v2379
    %v2385 = vlaneseq
    %v2386 = vshrl.u32 %v2385, 7
    %v2387 = vsub.s32 %v1828, %v2386
    %v2388 = vrot.slane %v1599, %v2387
    %v2389 = vsel %vm1833, %v2388, %v2384
    %v2390 = vlaneseq
    %v2391 = vshrl.u32 %v2390, 7
    %v2392 = vsub.s32 %v1835, %v2391
    %v2393 = vrot.slane %v1600, %v2392
    %v2394 = vsel %vm1840, %v2393, %v2389
    %vm2395 = vcmask 1041409
    %v2396 = vsel %vm2395, %v1920, %v1841
    %vm2397 = vcmask 1042434
    %v2398 = vsel %vm2397, %v1999, %v2396
    %vm2399 = vcmask 1043459
    %v2400 = vsel %vm2399, %v2078, %v2398
    %vm2401 = vcmask 1044484
    %v2402 = vsel %vm2401, %v2157, %v2400
    %vm2403 = vcmask 1045509
    %v2404 = vsel %vm2403, %v2236, %v2402
    %vm2405 = vcmask 1046534
    %v2406 = vsel %vm2405, %v2315, %v2404
    %vm2407 = vcmask 1047559
    %v2408 = vsel %vm2407, %v2394, %v2406
    %v2410 = vsel %vm1602, -1e+30, %v2408
    %2411 = vmax.xlane.f32.xlu0 %v2410
    %v2412 = vpop.xlane.xlu0 %2411
    %v2413 = vsub.f32 %v2410, %v2412
    %v2414 = vmul.f32 %v2413, 1.442695
    %v2415 = vpow.pop %v2414
    %2416 = vadd.xlane.f32.xlu0 %v2415
    %v2417 = vpop.xlane.xlu0 %2416
    %v2418 = vmax.f32 %v2417, 1e-30
    %v2419 = vrcp.pop %v2418
    %v2420 = vmul.f32 %v2418, %v2419
    %v2421 = vsub.f32 2.0, %v2420
    %v2422 = vmul.f32 %v2419, %v2421
    %v2423 = vmul.f32 %v2415, %v2422
    %2424 = vst [vmem:[#allocation11] sm:$0xff] %v2423
    %v2425 = vlaneseq
    %v2426 = vshrl.u32 %v2425, 7
    %v2427 = vsub.s32 0, %v2426
    %v2428 = vrot.slane %v2423, %v2427
    %2430 = vbcast.lane.b32.xlu0 %v2428, 256
    %v2431 = vpop.permute.xlu0 %2430
    %s2433 = sor.u32 256, 8
    %2434 = vbcast.lane.b32.xlu0 %v2428, %s2433
    %v2435 = vpop.permute.xlu0 %2434
    %s2437 = sor.u32 256, 16
    %2438 = vbcast.lane.b32.xlu0 %v2428, %s2437
    %v2439 = vpop.permute.xlu0 %2438
    %s2441 = sor.u32 256, 24
    %2442 = vbcast.lane.b32.xlu0 %v2428, %s2441
    %v2443 = vpop.permute.xlu0 %2442
    %s2445 = sor.u32 256, 32
    %2446 = vbcast.lane.b32.xlu0 %v2428, %s2445
    %v2447 = vpop.permute.xlu0 %2446
    %s2449 = sor.u32 256, 40
    %2450 = vbcast.lane.b32.xlu0 %v2428, %s2449
    %v2451 = vpop.permute.xlu0 %2450
    %s2453 = sor.u32 256, 48
    %2454 = vbcast.lane.b32.xlu0 %v2428, %s2453
    %v2455 = vpop.permute.xlu0 %2454
    %s2457 = sor.u32 256, 56
    %2458 = vbcast.lane.b32.xlu0 %v2428, %s2457
    %v2459 = vpop.permute.xlu0 %2458
    %s2461 = sor.u32 256, 64
    %2462 = vbcast.lane.b32.xlu0 %v2428, %s2461
    %v2463 = vpop.permute.xlu0 %2462
    %s2465 = sor.u32 256, 72
    %2466 = vbcast.lane.b32.xlu0 %v2428, %s2465
    %v2467 = vpop.permute.xlu0 %2466
    %s2469 = sor.u32 256, 80
    %2470 = vbcast.lane.b32.xlu0 %v2428, %s2469
    %v2471 = vpop.permute.xlu0 %2470
    %s2473 = sor.u32 256, 88
    %2474 = vbcast.lane.b32.xlu0 %v2428, %s2473
    %v2475 = vpop.permute.xlu0 %2474
    %s2477 = sor.u32 256, 96
    %2478 = vbcast.lane.b32.xlu0 %v2428, %s2477
    %v2479 = vpop.permute.xlu0 %2478
    %s2481 = sor.u32 256, 104
    %2482 = vbcast.lane.b32.xlu0 %v2428, %s2481
    %v2483 = vpop.permute.xlu0 %2482
    %s2485 = sor.u32 256, 112
    %2486 = vbcast.lane.b32.xlu0 %v2428, %s2485
    %v2487 = vpop.permute.xlu0 %2486
    %s2489 = sor.u32 256, 120
    %2490 = vbcast.lane.b32.xlu0 %v2428, %s2489
    %v2491 = vpop.permute.xlu0 %2490
    %v2492 = vlaneseq
    %v2493 = vshrl.u32 %v2492, 7
    %v2494 = vsub.s32 1, %v2493
    %v2495 = vrot.slane %v2423, %v2494
    %2497 = vbcast.lane.b32.xlu0 %v2495, 256
    %v2498 = vpop.permute.xlu0 %2497
    %s2500 = sor.u32 256, 8
    %2501 = vbcast.lane.b32.xlu0 %v2495, %s2500
    %v2502 = vpop.permute.xlu0 %2501
    %s2504 = sor.u32 256, 16
    %2505 = vbcast.lane.b32.xlu0 %v2495, %s2504
    %v2506 = vpop.permute.xlu0 %2505
    %s2508 = sor.u32 256, 24
    %2509 = vbcast.lane.b32.xlu0 %v2495, %s2508
    %v2510 = vpop.permute.xlu0 %2509
    %s2512 = sor.u32 256, 32
    %2513 = vbcast.lane.b32.xlu0 %v2495, %s2512
    %v2514 = vpop.permute.xlu0 %2513
    %s2516 = sor.u32 256, 40
    %2517 = vbcast.lane.b32.xlu0 %v2495, %s2516
    %v2518 = vpop.permute.xlu0 %2517
    %s2520 = sor.u32 256, 48
    %2521 = vbcast.lane.b32.xlu0 %v2495, %s2520
    %v2522 = vpop.permute.xlu0 %2521
    %s2524 = sor.u32 256, 56
    %2525 = vbcast.lane.b32.xlu0 %v2495, %s2524
    %v2526 = vpop.permute.xlu0 %2525
    %s2528 = sor.u32 256, 64
    %2529 = vbcast.lane.b32.xlu0 %v2495, %s2528
    %v2530 = vpop.permute.xlu0 %2529
    %s2532 = sor.u32 256, 72
    %2533 = vbcast.lane.b32.xlu0 %v2495, %s2532
    %v2534 = vpop.permute.xlu0 %2533
    %s2536 = sor.u32 256, 80
    %2537 = vbcast.lane.b32.xlu0 %v2495, %s2536
    %v2538 = vpop.permute.xlu0 %2537
    %s2540 = sor.u32 256, 88
    %2541 = vbcast.lane.b32.xlu0 %v2495, %s2540
    %v2542 = vpop.permute.xlu0 %2541
    %s2544 = sor.u32 256, 96
    %2545 = vbcast.lane.b32.xlu0 %v2495, %s2544
    %v2546 = vpop.permute.xlu0 %2545
    %s2548 = sor.u32 256, 104
    %2549 = vbcast.lane.b32.xlu0 %v2495, %s2548
    %v2550 = vpop.permute.xlu0 %2549
    %s2552 = sor.u32 256, 112
    %2553 = vbcast.lane.b32.xlu0 %v2495, %s2552
    %v2554 = vpop.permute.xlu0 %2553
    %s2556 = sor.u32 256, 120
    %2557 = vbcast.lane.b32.xlu0 %v2495, %s2556
    %v2558 = vpop.permute.xlu0 %2557
    %v2559 = vlaneseq
    %v2560 = vshrl.u32 %v2559, 7
    %v2561 = vsub.s32 2, %v2560
    %v2562 = vrot.slane %v2423, %v2561
    %2564 = vbcast.lane.b32.xlu0 %v2562, 256
    %v2565 = vpop.permute.xlu0 %2564
    %s2567 = sor.u32 256, 8
    %2568 = vbcast.lane.b32.xlu0 %v2562, %s2567
    %v2569 = vpop.permute.xlu0 %2568
    %s2571 = sor.u32 256, 16
    %2572 = vbcast.lane.b32.xlu0 %v2562, %s2571
    %v2573 = vpop.permute.xlu0 %2572
    %s2575 = sor.u32 256, 24
    %2576 = vbcast.lane.b32.xlu0 %v2562, %s2575
    %v2577 = vpop.permute.xlu0 %2576
    %s2579 = sor.u32 256, 32
    %2580 = vbcast.lane.b32.xlu0 %v2562, %s2579
    %v2581 = vpop.permute.xlu0 %2580
    %s2583 = sor.u32 256, 40
    %2584 = vbcast.lane.b32.xlu0 %v2562, %s2583
    %v2585 = vpop.permute.xlu0 %2584
    %s2587 = sor.u32 256, 48
    %2588 = vbcast.lane.b32.xlu0 %v2562, %s2587
    %v2589 = vpop.permute.xlu0 %2588
    %s2591 = sor.u32 256, 56
    %2592 = vbcast.lane.b32.xlu0 %v2562, %s2591
    %v2593 = vpop.permute.xlu0 %2592
    %s2595 = sor.u32 256, 64
    %2596 = vbcast.lane.b32.xlu0 %v2562, %s2595
    %v2597 = vpop.permute.xlu0 %2596
    %s2599 = sor.u32 256, 72
    %2600 = vbcast.lane.b32.xlu0 %v2562, %s2599
    %v2601 = vpop.permute.xlu0 %2600
    %s2603 = sor.u32 256, 80
    %2604 = vbcast.lane.b32.xlu0 %v2562, %s2603
    %v2605 = vpop.permute.xlu0 %2604
    %s2607 = sor.u32 256, 88
    %2608 = vbcast.lane.b32.xlu0 %v2562, %s2607
    %v2609 = vpop.permute.xlu0 %2608
    %s2611 = sor.u32 256, 96
    %2612 = vbcast.lane.b32.xlu0 %v2562, %s2611
    %v2613 = vpop.permute.xlu0 %2612
    %s2615 = sor.u32 256, 104
    %2616 = vbcast.lane.b32.xlu0 %v2562, %s2615
    %v2617 = vpop.permute.xlu0 %2616
    %s2619 = sor.u32 256, 112
    %2620 = vbcast.lane.b32.xlu0 %v2562, %s2619
    %v2621 = vpop.permute.xlu0 %2620
    %s2623 = sor.u32 256, 120
    %2624 = vbcast.lane.b32.xlu0 %v2562, %s2623
    %v2625 = vpop.permute.xlu0 %2624
    %v2626 = vlaneseq
    %v2627 = vshrl.u32 %v2626, 7
    %v2628 = vsub.s32 3, %v2627
    %v2629 = vrot.slane %v2423, %v2628
    %2631 = vbcast.lane.b32.xlu0 %v2629, 256
    %v2632 = vpop.permute.xlu0 %2631
    %s2634 = sor.u32 256, 8
    %2635 = vbcast.lane.b32.xlu0 %v2629, %s2634
    %v2636 = vpop.permute.xlu0 %2635
    %s2638 = sor.u32 256, 16
    %2639 = vbcast.lane.b32.xlu0 %v2629, %s2638
    %v2640 = vpop.permute.xlu0 %2639
    %s2642 = sor.u32 256, 24
    %2643 = vbcast.lane.b32.xlu0 %v2629, %s2642
    %v2644 = vpop.permute.xlu0 %2643
    %s2646 = sor.u32 256, 32
    %2647 = vbcast.lane.b32.xlu0 %v2629, %s2646
    %v2648 = vpop.permute.xlu0 %2647
    %s2650 = sor.u32 256, 40
    %2651 = vbcast.lane.b32.xlu0 %v2629, %s2650
    %v2652 = vpop.permute.xlu0 %2651
    %s2654 = sor.u32 256, 48
    %2655 = vbcast.lane.b32.xlu0 %v2629, %s2654
    %v2656 = vpop.permute.xlu0 %2655
    %s2658 = sor.u32 256, 56
    %2659 = vbcast.lane.b32.xlu0 %v2629, %s2658
    %v2660 = vpop.permute.xlu0 %2659
    %s2662 = sor.u32 256, 64
    %2663 = vbcast.lane.b32.xlu0 %v2629, %s2662
    %v2664 = vpop.permute.xlu0 %2663
    %s2666 = sor.u32 256, 72
    %2667 = vbcast.lane.b32.xlu0 %v2629, %s2666
    %v2668 = vpop.permute.xlu0 %2667
    %s2670 = sor.u32 256, 80
    %2671 = vbcast.lane.b32.xlu0 %v2629, %s2670
    %v2672 = vpop.permute.xlu0 %2671
    %s2674 = sor.u32 256, 88
    %2675 = vbcast.lane.b32.xlu0 %v2629, %s2674
    %v2676 = vpop.permute.xlu0 %2675
    %s2678 = sor.u32 256, 96
    %2679 = vbcast.lane.b32.xlu0 %v2629, %s2678
    %v2680 = vpop.permute.xlu0 %2679
    %s2682 = sor.u32 256, 104
    %2683 = vbcast.lane.b32.xlu0 %v2629, %s2682
    %v2684 = vpop.permute.xlu0 %2683
    %s2686 = sor.u32 256, 112
    %2687 = vbcast.lane.b32.xlu0 %v2629, %s2686
    %v2688 = vpop.permute.xlu0 %2687
    %s2690 = sor.u32 256, 120
    %2691 = vbcast.lane.b32.xlu0 %v2629, %s2690
    %v2692 = vpop.permute.xlu0 %2691
    %v2693 = vlaneseq
    %v2694 = vshrl.u32 %v2693, 7
    %v2695 = vsub.s32 4, %v2694
    %v2696 = vrot.slane %v2423, %v2695
    %2698 = vbcast.lane.b32.xlu0 %v2696, 256
    %v2699 = vpop.permute.xlu0 %2698
    %s2701 = sor.u32 256, 8
    %2702 = vbcast.lane.b32.xlu0 %v2696, %s2701
    %v2703 = vpop.permute.xlu0 %2702
    %s2705 = sor.u32 256, 16
    %2706 = vbcast.lane.b32.xlu0 %v2696, %s2705
    %v2707 = vpop.permute.xlu0 %2706
    %s2709 = sor.u32 256, 24
    %2710 = vbcast.lane.b32.xlu0 %v2696, %s2709
    %v2711 = vpop.permute.xlu0 %2710
    %s2713 = sor.u32 256, 32
    %2714 = vbcast.lane.b32.xlu0 %v2696, %s2713
    %v2715 = vpop.permute.xlu0 %2714
    %s2717 = sor.u32 256, 40
    %2718 = vbcast.lane.b32.xlu0 %v2696, %s2717
    %v2719 = vpop.permute.xlu0 %2718
    %s2721 = sor.u32 256, 48
    %2722 = vbcast.lane.b32.xlu0 %v2696, %s2721
    %v2723 = vpop.permute.xlu0 %2722
    %s2725 = sor.u32 256, 56
    %2726 = vbcast.lane.b32.xlu0 %v2696, %s2725
    %v2727 = vpop.permute.xlu0 %2726
    %s2729 = sor.u32 256, 64
    %2730 = vbcast.lane.b32.xlu0 %v2696, %s2729
    %v2731 = vpop.permute.xlu0 %2730
    %s2733 = sor.u32 256, 72
    %2734 = vbcast.lane.b32.xlu0 %v2696, %s2733
    %v2735 = vpop.permute.xlu0 %2734
    %s2737 = sor.u32 256, 80
    %2738 = vbcast.lane.b32.xlu0 %v2696, %s2737
    %v2739 = vpop.permute.xlu0 %2738
    %s2741 = sor.u32 256, 88
    %2742 = vbcast.lane.b32.xlu0 %v2696, %s2741
    %v2743 = vpop.permute.xlu0 %2742
    %s2745 = sor.u32 256, 96
    %2746 = vbcast.lane.b32.xlu0 %v2696, %s2745
    %v2747 = vpop.permute.xlu0 %2746
    %s2749 = sor.u32 256, 104
    %2750 = vbcast.lane.b32.xlu0 %v2696, %s2749
    %v2751 = vpop.permute.xlu0 %2750
    %s2753 = sor.u32 256, 112
    %2754 = vbcast.lane.b32.xlu0 %v2696, %s2753
    %v2755 = vpop.permute.xlu0 %2754
    %s2757 = sor.u32 256, 120
    %2758 = vbcast.lane.b32.xlu0 %v2696, %s2757
    %v2759 = vpop.permute.xlu0 %2758
    %v2760 = vlaneseq
    %v2761 = vshrl.u32 %v2760, 7
    %v2762 = vsub.s32 5, %v2761
    %v2763 = vrot.slane %v2423, %v2762
    %2765 = vbcast.lane.b32.xlu0 %v2763, 256
    %v2766 = vpop.permute.xlu0 %2765
    %s2768 = sor.u32 256, 8
    %2769 = vbcast.lane.b32.xlu0 %v2763, %s2768
    %v2770 = vpop.permute.xlu0 %2769
    %s2772 = sor.u32 256, 16
    %2773 = vbcast.lane.b32.xlu0 %v2763, %s2772
    %v2774 = vpop.permute.xlu0 %2773
    %s2776 = sor.u32 256, 24
    %2777 = vbcast.lane.b32.xlu0 %v2763, %s2776
    %v2778 = vpop.permute.xlu0 %2777
    %s2780 = sor.u32 256, 32
    %2781 = vbcast.lane.b32.xlu0 %v2763, %s2780
    %v2782 = vpop.permute.xlu0 %2781
    %s2784 = sor.u32 256, 40
    %2785 = vbcast.lane.b32.xlu0 %v2763, %s2784
    %v2786 = vpop.permute.xlu0 %2785
    %s2788 = sor.u32 256, 48
    %2789 = vbcast.lane.b32.xlu0 %v2763, %s2788
    %v2790 = vpop.permute.xlu0 %2789
    %s2792 = sor.u32 256, 56
    %2793 = vbcast.lane.b32.xlu0 %v2763, %s2792
    %v2794 = vpop.permute.xlu0 %2793
    %s2796 = sor.u32 256, 64
    %2797 = vbcast.lane.b32.xlu0 %v2763, %s2796
    %v2798 = vpop.permute.xlu0 %2797
    %s2800 = sor.u32 256, 72
    %2801 = vbcast.lane.b32.xlu0 %v2763, %s2800
    %v2802 = vpop.permute.xlu0 %2801
    %s2804 = sor.u32 256, 80
    %2805 = vbcast.lane.b32.xlu0 %v2763, %s2804
    %v2806 = vpop.permute.xlu0 %2805
    %s2808 = sor.u32 256, 88
    %2809 = vbcast.lane.b32.xlu0 %v2763, %s2808
    %v2810 = vpop.permute.xlu0 %2809
    %s2812 = sor.u32 256, 96
    %2813 = vbcast.lane.b32.xlu0 %v2763, %s2812
    %v2814 = vpop.permute.xlu0 %2813
    %s2816 = sor.u32 256, 104
    %2817 = vbcast.lane.b32.xlu0 %v2763, %s2816
    %v2818 = vpop.permute.xlu0 %2817
    %s2820 = sor.u32 256, 112
    %2821 = vbcast.lane.b32.xlu0 %v2763, %s2820
    %v2822 = vpop.permute.xlu0 %2821
    %s2824 = sor.u32 256, 120
    %2825 = vbcast.lane.b32.xlu0 %v2763, %s2824
    %v2826 = vpop.permute.xlu0 %2825
    %v2827 = vlaneseq
    %v2828 = vshrl.u32 %v2827, 7
    %v2829 = vsub.s32 6, %v2828
    %v2830 = vrot.slane %v2423, %v2829
    %2832 = vbcast.lane.b32.xlu0 %v2830, 256
    %v2833 = vpop.permute.xlu0 %2832
    %s2835 = sor.u32 256, 8
    %2836 = vbcast.lane.b32.xlu0 %v2830, %s2835
    %v2837 = vpop.permute.xlu0 %2836
    %s2839 = sor.u32 256, 16
    %2840 = vbcast.lane.b32.xlu0 %v2830, %s2839
    %v2841 = vpop.permute.xlu0 %2840
    %s2843 = sor.u32 256, 24
    %2844 = vbcast.lane.b32.xlu0 %v2830, %s2843
    %v2845 = vpop.permute.xlu0 %2844
    %s2847 = sor.u32 256, 32
    %2848 = vbcast.lane.b32.xlu0 %v2830, %s2847
    %v2849 = vpop.permute.xlu0 %2848
    %s2851 = sor.u32 256, 40
    %2852 = vbcast.lane.b32.xlu0 %v2830, %s2851
    %v2853 = vpop.permute.xlu0 %2852
    %s2855 = sor.u32 256, 48
    %2856 = vbcast.lane.b32.xlu0 %v2830, %s2855
    %v2857 = vpop.permute.xlu0 %2856
    %s2859 = sor.u32 256, 56
    %2860 = vbcast.lane.b32.xlu0 %v2830, %s2859
    %v2861 = vpop.permute.xlu0 %2860
    %s2863 = sor.u32 256, 64
    %2864 = vbcast.lane.b32.xlu0 %v2830, %s2863
    %v2865 = vpop.permute.xlu0 %2864
    %s2867 = sor.u32 256, 72
    %2868 = vbcast.lane.b32.xlu0 %v2830, %s2867
    %v2869 = vpop.permute.xlu0 %2868
    %s2871 = sor.u32 256, 80
    %2872 = vbcast.lane.b32.xlu0 %v2830, %s2871
    %v2873 = vpop.permute.xlu0 %2872
    %s2875 = sor.u32 256, 88
    %2876 = vbcast.lane.b32.xlu0 %v2830, %s2875
    %v2877 = vpop.permute.xlu0 %2876
    %s2879 = sor.u32 256, 96
    %2880 = vbcast.lane.b32.xlu0 %v2830, %s2879
    %v2881 = vpop.permute.xlu0 %2880
    %s2883 = sor.u32 256, 104
    %2884 = vbcast.lane.b32.xlu0 %v2830, %s2883
    %v2885 = vpop.permute.xlu0 %2884
    %s2887 = sor.u32 256, 112
    %2888 = vbcast.lane.b32.xlu0 %v2830, %s2887
    %v2889 = vpop.permute.xlu0 %2888
    %s2891 = sor.u32 256, 120
    %2892 = vbcast.lane.b32.xlu0 %v2830, %s2891
    %v2893 = vpop.permute.xlu0 %2892
    %v2894 = vlaneseq
    %v2895 = vshrl.u32 %v2894, 7
    %v2896 = vsub.s32 7, %v2895
    %v2897 = vrot.slane %v2423, %v2896
    %2899 = vbcast.lane.b32.xlu0 %v2897, 256
    %v2900 = vpop.permute.xlu0 %2899
    %s2902 = sor.u32 256, 8
    %2903 = vbcast.lane.b32.xlu0 %v2897, %s2902
    %v2904 = vpop.permute.xlu0 %2903
    %s2906 = sor.u32 256, 16
    %2907 = vbcast.lane.b32.xlu0 %v2897, %s2906
    %v2908 = vpop.permute.xlu0 %2907
    %s2910 = sor.u32 256, 24
    %2911 = vbcast.lane.b32.xlu0 %v2897, %s2910
    %v2912 = vpop.permute.xlu0 %2911
    %s2914 = sor.u32 256, 32
    %2915 = vbcast.lane.b32.xlu0 %v2897, %s2914
    %v2916 = vpop.permute.xlu0 %2915
    %s2918 = sor.u32 256, 40
    %2919 = vbcast.lane.b32.xlu0 %v2897, %s2918
    %v2920 = vpop.permute.xlu0 %2919
    %s2922 = sor.u32 256, 48
    %2923 = vbcast.lane.b32.xlu0 %v2897, %s2922
    %v2924 = vpop.permute.xlu0 %2923
    %s2926 = sor.u32 256, 56
    %2927 = vbcast.lane.b32.xlu0 %v2897, %s2926
    %v2928 = vpop.permute.xlu0 %2927
    %s2930 = sor.u32 256, 64
    %2931 = vbcast.lane.b32.xlu0 %v2897, %s2930
    %v2932 = vpop.permute.xlu0 %2931
    %s2934 = sor.u32 256, 72
    %2935 = vbcast.lane.b32.xlu0 %v2897, %s2934
    %v2936 = vpop.permute.xlu0 %2935
    %s2938 = sor.u32 256, 80
    %2939 = vbcast.lane.b32.xlu0 %v2897, %s2938
    %v2940 = vpop.permute.xlu0 %2939
    %s2942 = sor.u32 256, 88
    %2943 = vbcast.lane.b32.xlu0 %v2897, %s2942
    %v2944 = vpop.permute.xlu0 %2943
    %s2946 = sor.u32 256, 96
    %2947 = vbcast.lane.b32.xlu0 %v2897, %s2946
    %v2948 = vpop.permute.xlu0 %2947
    %s2950 = sor.u32 256, 104
    %2951 = vbcast.lane.b32.xlu0 %v2897, %s2950
    %v2952 = vpop.permute.xlu0 %2951
    %s2954 = sor.u32 256, 112
    %2955 = vbcast.lane.b32.xlu0 %v2897, %s2954
    %v2956 = vpop.permute.xlu0 %2955
    %s2958 = sor.u32 256, 120
    %2959 = vbcast.lane.b32.xlu0 %v2897, %s2958
    %v2960 = vpop.permute.xlu0 %2959
    %v2961 = vmul.f32 %v2431, %v88
    %v2962 = vmul.f32 %v2435, %v89
    %v2963 = vmul.f32 %v2439, %v90
    %v2964 = vmul.f32 %v2443, %v91
    %v2965 = vmul.f32 %v2447, %v92
    %v2966 = vmul.f32 %v2451, %v93
    %v2967 = vmul.f32 %v2455, %v94
    %v2968 = vmul.f32 %v2459, %v95
    %v2969 = vmul.f32 %v2463, %v96
    %v2970 = vmul.f32 %v2467, %v97
    %v2971 = vmul.f32 %v2471, %v98
    %v2972 = vmul.f32 %v2475, %v99
    %v2973 = vmul.f32 %v2479, %v100
    %v2974 = vmul.f32 %v2483, %v101
    %v2975 = vmul.f32 %v2487, %v102
    %v2976 = vmul.f32 %v2491, %v103
    %v2977 = vmul.f32 %v2498, %v104
    %v2978 = vmul.f32 %v2502, %v105
    %v2979 = vmul.f32 %v2506, %v106
    %v2980 = vmul.f32 %v2510, %v107
    %v2981 = vmul.f32 %v2514, %v108
    %v2982 = vmul.f32 %v2518, %v109
    %v2983 = vmul.f32 %v2522, %v110
    %v2984 = vmul.f32 %v2526, %v111
    %v2985 = vmul.f32 %v2530, %v112
    %v2986 = vmul.f32 %v2534, %v113
    %v2987 = vmul.f32 %v2538, %v114
    %v2988 = vmul.f32 %v2542, %v115
    %v2989 = vmul.f32 %v2546, %v116
    %v2990 = vmul.f32 %v2550, %v117
    %v2991 = vmul.f32 %v2554, %v118
    %v2992 = vmul.f32 %v2558, %v119
    %v2993 = vmul.f32 %v2565, %v120
    %v2994 = vmul.f32 %v2569, %v121
    %v2995 = vmul.f32 %v2573, %v122
    %v2996 = vmul.f32 %v2577, %v123
    %v2997 = vmul.f32 %v2581, %v124
    %v2998 = vmul.f32 %v2585, %v125
    %v2999 = vmul.f32 %v2589, %v126
    %v3000 = vmul.f32 %v2593, %v127
    %v3001 = vmul.f32 %v2597, %v128
    %v3002 = vmul.f32 %v2601, %v129
    %v3003 = vmul.f32 %v2605, %v130
    %v3004 = vmul.f32 %v2609, %v131
    %v3005 = vmul.f32 %v2613, %v132
    %v3006 = vmul.f32 %v2617, %v133
    %v3007 = vmul.f32 %v2621, %v134
    %v3008 = vmul.f32 %v2625, %v135
    %v3009 = vmul.f32 %v2632, %v136
    %v3010 = vmul.f32 %v2636, %v137
    %v3011 = vmul.f32 %v2640, %v138
    %v3012 = vmul.f32 %v2644, %v139
    %v3013 = vmul.f32 %v2648, %v140
    %v3014 = vmul.f32 %v2652, %v141
    %v3015 = vmul.f32 %v2656, %v142
    %v3016 = vmul.f32 %v2660, %v143
    %v3017 = vmul.f32 %v2664, %v144
    %v3018 = vmul.f32 %v2668, %v145
    %v3019 = vmul.f32 %v2672, %v146
    %v3020 = vmul.f32 %v2676, %v147
    %v3021 = vmul.f32 %v2680, %v148
    %v3022 = vmul.f32 %v2684, %v149
    %v3023 = vmul.f32 %v2688, %v150
    %v3024 = vmul.f32 %v2692, %v151
    %v3025 = vmul.f32 %v2699, %v152
    %v3026 = vmul.f32 %v2703, %v153
    %v3027 = vmul.f32 %v2707, %v154
    %v3028 = vmul.f32 %v2711, %v155
    %v3029 = vmul.f32 %v2715, %v156
    %v3030 = vmul.f32 %v2719, %v157
    %v3031 = vmul.f32 %v2723, %v158
    %v3032 = vmul.f32 %v2727, %v159
    %v3033 = vmul.f32 %v2731, %v160
    %v3034 = vmul.f32 %v2735, %v161
    %v3035 = vmul.f32 %v2739, %v162
    %v3036 = vmul.f32 %v2743, %v163
    %v3037 = vmul.f32 %v2747, %v164
    %v3038 = vmul.f32 %v2751, %v165
    %v3039 = vmul.f32 %v2755, %v166
    %v3040 = vmul.f32 %v2759, %v167
    %v3041 = vmul.f32 %v2766, %v168
    %v3042 = vmul.f32 %v2770, %v169
    %v3043 = vmul.f32 %v2774, %v170
    %v3044 = vmul.f32 %v2778, %v171
    %v3045 = vmul.f32 %v2782, %v172
    %v3046 = vmul.f32 %v2786, %v173
    %v3047 = vmul.f32 %v2790, %v174
    %v3048 = vmul.f32 %v2794, %v175
    %v3049 = vmul.f32 %v2798, %v176
    %v3050 = vmul.f32 %v2802, %v177
    %v3051 = vmul.f32 %v2806, %v178
    %v3052 = vmul.f32 %v2810, %v179
    %v3053 = vmul.f32 %v2814, %v180
    %v3054 = vmul.f32 %v2818, %v181
    %v3055 = vmul.f32 %v2822, %v182
    %v3056 = vmul.f32 %v2826, %v183
    %v3057 = vmul.f32 %v2833, %v184
    %v3058 = vmul.f32 %v2837, %v185
    %v3059 = vmul.f32 %v2841, %v186
    %v3060 = vmul.f32 %v2845, %v187
    %v3061 = vmul.f32 %v2849, %v188
    %v3062 = vmul.f32 %v2853, %v189
    %v3063 = vmul.f32 %v2857, %v190
    %v3064 = vmul.f32 %v2861, %v191
    %v3065 = vmul.f32 %v2865, %v192
    %v3066 = vmul.f32 %v2869, %v193
    %v3067 = vmul.f32 %v2873, %v194
    %v3068 = vmul.f32 %v2877, %v195
    %v3069 = vmul.f32 %v2881, %v196
    %v3070 = vmul.f32 %v2885, %v197
    %v3071 = vmul.f32 %v2889, %v198
    %v3072 = vmul.f32 %v2893, %v199
    %v3073 = vmul.f32 %v2900, %v200
    %v3074 = vmul.f32 %v2904, %v201
    %v3075 = vmul.f32 %v2908, %v202
    %v3076 = vmul.f32 %v2912, %v203
    %v3077 = vmul.f32 %v2916, %v204
    %v3078 = vmul.f32 %v2920, %v205
    %v3079 = vmul.f32 %v2924, %v206
    %v3080 = vmul.f32 %v2928, %v207
    %v3081 = vmul.f32 %v2932, %v208
    %v3082 = vmul.f32 %v2936, %v209
    %v3083 = vmul.f32 %v2940, %v210
    %v3084 = vmul.f32 %v2944, %v211
    %v3085 = vmul.f32 %v2948, %v212
    %v3086 = vmul.f32 %v2952, %v213
    %v3087 = vmul.f32 %v2956, %v214
    %v3088 = vmul.f32 %v2960, %v215
    %v3089 = vadd.f32 %v2961, %v2962
    %v3090 = vadd.f32 %v3089, %v2963
    %v3091 = vadd.f32 %v3090, %v2964
    %v3092 = vadd.f32 %v3091, %v2965
    %v3093 = vadd.f32 %v3092, %v2966
    %v3094 = vadd.f32 %v3093, %v2967
    %v3095 = vadd.f32 %v3094, %v2968
    %v3096 = vadd.f32 %v3095, %v2969
    %v3097 = vadd.f32 %v3096, %v2970
    %v3098 = vadd.f32 %v3097, %v2971
    %v3099 = vadd.f32 %v3098, %v2972
    %v3100 = vadd.f32 %v3099, %v2973
    %v3101 = vadd.f32 %v3100, %v2974
    %v3102 = vadd.f32 %v3101, %v2975
    %v3103 = vadd.f32 %v3102, %v2976
    %v3104 = vrot.slane %v3103, 4
    %v3105 = vadd.f32 %v3103, %v3104
    %v3106 = vrot.slane %v3105, 2
    %v3107 = vadd.f32 %v3105, %v3106
    %v3108 = vrot.slane %v3107, 1
    %v3109 = vadd.f32 %v3107, %v3108
    %v3110 = vadd.f32 %v2977, %v2978
    %v3111 = vadd.f32 %v3110, %v2979
    %v3112 = vadd.f32 %v3111, %v2980
    %v3113 = vadd.f32 %v3112, %v2981
    %v3114 = vadd.f32 %v3113, %v2982
    %v3115 = vadd.f32 %v3114, %v2983
    %v3116 = vadd.f32 %v3115, %v2984
    %v3117 = vadd.f32 %v3116, %v2985
    %v3118 = vadd.f32 %v3117, %v2986
    %v3119 = vadd.f32 %v3118, %v2987
    %v3120 = vadd.f32 %v3119, %v2988
    %v3121 = vadd.f32 %v3120, %v2989
    %v3122 = vadd.f32 %v3121, %v2990
    %v3123 = vadd.f32 %v3122, %v2991
    %v3124 = vadd.f32 %v3123, %v2992
    %v3125 = vrot.slane %v3124, 4
    %v3126 = vadd.f32 %v3124, %v3125
    %v3127 = vrot.slane %v3126, 2
    %v3128 = vadd.f32 %v3126, %v3127
    %v3129 = vrot.slane %v3128, 1
    %v3130 = vadd.f32 %v3128, %v3129
    %v3131 = vadd.f32 %v2993, %v2994
    %v3132 = vadd.f32 %v3131, %v2995
    %v3133 = vadd.f32 %v3132, %v2996
    %v3134 = vadd.f32 %v3133, %v2997
    %v3135 = vadd.f32 %v3134, %v2998
    %v3136 = vadd.f32 %v3135, %v2999
    %v3137 = vadd.f32 %v3136, %v3000
    %v3138 = vadd.f32 %v3137, %v3001
    %v3139 = vadd.f32 %v3138, %v3002
    %v3140 = vadd.f32 %v3139, %v3003
    %v3141 = vadd.f32 %v3140, %v3004
    %v3142 = vadd.f32 %v3141, %v3005
    %v3143 = vadd.f32 %v3142, %v3006
    %v3144 = vadd.f32 %v3143, %v3007
    %v3145 = vadd.f32 %v3144, %v3008
    %v3146 = vrot.slane %v3145, 4
    %v3147 = vadd.f32 %v3145, %v3146
    %v3148 = vrot.slane %v3147, 2
    %v3149 = vadd.f32 %v3147, %v3148
    %v3150 = vrot.slane %v3149, 1
    %v3151 = vadd.f32 %v3149, %v3150
    %v3152 = vadd.f32 %v3009, %v3010
    %v3153 = vadd.f32 %v3152, %v3011
    %v3154 = vadd.f32 %v3153, %v3012
    %v3155 = vadd.f32 %v3154, %v3013
    %v3156 = vadd.f32 %v3155, %v3014
    %v3157 = vadd.f32 %v3156, %v3015
    %v3158 = vadd.f32 %v3157, %v3016
    %v3159 = vadd.f32 %v3158, %v3017
    %v3160 = vadd.f32 %v3159, %v3018
    %v3161 = vadd.f32 %v3160, %v3019
    %v3162 = vadd.f32 %v3161, %v3020
    %v3163 = vadd.f32 %v3162, %v3021
    %v3164 = vadd.f32 %v3163, %v3022
    %v3165 = vadd.f32 %v3164, %v3023
    %v3166 = vadd.f32 %v3165, %v3024
    %v3167 = vrot.slane %v3166, 4
    %v3168 = vadd.f32 %v3166, %v3167
    %v3169 = vrot.slane %v3168, 2
    %v3170 = vadd.f32 %v3168, %v3169
    %v3171 = vrot.slane %v3170, 1
    %v3172 = vadd.f32 %v3170, %v3171
    %v3173 = vadd.f32 %v3025, %v3026
    %v3174 = vadd.f32 %v3173, %v3027
    %v3175 = vadd.f32 %v3174, %v3028
    %v3176 = vadd.f32 %v3175, %v3029
    %v3177 = vadd.f32 %v3176, %v3030
    %v3178 = vadd.f32 %v3177, %v3031
    %v3179 = vadd.f32 %v3178, %v3032
    %v3180 = vadd.f32 %v3179, %v3033
    %v3181 = vadd.f32 %v3180, %v3034
    %v3182 = vadd.f32 %v3181, %v3035
    %v3183 = vadd.f32 %v3182, %v3036
    %v3184 = vadd.f32 %v3183, %v3037
    %v3185 = vadd.f32 %v3184, %v3038
    %v3186 = vadd.f32 %v3185, %v3039
    %v3187 = vadd.f32 %v3186, %v3040
    %v3188 = vrot.slane %v3187, 4
    %v3189 = vadd.f32 %v3187, %v3188
    %v3190 = vrot.slane %v3189, 2
    %v3191 = vadd.f32 %v3189, %v3190
    %v3192 = vrot.slane %v3191, 1
    %v3193 = vadd.f32 %v3191, %v3192
    %v3194 = vadd.f32 %v3041, %v3042
    %v3195 = vadd.f32 %v3194, %v3043
    %v3196 = vadd.f32 %v3195, %v3044
    %v3197 = vadd.f32 %v3196, %v3045
    %v3198 = vadd.f32 %v3197, %v3046
    %v3199 = vadd.f32 %v3198, %v3047
    %v3200 = vadd.f32 %v3199, %v3048
    %v3201 = vadd.f32 %v3200, %v3049
    %v3202 = vadd.f32 %v3201, %v3050
    %v3203 = vadd.f32 %v3202, %v3051
    %v3204 = vadd.f32 %v3203, %v3052
    %v3205 = vadd.f32 %v3204, %v3053
    %v3206 = vadd.f32 %v3205, %v3054
    %v3207 = vadd.f32 %v3206, %v3055
    %v3208 = vadd.f32 %v3207, %v3056
    %v3209 = vrot.slane %v3208, 4
    %v3210 = vadd.f32 %v3208, %v3209
    %v3211 = vrot.slane %v3210, 2
    %v3212 = vadd.f32 %v3210, %v3211
    %v3213 = vrot.slane %v3212, 1
    %v3214 = vadd.f32 %v3212, %v3213
    %v3215 = vadd.f32 %v3057, %v3058
    %v3216 = vadd.f32 %v3215, %v3059
    %v3217 = vadd.f32 %v3216, %v3060
    %v3218 = vadd.f32 %v3217, %v3061
    %v3219 = vadd.f32 %v3218, %v3062
    %v3220 = vadd.f32 %v3219, %v3063
    %v3221 = vadd.f32 %v3220, %v3064
    %v3222 = vadd.f32 %v3221, %v3065
    %v3223 = vadd.f32 %v3222, %v3066
    %v3224 = vadd.f32 %v3223, %v3067
    %v3225 = vadd.f32 %v3224, %v3068
    %v3226 = vadd.f32 %v3225, %v3069
    %v3227 = vadd.f32 %v3226, %v3070
    %v3228 = vadd.f32 %v3227, %v3071
    %v3229 = vadd.f32 %v3228, %v3072
    %v3230 = vrot.slane %v3229, 4
    %v3231 = vadd.f32 %v3229, %v3230
    %v3232 = vrot.slane %v3231, 2
    %v3233 = vadd.f32 %v3231, %v3232
    %v3234 = vrot.slane %v3233, 1
    %v3235 = vadd.f32 %v3233, %v3234
    %v3236 = vadd.f32 %v3073, %v3074
    %v3237 = vadd.f32 %v3236, %v3075
    %v3238 = vadd.f32 %v3237, %v3076
    %v3239 = vadd.f32 %v3238, %v3077
    %v3240 = vadd.f32 %v3239, %v3078
    %v3241 = vadd.f32 %v3240, %v3079
    %v3242 = vadd.f32 %v3241, %v3080
    %v3243 = vadd.f32 %v3242, %v3081
    %v3244 = vadd.f32 %v3243, %v3082
    %v3245 = vadd.f32 %v3244, %v3083
    %v3246 = vadd.f32 %v3245, %v3084
    %v3247 = vadd.f32 %v3246, %v3085
    %v3248 = vadd.f32 %v3247, %v3086
    %v3249 = vadd.f32 %v3248, %v3087
    %v3250 = vadd.f32 %v3249, %v3088
    %v3251 = vrot.slane %v3250, 4
    %v3252 = vadd.f32 %v3250, %v3251
    %v3253 = vrot.slane %v3252, 2
    %v3254 = vadd.f32 %v3252, %v3253
    %v3255 = vrot.slane %v3254, 1
    %v3256 = vadd.f32 %v3254, %v3255
    %v3257 = vld [vmem:[#allocation9] sm:$0xff]
    %v3258 = vld [vmem:[#allocation9 + $0x8] sm:$0xff]
    %v3259 = vld [vmem:[#allocation9 + $0x10] sm:$0xff]
    %v3260 = vld [vmem:[#allocation9 + $0x18] sm:$0xff]
    %v3261 = vld [vmem:[#allocation9 + $0x20] sm:$0xff]
    %v3262 = vld [vmem:[#allocation9 + $0x28] sm:$0xff]
    %v3263 = vld [vmem:[#allocation9 + $0x30] sm:$0xff]
    %v3264 = vld [vmem:[#allocation9 + $0x38] sm:$0xff]
    %v3265 = vld [vmem:[#allocation9 + $0x40] sm:$0xff]
    %v3266 = vld [vmem:[#allocation9 + $0x48] sm:$0xff]
    %v3267 = vld [vmem:[#allocation9 + $0x50] sm:$0xff]
    %v3268 = vld [vmem:[#allocation9 + $0x58] sm:$0xff]
    %v3269 = vld [vmem:[#allocation9 + $0x60] sm:$0xff]
    %v3270 = vld [vmem:[#allocation9 + $0x68] sm:$0xff]
    %v3271 = vld [vmem:[#allocation9 + $0x70] sm:$0xff]
    %v3272 = vld [vmem:[#allocation9 + $0x78] sm:$0xff]
    %v3273 = vld [vmem:[%s7] sm:$0x1]
    %v3275 = vlaneseq
    %v3276 = vshrl.u32 %v3275, 7
    %v3277 = vsub.s32 0, %v3276
    %v3278 = vrot.slane %v3273, %v3277
    %v3288 = vsel %vm2395, %v3130, %v3109
    %v3289 = vsel %vm2397, %v3151, %v3288
    %v3290 = vsel %vm2399, %v3172, %v3289
    %v3291 = vsel %vm2401, %v3193, %v3290
    %v3292 = vsel %vm2403, %v3214, %v3291
    %v3293 = vsel %vm2405, %v3235, %v3292
    %v3294 = vsel %vm2407, %v3256, %v3293
    %3296 = vmatprep.subr.mxu0 0.0
    %3297 = vmatpush1.msra.mxu0 %v3257
    %3298 = vmatprep.subr.mxu0 0.0
    %3299 = vmatpush1.msra.mxu0 %v3258
    %3300 = vmatprep.subr.mxu0 0.0
    %3301 = vmatpush1.msra.mxu0 %v3259
    %3302 = vmatprep.subr.mxu0 0.0
    %3303 = vmatpush1.msra.mxu0 %v3260
    %3304 = vmatprep.subr.mxu0 0.0
    %3305 = vmatpush1.msra.mxu0 %v3261
    %3306 = vmatprep.subr.mxu0 0.0
    %3307 = vmatpush1.msra.mxu0 %v3262
    %3308 = vmatprep.subr.mxu0 0.0
    %3309 = vmatpush1.msra.mxu0 %v3263
    %3310 = vmatprep.subr.mxu0 0.0
    %3311 = vmatpush1.msra.mxu0 %v3264
    %3312 = vmatprep.subr.mxu0 0.0
    %3313 = vmatpush1.msra.mxu0 %v3265
    %3314 = vmatprep.subr.mxu0 0.0
    %3315 = vmatpush1.msra.mxu0 %v3266
    %3316 = vmatprep.subr.mxu0 0.0
    %3317 = vmatpush1.msra.mxu0 %v3267
    %3318 = vmatprep.subr.mxu0 0.0
    %3319 = vmatpush1.msra.mxu0 %v3268
    %3320 = vmatprep.subr.mxu0 0.0
    %3321 = vmatpush1.msra.mxu0 %v3269
    %3322 = vmatprep.subr.mxu0 0.0
    %3323 = vmatpush1.msra.mxu0 %v3270
    %3324 = vmatprep.subr.mxu0 0.0
    %3325 = vmatpush1.msra.mxu0 %v3271
    %3326 = vmatprep.subr.mxu0 0.0
    %3327 = vmatpush1.msra.mxu0 %v3272
    %3328 = vmatprep.subr.mxu0 0.0
    %3329 = vmatpush1.msra.mxu0 0.0
    %3330 = vmatprep.subr.mxu0 0.0
    %3331 = vmatpush1.msra.mxu0 0.0
    %3332 = vmatprep.subr.mxu0 0.0
    %3333 = vmatpush1.msra.mxu0 0.0
    %3334 = vmatprep.subr.mxu0 0.0
    %3335 = vmatpush1.msra.mxu0 0.0
    %3336 = vmatprep.subr.mxu0 0.0
    %3337 = vmatpush1.msra.mxu0 0.0
    %3338 = vmatprep.subr.mxu0 0.0
    %3339 = vmatpush1.msra.mxu0 0.0
    %3340 = vmatprep.subr.mxu0 0.0
    %3341 = vmatpush1.msra.mxu0 0.0
    %3342 = vmatprep.subr.mxu0 0.0
    %3343 = vmatpush1.msra.mxu0 0.0
    %3344 = vmatprep.subr.mxu0 0.0
    %3345 = vmatpush1.msra.mxu0 0.0
    %3346 = vmatprep.subr.mxu0 0.0
    %3347 = vmatpush1.msra.mxu0 0.0
    %3348 = vmatprep.subr.mxu0 0.0
    %3349 = vmatpush1.msra.mxu0 0.0
    %3350 = vmatprep.subr.mxu0 0.0
    %3351 = vmatpush1.msra.mxu0 0.0
    %3352 = vmatprep.subr.mxu0 0.0
    %3353 = vmatpush1.msra.mxu0 0.0
    %3354 = vmatprep.subr.mxu0 0.0
    %3355 = vmatpush1.msra.mxu0 0.0
    %3356 = vmatprep.subr.mxu0 0.0
    %3357 = vmatpush1.msra.mxu0 0.0
    %3358 = vmatprep.subr.mxu0 0.0
    %3359 = vmatpush1.msra.mxu0 0.0
    %3360 = vmatprep.mubr.f32.mxu0 0.0
    %3361 = vmatmul.mubr.f32.gmra.mrb[0].mxu0 %v3294
    %v3362 = vpop.f32.mrb[0].mxu0
    %v3363 = vadd.f32 %v3278, %v3362
    %v3364 = vpop.f32.mrb[0].mxu0
    %3365 = vdwg.mxu0
    %3366 = vst [vmem:[#allocation12] sm:$0xff] %v3363
    // Predicated region
    $region50: #{tpu_custom_call.1} parent=1 // pred_check
      _
    $region51: #{tpu_custom_call.1} parent=1 // pred_check_branch
      %3368 = sbr.rel (0) target = $region53
    $region52: #{tpu_custom_call.1} parent=1 // pred_region
      %s3370 = ssub.s32 128, 128
      %3371 = vsyncadd [#allocation5], %s3370
      %s3373 = sshll.u32 [#allocation11], 4
      %s3374 = int_to_ptr.vmem [resolvable:$true] %s3373
      %3376 = dma.vmem_to_hbm [thread:$0]  %s3374, 128, %s8, [#allocation5]
    $region53: #{tpu_custom_call.1} parent=1 // pred_fallthru
      _
    // Predicated region
    $region54: #{tpu_custom_call.1} parent=1 // pred_check
      _
    $region55: #{tpu_custom_call.1} parent=1 // pred_check_branch
      %3378 = sbr.rel (0) target = $region57
    $region56: #{tpu_custom_call.1} parent=1 // pred_region
      %s3380 = ssub.s32 128, 128
      %3381 = vsyncadd [#allocation13], %s3380
      %s3383 = sshll.u32 [#allocation12], 4
      %s3384 = int_to_ptr.vmem [resolvable:$true] %s3383
      %3386 = dma.vmem_to_hbm [thread:$0]  %s3384, 128, %s9, [#allocation13]
    $region57: #{tpu_custom_call.1} parent=1 // pred_fallthru
      _
    // Predicated region
    $region58: #{tpu_custom_call.1} parent=1 // pred_check
      _
    $region59: #{tpu_custom_call.1} parent=1 // pred_check_branch
      %3388 = sbr.rel (0) target = $region61
    $region60: #{tpu_custom_call.1} parent=1 // pred_region
      %3389 = dma.done [#allocation5], 128
    $region61: #{tpu_custom_call.1} parent=1 // pred_fallthru
      _
    // Predicated region
    $region62: #{tpu_custom_call.1} parent=1 // pred_check
      _
    $region63: #{tpu_custom_call.1} parent=1 // pred_check_branch
      %3391 = sbr.rel (0) target = $region65
    $region64: #{tpu_custom_call.1} parent=1 // pred_region
      %3392 = dma.done [#allocation13], 128
    $region65: #{tpu_custom_call.1} parent=1 // pred_fallthru
      _
    %3393 = vsyncpa [#allocation4], 1
    %3394 = vsyncpa [#allocation7], 1
    %3395 = vsyncpa [#allocation10], 1
    %3396 = vsyncpa [#allocation5], 1
    %3397 = vsyncpa [#allocation13], 1

</llo_original>
